<compile_context>
chip_gen: v7x
topology: tpu7x:2x2x1
jax: 0.10.0
libtpu: 0.0.40
codegen_flags: <defaults>
</compile_context>

<pallas_src>
from functools import partial

import jax
import jax.numpy as jnp
import numpy as np
from jax.experimental import pallas as pl
from jax.experimental.pallas import tpu as pltpu


def arnn_kernel(x_ref, w_ih_ref, w_hh_ref, b_ih_ref, b_hh_ref,
                b_om_ref, u_om_ref, w_comb_ref, fc_b_ref,
                out_ref, gi_ref, hs_ref, *, S, TB, Gp, Ap):
    bf16 = jnp.bfloat16
    I = x_ref.shape[-1]

    # (1) Hoisted input projection for ALL timesteps: ONE slab MXU matmul, written to
    #     VMEM scratch (not held live in the register file across the recurrence).
    x2d = x_ref[...].reshape(S * TB, I)                      # f32; TB % 8 == 0 -> layout-preserving
    gi_ref[...] = (jnp.dot(x2d.astype(bf16), w_ih_ref[...],
                           preferred_element_type=jnp.float32)
                   + b_ih_ref[...]).reshape(S, TB, 3 * Gp)

    # (2) GRU recurrence: only h @ W_hh stays on the serial critical path.
    #     gi is re-loaded per step from scratch, W_hh is read inside the dot,
    #     state and gate nonlinearities stay f32.
    # PyTorch GRU: r = s(Wir x + bir + Whr h + bhr); z likewise;
    #              n = tanh(Win x + bin + r * (Whn h + bhn)); h = (1-z)*n + z*h
    def step(t, h):
        gi = gi_ref[t]                                       # (TB, 3*Gp) f32
        gh = jnp.dot(h.astype(bf16), w_hh_ref[...],
                     preferred_element_type=jnp.float32) + b_hh_ref[...]
        r = jax.nn.sigmoid(gi[:, 0:Gp] + gh[:, 0:Gp])        # whole-vreg slices
        z = jax.nn.sigmoid(gi[:, Gp:2 * Gp] + gh[:, Gp:2 * Gp])
        n = jnp.tanh(gi[:, 2 * Gp:3 * Gp] + r * gh[:, 2 * Gp:3 * Gp])
        h = (1.0 - z) * n + z * h                            # (TB, Gp) f32 state
        hs_ref[t] = h
        return h

    # TODO(synk): on v7x, W_hh could be held in MXU weight staging registers across the
    # recurrence (pltpu.matmul_push_rhs / matmul_acc_lhs / matmul_pop) if a bundle dump
    # shows the per-step vmatmul push cadence dominating the loop.
    jax.lax.fori_loop(0, S, step, jnp.zeros((TB, Gp), jnp.float32),
                      unroll=S <= 16)

    # (3) Fused attention-projection + FC: ONE slab matmul over all timesteps.
    #     w_comb = [w_omega | fc_weight^T], each in its own 128-lane block.
    hs2d = hs_ref[...].reshape(S * TB, Gp)
    pre = jnp.dot(hs2d.astype(bf16), w_comb_ref[...],
                  preferred_element_type=jnp.float32)        # (S*TB, Ap+Op)

    # Order_Attention scores: v = tanh(h @ w_omega + b_omega); vu = v . u_omega
    v = jnp.tanh(pre[:, :Ap] + b_om_ref[...])                # (S*TB, Ap)
    vu = jnp.sum(v * u_om_ref[...], axis=-1, keepdims=True)  # (S*TB, 1)

    # (4) Exact softmax over the time axis, grouped per batch row (F.softmax(vu, dim=1)).
    vu3 = vu.reshape(S, TB, 1)                               # layout-preserving split
    m = vu3[0]
    for t in range(1, S):
        m = jnp.maximum(m, vu3[t])                           # (TB, 1)
    e3 = jnp.exp(vu3 - m)                                    # one exp for all (t, b)
    den = e3[0]
    for t in range(1, S):
        den = den + e3[t]                                    # (TB, 1)
    alpha = (e3 / den).reshape(S * TB, 1)                    # exact divide (no approx recip)

    # (5) (alpha*h) @ fc_w == alpha * (h @ fc_w); fc bias added AFTER scaling.
    #     Output block is lane-dense (Op = 128-padded) -> unmasked stores.
    out_ref[...] = (pre[:, Ap:] * alpha + fc_b_ref[...]).reshape(out_ref.shape)


def arnn_forward(x, params):
    """x: (S, B, I) float32 -> (B, S, O) float32 (same as ARNN.forward)."""
    S, B, I = x.shape
    H = params["w_hh"].shape[0]
    A = params["w_om"].shape[1]
    O = params["fc_w"].shape[1]

    f32, bf16 = jnp.float32, jnp.bfloat16
    LANE, SUB = 128, 8
    rup = lambda v, m: ((v + m - 1) // m) * m
    Gp, Ap, Op = rup(H, LANE), rup(A, LANE), rup(O, LANE)
    # Batch tile: 256 rows matches the v6e/v7x MXU; otherwise just sublane-round B.
    TB = 256 if B >= 256 else rup(B, SUB)
    Bp = rup(B, TB)
    nb = Bp // TB

    # --- pad batch (kept f32; cast to bf16 at the MXU input inside the kernel) -------
    xp = jnp.pad(x.astype(f32), ((0, 0), (0, Bp - B), (0, 0)))          # (S, Bp, I)

    # --- pad GRU gates to 128-lane boundaries (exact: zero pads stay zero) -----------
    def pad_gate_cols(w, dtype):                # (rows, 3H) -> (rows, 3*Gp)
        rows = w.shape[0]
        out = jnp.zeros((rows, 3 * Gp), f32)
        for g in range(3):
            out = out.at[:, g * Gp:g * Gp + H].set(w[:, g * H:(g + 1) * H])
        return out.astype(dtype)

    w_ih_p = pad_gate_cols(params["w_ih"], bf16)                        # (I, 3*Gp)
    w_hh_p = (jnp.zeros((Gp, 3 * Gp), f32)
              .at[:H, :].set(pad_gate_cols(params["w_hh"], f32))).astype(bf16)
    b_ih_p = pad_gate_cols(params["b_ih"], f32)                         # (1, 3*Gp)
    b_hh_p = pad_gate_cols(params["b_hh"], f32)

    # --- fuse attention projection and fc weight; each in its own 128-lane block -----
    w_comb = (jnp.zeros((Gp, Ap + Op), f32)
              .at[:H, :A].set(params["w_om"])
              .at[:H, Ap:Ap + O].set(params["fc_w"])).astype(bf16)
    b_om_p = jnp.zeros((1, Ap), f32).at[:, :A].set(params["b_om"])
    u_om_p = jnp.zeros((1, Ap), f32).at[:, :A].set(params["u_om"])
    fc_b_p = jnp.zeros((1, Op), f32).at[:, :O].set(params["fc_b"])

    kernel = partial(arnn_kernel, S=S, TB=TB, Gp=Gp, Ap=Ap)

    def full_spec(shape):                       # weights/biases: VMEM-resident across tiles
        nd = len(shape)
        return pl.BlockSpec(shape, lambda b, _nd=nd: (0,) * _nd)

    # TODO(synk): for production S/B on v7x, size TB so x-tile + gi/hs scratch +
    # double-buffered in/out stay well under the 64 MiB VMEM (raise vmem_limit_bytes
    # above the 32 MiB default but leave headroom).
    out3 = pl.pallas_call(
        kernel,
        out_shape=jax.ShapeDtypeStruct((S, Bp, Op), f32),
        grid=(nb,),
        in_specs=[
            pl.BlockSpec((S, TB, I), lambda b: (0, b, 0)),              # x, batch-tiled
            full_spec((I, 3 * Gp)),                                     # w_ih
            full_spec((Gp, 3 * Gp)),                                    # w_hh
            full_spec((1, 3 * Gp)),                                     # b_ih
            full_spec((1, 3 * Gp)),                                     # b_hh
            full_spec((1, Ap)),                                         # b_omega
            full_spec((1, Ap)),                                         # u_omega
            full_spec((Gp, Ap + Op)),                                   # [w_omega | fc_w]
            full_spec((1, Op)),                                         # fc_b
        ],
        out_specs=pl.BlockSpec((S, TB, Op), lambda b: (0, b, 0)),
        scratch_shapes=[pltpu.VMEM((S, TB, 3 * Gp), f32),               # staged gi
                        pltpu.VMEM((S, TB, Gp), f32)],                  # per-step h
        compiler_params=pltpu.CompilerParams(
            dimension_semantics=("parallel",)),                         # both v7x TCs for large B
    )(xp, w_ih_p, w_hh_p, b_ih_p, b_hh_p, b_om_p, u_om_p, w_comb, fc_b_p)

    # (S, Bp, Op) -> (Bp, S, Op) -> (B, S, O)
    return out3.transpose(1, 0, 2)[:B, :, :O]


def arnn_reference(x, p):
    """Pure-JAX (f32) mirror of the PyTorch forward for a correctness check."""
    S, B, _ = x.shape
    H = p["w_hh"].shape[0]
    h = jnp.zeros((B, H), jnp.float32)
    outs = []
    for t in range(S):
        gi = x[t] @ p["w_ih"] + p["b_ih"]
        gh = h @ p["w_hh"] + p["b_hh"]
        r = jax.nn.sigmoid(gi[:, :H] + gh[:, :H])
        z = jax.nn.sigmoid(gi[:, H:2 * H] + gh[:, H:2 * H])
        n = jnp.tanh(gi[:, 2 * H:] + r * gh[:, 2 * H:])
        h = (1.0 - z) * n + z * h
        outs.append(h)
    g = jnp.stack(outs, axis=0)                 # (S, B, H)
    inputs = jnp.transpose(g, (1, 0, 2))        # (B, S, H)  == torch permute(1,0,2)
    v = jnp.tanh(inputs @ p["w_om"] + p["b_om"][0])
    vu = v @ p["u_om"][0]                       # (B, S)
    alphas = jax.nn.softmax(vu, axis=1)
    att = inputs * alphas[..., None]
    return att @ p["fc_w"] + p["fc_b"][0]       # (B, S, O)


if __name__ == "__main__":
    # Small shapes consistent with the module: seq=8, batch=4,
    # input_size=16, hidden_size=32, attention_size=16, output_size=8.
    S, B, I, H, A, O = 8, 4, 16, 32, 16, 8

    key = jax.random.PRNGKey(0)
    ks = jax.random.split(key, 10)
    scale = float(1.0 / np.sqrt(H))
    params = {
        # GRU parameters (torch default init: U(-1/sqrt(H), 1/sqrt(H))), pre-transposed
        "w_ih": jax.random.uniform(ks[0], (I, 3 * H), jnp.float32, -scale, scale),
        "w_hh": jax.random.uniform(ks[1], (H, 3 * H), jnp.float32, -scale, scale),
        "b_ih": jax.random.uniform(ks[2], (1, 3 * H), jnp.float32, -scale, scale),
        "b_hh": jax.random.uniform(ks[3], (1, 3 * H), jnp.float32, -scale, scale),
        # Order_Attention parameters (torch.randn)
        "w_om": jax.random.normal(ks[4], (H, A), jnp.float32),
        "b_om": jax.random.normal(ks[5], (1, A), jnp.float32),
        "u_om": jax.random.normal(ks[6], (1, A), jnp.float32),
        # Linear(hidden_size, output_size), pre-transposed
        "fc_w": jax.random.uniform(ks[7], (H, O), jnp.float32, -scale, scale),
        "fc_b": jax.random.uniform(ks[8], (1, O), jnp.float32, -scale, scale),
    }
    x = jax.random.normal(ks[9], (S, B, I), jnp.float32)

    out = jax.jit(arnn_forward)(x, params)
    out = jax.block_until_ready(out)
    assert out.shape == (B, S, O)

    ref = arnn_reference(x, params)
    # Tolerance reflects bf16 MXU operands (f32 accumulation; state/elementwise math
    # and the softmax itself are exact f32).
    np.testing.assert_allclose(np.asarray(out), np.asarray(ref), rtol=2e-2, atol=2e-2)

    print("KERNEL_OK")
</pallas_src>

<mosaic_0001>
module attributes {stable_mosaic.version = 11 : i64} {
  func.func @arnn_kernel(%arg0: i32, %arg1: memref<8x8x16xf32, #tpu.memory_space<vmem>>, %arg2: memref<16x384xbf16, #tpu.memory_space<vmem>>, %arg3: memref<128x384xbf16, #tpu.memory_space<vmem>>, %arg4: memref<1x384xf32, #tpu.memory_space<vmem>>, %arg5: memref<1x384xf32, #tpu.memory_space<vmem>>, %arg6: memref<1x128xf32, #tpu.memory_space<vmem>>, %arg7: memref<1x128xf32, #tpu.memory_space<vmem>>, %arg8: memref<128x256xbf16, #tpu.memory_space<vmem>>, %arg9: memref<1x128xf32, #tpu.memory_space<vmem>>, %arg10: memref<8x8x128xf32, #tpu.memory_space<vmem>>, %arg11: memref<8x8x384xf32, #tpu.memory_space<vmem>>, %arg12: memref<8x8x128xf32, #tpu.memory_space<vmem>>) attributes {dimension_semantics = [#tpu.dimension_semantics<parallel>], iteration_bounds = array<i64: 1>, scalar_prefetch = 0 : i64, scratch_operands = 2 : i64, tpu.core_type = #tpu.core_type<tc>, window_params = [{transform_indices = @transform_0, window_bounds = array<i64: 8, 8, 16>}, {pipeline_mode = #tpu.pipeline_mode<synchronous>, transform_indices = @transform_1, window_bounds = array<i64: 16, 384>}, {pipeline_mode = #tpu.pipeline_mode<synchronous>, transform_indices = @transform_2, window_bounds = array<i64: 128, 384>}, {pipeline_mode = #tpu.pipeline_mode<synchronous>, transform_indices = @transform_3, window_bounds = array<i64: 1, 384>}, {pipeline_mode = #tpu.pipeline_mode<synchronous>, transform_indices = @transform_4, window_bounds = array<i64: 1, 384>}, {pipeline_mode = #tpu.pipeline_mode<synchronous>, transform_indices = @transform_5, window_bounds = array<i64: 1, 128>}, {pipeline_mode = #tpu.pipeline_mode<synchronous>, transform_indices = @transform_6, window_bounds = array<i64: 1, 128>}, {pipeline_mode = #tpu.pipeline_mode<synchronous>, transform_indices = @transform_7, window_bounds = array<i64: 128, 256>}, {pipeline_mode = #tpu.pipeline_mode<synchronous>, transform_indices = @transform_8, window_bounds = array<i64: 1, 128>}, {transform_indices = @transform_9, window_bounds = array<i64: 8, 8, 128>}]} {
    %c0 = arith.constant 0 : index
    %c0_0 = arith.constant 0 : index
    %c0_1 = arith.constant 0 : index
    %0 = vector.load %arg1[%c0, %c0_0, %c0_1] : memref<8x8x16xf32, #tpu.memory_space<vmem>>, vector<8x8x16xf32>
    %1 = vector.shape_cast %0 : vector<8x8x16xf32> to vector<64x16xf32>
    %2 = arith.truncf %1 : vector<64x16xf32> to vector<64x16xbf16>
    %c0_2 = arith.constant 0 : index
    %c0_3 = arith.constant 0 : index
    %3 = vector.load %arg2[%c0_2, %c0_3] : memref<16x384xbf16, #tpu.memory_space<vmem>>, vector<16x384xbf16>
    %cst = arith.constant dense<0.000000e+00> : vector<64x384xf32>
    %4 = tpu.matmul %2, %3, %cst {dimension_numbers = #tpu.dot_dimension_numbers<[1], [0], [0], [1], [0, 0, 1, 1], [], []>} : vector<64x16xbf16>, vector<16x384xbf16>, vector<64x384xf32> -> vector<64x384xf32>
    %c0_4 = arith.constant 0 : index
    %c0_5 = arith.constant 0 : index
    %5 = vector.load %arg4[%c0_4, %c0_5] : memref<1x384xf32, #tpu.memory_space<vmem>>, vector<1x384xf32>
    %6 = vector.broadcast %5 : vector<1x384xf32> to vector<64x384xf32>
    %7 = arith.addf %4, %6 : vector<64x384xf32>
    %8 = vector.shape_cast %7 : vector<64x384xf32> to vector<8x8x384xf32>
    %c0_6 = arith.constant 0 : index
    %c0_7 = arith.constant 0 : index
    %c0_8 = arith.constant 0 : index
    %9 = vector.load %arg11[%c0_6, %c0_7, %c0_8] : memref<8x8x384xf32, #tpu.memory_space<vmem>>, vector<8x8x384xf32>
    tpu.vector_store %arg11[%c0_6, %c0_7, %c0_8], %8 {strides = array<i32>} : memref<8x8x384xf32, #tpu.memory_space<vmem>>, vector<8x8x384xf32>,
    %cst_9 = arith.constant 0.000000e+00 : f32
    %10 = vector.broadcast %cst_9 : f32 to vector<8x128xf32>
    %c0_i32 = arith.constant 0 : i32
    %11 = arith.index_cast %c0_i32 : i32 to index
    %c0_10 = arith.constant 0 : index
    %c0_11 = arith.constant 0 : index
    %12 = vector.load %arg11[%11, %c0_10, %c0_11] : memref<8x8x384xf32, #tpu.memory_space<vmem>>, vector<1x8x384xf32>
    %13 = vector.shape_cast %12 : vector<1x8x384xf32> to vector<8x384xf32>
    %14 = arith.truncf %10 : vector<8x128xf32> to vector<8x128xbf16>
    %c0_12 = arith.constant 0 : index
    %c0_13 = arith.constant 0 : index
    %15 = vector.load %arg3[%c0_12, %c0_13] : memref<128x384xbf16, #tpu.memory_space<vmem>>, vector<128x384xbf16>
    %cst_14 = arith.constant dense<0.000000e+00> : vector<8x384xf32>
    %16 = tpu.matmul %14, %15, %cst_14 {dimension_numbers = #tpu.dot_dimension_numbers<[1], [0], [0], [1], [0, 0, 1, 1], [], []>} : vector<8x128xbf16>, vector<128x384xbf16>, vector<8x384xf32> -> vector<8x384xf32>
    %c0_15 = arith.constant 0 : index
    %c0_16 = arith.constant 0 : index
    %17 = vector.load %arg5[%c0_15, %c0_16] : memref<1x384xf32, #tpu.memory_space<vmem>>, vector<1x384xf32>
    %18 = vector.broadcast %17 : vector<1x384xf32> to vector<8x384xf32>
    %19 = arith.addf %16, %18 : vector<8x384xf32>
    %20 = vector.extract_strided_slice %13 {offsets = [0, 0], sizes = [8, 128], strides = [1, 1]} : vector<8x384xf32> to vector<8x128xf32>
    %21 = vector.extract_strided_slice %19 {offsets = [0, 0], sizes = [8, 128], strides = [1, 1]} : vector<8x384xf32> to vector<8x128xf32>
    %22 = arith.addf %20, %21 : vector<8x128xf32>
    %23 = arith.negf %22 : vector<8x128xf32>
    %24 = math.exp %23 : vector<8x128xf32>
    %cst_17 = arith.constant 1.000000e+00 : f32
    %25 = vector.broadcast %cst_17 : f32 to vector<8x128xf32>
    %26 = arith.addf %25, %24 : vector<8x128xf32>
    %27 = arith.divf %25, %26 : vector<8x128xf32>
    %28 = vector.extract_strided_slice %13 {offsets = [0, 128], sizes = [8, 128], strides = [1, 1]} : vector<8x384xf32> to vector<8x128xf32>
    %29 = vector.extract_strided_slice %19 {offsets = [0, 128], sizes = [8, 128], strides = [1, 1]} : vector<8x384xf32> to vector<8x128xf32>
    %30 = arith.addf %28, %29 : vector<8x128xf32>
    %31 = arith.negf %30 : vector<8x128xf32>
    %32 = math.exp %31 : vector<8x128xf32>
    %cst_18 = arith.constant 1.000000e+00 : f32
    %33 = vector.broadcast %cst_18 : f32 to vector<8x128xf32>
    %34 = arith.addf %33, %32 : vector<8x128xf32>
    %35 = arith.divf %33, %34 : vector<8x128xf32>
    %36 = vector.extract_strided_slice %13 {offsets = [0, 256], sizes = [8, 128], strides = [1, 1]} : vector<8x384xf32> to vector<8x128xf32>
    %37 = vector.extract_strided_slice %19 {offsets = [0, 256], sizes = [8, 128], strides = [1, 1]} : vector<8x384xf32> to vector<8x128xf32>
    %38 = arith.mulf %27, %37 : vector<8x128xf32>
    %39 = arith.addf %36, %38 : vector<8x128xf32>
    %40 = math.tanh %39 : vector<8x128xf32>
    %cst_19 = arith.constant 1.000000e+00 : f32
    %41 = vector.broadcast %cst_19 : f32 to vector<8x128xf32>
    %42 = arith.subf %41, %35 : vector<8x128xf32>
    %43 = arith.mulf %42, %40 : vector<8x128xf32>
    %44 = arith.mulf %35, %10 : vector<8x128xf32>
    %45 = arith.addf %43, %44 : vector<8x128xf32>
    %46 = arith.index_cast %c0_i32 : i32 to index
    %c0_20 = arith.constant 0 : index
    %c0_21 = arith.constant 0 : index
    %47 = vector.load %arg12[%46, %c0_20, %c0_21] : memref<8x8x128xf32, #tpu.memory_space<vmem>>, vector<1x8x128xf32>
    %48 = vector.shape_cast %47 : vector<1x8x128xf32> to vector<8x128xf32>
    %49 = vector.shape_cast %45 : vector<8x128xf32> to vector<1x8x128xf32>
    tpu.vector_store %arg12[%46, %c0_20, %c0_21], %49 {strides = array<i32>} : memref<8x8x128xf32, #tpu.memory_space<vmem>>, vector<1x8x128xf32>,
    %c1_i32 = arith.constant 1 : i32
    %50 = arith.index_cast %c1_i32 : i32 to index
    %c0_22 = arith.constant 0 : index
    %c0_23 = arith.constant 0 : index
    %51 = vector.load %arg11[%50, %c0_22, %c0_23] : memref<8x8x384xf32, #tpu.memory_space<vmem>>, vector<1x8x384xf32>
    %52 = vector.shape_cast %51 : vector<1x8x384xf32> to vector<8x384xf32>
    %53 = arith.truncf %45 : vector<8x128xf32> to vector<8x128xbf16>
    %c0_24 = arith.constant 0 : index
    %c0_25 = arith.constant 0 : index
    %54 = vector.load %arg3[%c0_24, %c0_25] : memref<128x384xbf16, #tpu.memory_space<vmem>>, vector<128x384xbf16>
    %cst_26 = arith.constant dense<0.000000e+00> : vector<8x384xf32>
    %55 = tpu.matmul %53, %54, %cst_26 {dimension_numbers = #tpu.dot_dimension_numbers<[1], [0], [0], [1], [0, 0, 1, 1], [], []>} : vector<8x128xbf16>, vector<128x384xbf16>, vector<8x384xf32> -> vector<8x384xf32>
    %c0_27 = arith.constant 0 : index
    %c0_28 = arith.constant 0 : index
    %56 = vector.load %arg5[%c0_27, %c0_28] : memref<1x384xf32, #tpu.memory_space<vmem>>, vector<1x384xf32>
    %57 = vector.broadcast %56 : vector<1x384xf32> to vector<8x384xf32>
    %58 = arith.addf %55, %57 : vector<8x384xf32>
    %59 = vector.extract_strided_slice %52 {offsets = [0, 0], sizes = [8, 128], strides = [1, 1]} : vector<8x384xf32> to vector<8x128xf32>
    %60 = vector.extract_strided_slice %58 {offsets = [0, 0], sizes = [8, 128], strides = [1, 1]} : vector<8x384xf32> to vector<8x128xf32>
    %61 = arith.addf %59, %60 : vector<8x128xf32>
    %62 = arith.negf %61 : vector<8x128xf32>
    %63 = math.exp %62 : vector<8x128xf32>
    %cst_29 = arith.constant 1.000000e+00 : f32
    %64 = vector.broadcast %cst_29 : f32 to vector<8x128xf32>
    %65 = arith.addf %64, %63 : vector<8x128xf32>
    %66 = arith.divf %64, %65 : vector<8x128xf32>
    %67 = vector.extract_strided_slice %52 {offsets = [0, 128], sizes = [8, 128], strides = [1, 1]} : vector<8x384xf32> to vector<8x128xf32>
    %68 = vector.extract_strided_slice %58 {offsets = [0, 128], sizes = [8, 128], strides = [1, 1]} : vector<8x384xf32> to vector<8x128xf32>
    %69 = arith.addf %67, %68 : vector<8x128xf32>
    %70 = arith.negf %69 : vector<8x128xf32>
    %71 = math.exp %70 : vector<8x128xf32>
    %cst_30 = arith.constant 1.000000e+00 : f32
    %72 = vector.broadcast %cst_30 : f32 to vector<8x128xf32>
    %73 = arith.addf %72, %71 : vector<8x128xf32>
    %74 = arith.divf %72, %73 : vector<8x128xf32>
    %75 = vector.extract_strided_slice %52 {offsets = [0, 256], sizes = [8, 128], strides = [1, 1]} : vector<8x384xf32> to vector<8x128xf32>
    %76 = vector.extract_strided_slice %58 {offsets = [0, 256], sizes = [8, 128], strides = [1, 1]} : vector<8x384xf32> to vector<8x128xf32>
    %77 = arith.mulf %66, %76 : vector<8x128xf32>
    %78 = arith.addf %75, %77 : vector<8x128xf32>
    %79 = math.tanh %78 : vector<8x128xf32>
    %cst_31 = arith.constant 1.000000e+00 : f32
    %80 = vector.broadcast %cst_31 : f32 to vector<8x128xf32>
    %81 = arith.subf %80, %74 : vector<8x128xf32>
    %82 = arith.mulf %81, %79 : vector<8x128xf32>
    %83 = arith.mulf %74, %45 : vector<8x128xf32>
    %84 = arith.addf %82, %83 : vector<8x128xf32>
    %85 = arith.index_cast %c1_i32 : i32 to index
    %c0_32 = arith.constant 0 : index
    %c0_33 = arith.constant 0 : index
    %86 = vector.load %arg12[%85, %c0_32, %c0_33] : memref<8x8x128xf32, #tpu.memory_space<vmem>>, vector<1x8x128xf32>
    %87 = vector.shape_cast %86 : vector<1x8x128xf32> to vector<8x128xf32>
    %88 = vector.shape_cast %84 : vector<8x128xf32> to vector<1x8x128xf32>
    tpu.vector_store %arg12[%85, %c0_32, %c0_33], %88 {strides = array<i32>} : memref<8x8x128xf32, #tpu.memory_space<vmem>>, vector<1x8x128xf32>,
    %c2_i32 = arith.constant 2 : i32
    %89 = arith.index_cast %c2_i32 : i32 to index
    %c0_34 = arith.constant 0 : index
    %c0_35 = arith.constant 0 : index
    %90 = vector.load %arg11[%89, %c0_34, %c0_35] : memref<8x8x384xf32, #tpu.memory_space<vmem>>, vector<1x8x384xf32>
    %91 = vector.shape_cast %90 : vector<1x8x384xf32> to vector<8x384xf32>
    %92 = arith.truncf %84 : vector<8x128xf32> to vector<8x128xbf16>
    %c0_36 = arith.constant 0 : index
    %c0_37 = arith.constant 0 : index
    %93 = vector.load %arg3[%c0_36, %c0_37] : memref<128x384xbf16, #tpu.memory_space<vmem>>, vector<128x384xbf16>
    %cst_38 = arith.constant dense<0.000000e+00> : vector<8x384xf32>
    %94 = tpu.matmul %92, %93, %cst_38 {dimension_numbers = #tpu.dot_dimension_numbers<[1], [0], [0], [1], [0, 0, 1, 1], [], []>} : vector<8x128xbf16>, vector<128x384xbf16>, vector<8x384xf32> -> vector<8x384xf32>
    %c0_39 = arith.constant 0 : index
    %c0_40 = arith.constant 0 : index
    %95 = vector.load %arg5[%c0_39, %c0_40] : memref<1x384xf32, #tpu.memory_space<vmem>>, vector<1x384xf32>
    %96 = vector.broadcast %95 : vector<1x384xf32> to vector<8x384xf32>
    %97 = arith.addf %94, %96 : vector<8x384xf32>
    %98 = vector.extract_strided_slice %91 {offsets = [0, 0], sizes = [8, 128], strides = [1, 1]} : vector<8x384xf32> to vector<8x128xf32>
    %99 = vector.extract_strided_slice %97 {offsets = [0, 0], sizes = [8, 128], strides = [1, 1]} : vector<8x384xf32> to vector<8x128xf32>
    %100 = arith.addf %98, %99 : vector<8x128xf32>
    %101 = arith.negf %100 : vector<8x128xf32>
    %102 = math.exp %101 : vector<8x128xf32>
    %cst_41 = arith.constant 1.000000e+00 : f32
    %103 = vector.broadcast %cst_41 : f32 to vector<8x128xf32>
    %104 = arith.addf %103, %102 : vector<8x128xf32>
    %105 = arith.divf %103, %104 : vector<8x128xf32>
    %106 = vector.extract_strided_slice %91 {offsets = [0, 128], sizes = [8, 128], strides = [1, 1]} : vector<8x384xf32> to vector<8x128xf32>
    %107 = vector.extract_strided_slice %97 {offsets = [0, 128], sizes = [8, 128], strides = [1, 1]} : vector<8x384xf32> to vector<8x128xf32>
    %108 = arith.addf %106, %107 : vector<8x128xf32>
    %109 = arith.negf %108 : vector<8x128xf32>
    %110 = math.exp %109 : vector<8x128xf32>
    %cst_42 = arith.constant 1.000000e+00 : f32
    %111 = vector.broadcast %cst_42 : f32 to vector<8x128xf32>
    %112 = arith.addf %111, %110 : vector<8x128xf32>
    %113 = arith.divf %111, %112 : vector<8x128xf32>
    %114 = vector.extract_strided_slice %91 {offsets = [0, 256], sizes = [8, 128], strides = [1, 1]} : vector<8x384xf32> to vector<8x128xf32>
    %115 = vector.extract_strided_slice %97 {offsets = [0, 256], sizes = [8, 128], strides = [1, 1]} : vector<8x384xf32> to vector<8x128xf32>
    %116 = arith.mulf %105, %115 : vector<8x128xf32>
    %117 = arith.addf %114, %116 : vector<8x128xf32>
    %118 = math.tanh %117 : vector<8x128xf32>
    %cst_43 = arith.constant 1.000000e+00 : f32
    %119 = vector.broadcast %cst_43 : f32 to vector<8x128xf32>
    %120 = arith.subf %119, %113 : vector<8x128xf32>
    %121 = arith.mulf %120, %118 : vector<8x128xf32>
    %122 = arith.mulf %113, %84 : vector<8x128xf32>
    %123 = arith.addf %121, %122 : vector<8x128xf32>
    %124 = arith.index_cast %c2_i32 : i32 to index
    %c0_44 = arith.constant 0 : index
    %c0_45 = arith.constant 0 : index
    %125 = vector.load %arg12[%124, %c0_44, %c0_45] : memref<8x8x128xf32, #tpu.memory_space<vmem>>, vector<1x8x128xf32>
    %126 = vector.shape_cast %125 : vector<1x8x128xf32> to vector<8x128xf32>
    %127 = vector.shape_cast %123 : vector<8x128xf32> to vector<1x8x128xf32>
    tpu.vector_store %arg12[%124, %c0_44, %c0_45], %127 {strides = array<i32>} : memref<8x8x128xf32, #tpu.memory_space<vmem>>, vector<1x8x128xf32>,
    %c3_i32 = arith.constant 3 : i32
    %128 = arith.index_cast %c3_i32 : i32 to index
    %c0_46 = arith.constant 0 : index
    %c0_47 = arith.constant 0 : index
    %129 = vector.load %arg11[%128, %c0_46, %c0_47] : memref<8x8x384xf32, #tpu.memory_space<vmem>>, vector<1x8x384xf32>
    %130 = vector.shape_cast %129 : vector<1x8x384xf32> to vector<8x384xf32>
    %131 = arith.truncf %123 : vector<8x128xf32> to vector<8x128xbf16>
    %c0_48 = arith.constant 0 : index
    %c0_49 = arith.constant 0 : index
    %132 = vector.load %arg3[%c0_48, %c0_49] : memref<128x384xbf16, #tpu.memory_space<vmem>>, vector<128x384xbf16>
    %cst_50 = arith.constant dense<0.000000e+00> : vector<8x384xf32>
    %133 = tpu.matmul %131, %132, %cst_50 {dimension_numbers = #tpu.dot_dimension_numbers<[1], [0], [0], [1], [0, 0, 1, 1], [], []>} : vector<8x128xbf16>, vector<128x384xbf16>, vector<8x384xf32> -> vector<8x384xf32>
    %c0_51 = arith.constant 0 : index
    %c0_52 = arith.constant 0 : index
    %134 = vector.load %arg5[%c0_51, %c0_52] : memref<1x384xf32, #tpu.memory_space<vmem>>, vector<1x384xf32>
    %135 = vector.broadcast %134 : vector<1x384xf32> to vector<8x384xf32>
    %136 = arith.addf %133, %135 : vector<8x384xf32>
    %137 = vector.extract_strided_slice %130 {offsets = [0, 0], sizes = [8, 128], strides = [1, 1]} : vector<8x384xf32> to vector<8x128xf32>
    %138 = vector.extract_strided_slice %136 {offsets = [0, 0], sizes = [8, 128], strides = [1, 1]} : vector<8x384xf32> to vector<8x128xf32>
    %139 = arith.addf %137, %138 : vector<8x128xf32>
    %140 = arith.negf %139 : vector<8x128xf32>
    %141 = math.exp %140 : vector<8x128xf32>
    %cst_53 = arith.constant 1.000000e+00 : f32
    %142 = vector.broadcast %cst_53 : f32 to vector<8x128xf32>
    %143 = arith.addf %142, %141 : vector<8x128xf32>
    %144 = arith.divf %142, %143 : vector<8x128xf32>
    %145 = vector.extract_strided_slice %130 {offsets = [0, 128], sizes = [8, 128], strides = [1, 1]} : vector<8x384xf32> to vector<8x128xf32>
    %146 = vector.extract_strided_slice %136 {offsets = [0, 128], sizes = [8, 128], strides = [1, 1]} : vector<8x384xf32> to vector<8x128xf32>
    %147 = arith.addf %145, %146 : vector<8x128xf32>
    %148 = arith.negf %147 : vector<8x128xf32>
    %149 = math.exp %148 : vector<8x128xf32>
    %cst_54 = arith.constant 1.000000e+00 : f32
    %150 = vector.broadcast %cst_54 : f32 to vector<8x128xf32>
    %151 = arith.addf %150, %149 : vector<8x128xf32>
    %152 = arith.divf %150, %151 : vector<8x128xf32>
    %153 = vector.extract_strided_slice %130 {offsets = [0, 256], sizes = [8, 128], strides = [1, 1]} : vector<8x384xf32> to vector<8x128xf32>
    %154 = vector.extract_strided_slice %136 {offsets = [0, 256], sizes = [8, 128], strides = [1, 1]} : vector<8x384xf32> to vector<8x128xf32>
    %155 = arith.mulf %144, %154 : vector<8x128xf32>
    %156 = arith.addf %153, %155 : vector<8x128xf32>
    %157 = math.tanh %156 : vector<8x128xf32>
    %cst_55 = arith.constant 1.000000e+00 : f32
    %158 = vector.broadcast %cst_55 : f32 to vector<8x128xf32>
    %159 = arith.subf %158, %152 : vector<8x128xf32>
    %160 = arith.mulf %159, %157 : vector<8x128xf32>
    %161 = arith.mulf %152, %123 : vector<8x128xf32>
    %162 = arith.addf %160, %161 : vector<8x128xf32>
    %163 = arith.index_cast %c3_i32 : i32 to index
    %c0_56 = arith.constant 0 : index
    %c0_57 = arith.constant 0 : index
    %164 = vector.load %arg12[%163, %c0_56, %c0_57] : memref<8x8x128xf32, #tpu.memory_space<vmem>>, vector<1x8x128xf32>
    %165 = vector.shape_cast %164 : vector<1x8x128xf32> to vector<8x128xf32>
    %166 = vector.shape_cast %162 : vector<8x128xf32> to vector<1x8x128xf32>
    tpu.vector_store %arg12[%163, %c0_56, %c0_57], %166 {strides = array<i32>} : memref<8x8x128xf32, #tpu.memory_space<vmem>>, vector<1x8x128xf32>,
    %c4_i32 = arith.constant 4 : i32
    %167 = arith.index_cast %c4_i32 : i32 to index
    %c0_58 = arith.constant 0 : index
    %c0_59 = arith.constant 0 : index
    %168 = vector.load %arg11[%167, %c0_58, %c0_59] : memref<8x8x384xf32, #tpu.memory_space<vmem>>, vector<1x8x384xf32>
    %169 = vector.shape_cast %168 : vector<1x8x384xf32> to vector<8x384xf32>
    %170 = arith.truncf %162 : vector<8x128xf32> to vector<8x128xbf16>
    %c0_60 = arith.constant 0 : index
    %c0_61 = arith.constant 0 : index
    %171 = vector.load %arg3[%c0_60, %c0_61] : memref<128x384xbf16, #tpu.memory_space<vmem>>, vector<128x384xbf16>
    %cst_62 = arith.constant dense<0.000000e+00> : vector<8x384xf32>
    %172 = tpu.matmul %170, %171, %cst_62 {dimension_numbers = #tpu.dot_dimension_numbers<[1], [0], [0], [1], [0, 0, 1, 1], [], []>} : vector<8x128xbf16>, vector<128x384xbf16>, vector<8x384xf32> -> vector<8x384xf32>
    %c0_63 = arith.constant 0 : index
    %c0_64 = arith.constant 0 : index
    %173 = vector.load %arg5[%c0_63, %c0_64] : memref<1x384xf32, #tpu.memory_space<vmem>>, vector<1x384xf32>
    %174 = vector.broadcast %173 : vector<1x384xf32> to vector<8x384xf32>
    %175 = arith.addf %172, %174 : vector<8x384xf32>
    %176 = vector.extract_strided_slice %169 {offsets = [0, 0], sizes = [8, 128], strides = [1, 1]} : vector<8x384xf32> to vector<8x128xf32>
    %177 = vector.extract_strided_slice %175 {offsets = [0, 0], sizes = [8, 128], strides = [1, 1]} : vector<8x384xf32> to vector<8x128xf32>
    %178 = arith.addf %176, %177 : vector<8x128xf32>
    %179 = arith.negf %178 : vector<8x128xf32>
    %180 = math.exp %179 : vector<8x128xf32>
    %cst_65 = arith.constant 1.000000e+00 : f32
    %181 = vector.broadcast %cst_65 : f32 to vector<8x128xf32>
    %182 = arith.addf %181, %180 : vector<8x128xf32>
    %183 = arith.divf %181, %182 : vector<8x128xf32>
    %184 = vector.extract_strided_slice %169 {offsets = [0, 128], sizes = [8, 128], strides = [1, 1]} : vector<8x384xf32> to vector<8x128xf32>
    %185 = vector.extract_strided_slice %175 {offsets = [0, 128], sizes = [8, 128], strides = [1, 1]} : vector<8x384xf32> to vector<8x128xf32>
    %186 = arith.addf %184, %185 : vector<8x128xf32>
    %187 = arith.negf %186 : vector<8x128xf32>
    %188 = math.exp %187 : vector<8x128xf32>
    %cst_66 = arith.constant 1.000000e+00 : f32
    %189 = vector.broadcast %cst_66 : f32 to vector<8x128xf32>
    %190 = arith.addf %189, %188 : vector<8x128xf32>
    %191 = arith.divf %189, %190 : vector<8x128xf32>
    %192 = vector.extract_strided_slice %169 {offsets = [0, 256], sizes = [8, 128], strides = [1, 1]} : vector<8x384xf32> to vector<8x128xf32>
    %193 = vector.extract_strided_slice %175 {offsets = [0, 256], sizes = [8, 128], strides = [1, 1]} : vector<8x384xf32> to vector<8x128xf32>
    %194 = arith.mulf %183, %193 : vector<8x128xf32>
    %195 = arith.addf %192, %194 : vector<8x128xf32>
    %196 = math.tanh %195 : vector<8x128xf32>
    %cst_67 = arith.constant 1.000000e+00 : f32
    %197 = vector.broadcast %cst_67 : f32 to vector<8x128xf32>
    %198 = arith.subf %197, %191 : vector<8x128xf32>
    %199 = arith.mulf %198, %196 : vector<8x128xf32>
    %200 = arith.mulf %191, %162 : vector<8x128xf32>
    %201 = arith.addf %199, %200 : vector<8x128xf32>
    %202 = arith.index_cast %c4_i32 : i32 to index
    %c0_68 = arith.constant 0 : index
    %c0_69 = arith.constant 0 : index
    %203 = vector.load %arg12[%202, %c0_68, %c0_69] : memref<8x8x128xf32, #tpu.memory_space<vmem>>, vector<1x8x128xf32>
    %204 = vector.shape_cast %203 : vector<1x8x128xf32> to vector<8x128xf32>
    %205 = vector.shape_cast %201 : vector<8x128xf32> to vector<1x8x128xf32>
    tpu.vector_store %arg12[%202, %c0_68, %c0_69], %205 {strides = array<i32>} : memref<8x8x128xf32, #tpu.memory_space<vmem>>, vector<1x8x128xf32>,
    %c5_i32 = arith.constant 5 : i32
    %206 = arith.index_cast %c5_i32 : i32 to index
    %c0_70 = arith.constant 0 : index
    %c0_71 = arith.constant 0 : index
    %207 = vector.load %arg11[%206, %c0_70, %c0_71] : memref<8x8x384xf32, #tpu.memory_space<vmem>>, vector<1x8x384xf32>
    %208 = vector.shape_cast %207 : vector<1x8x384xf32> to vector<8x384xf32>
    %209 = arith.truncf %201 : vector<8x128xf32> to vector<8x128xbf16>
    %c0_72 = arith.constant 0 : index
    %c0_73 = arith.constant 0 : index
    %210 = vector.load %arg3[%c0_72, %c0_73] : memref<128x384xbf16, #tpu.memory_space<vmem>>, vector<128x384xbf16>
    %cst_74 = arith.constant dense<0.000000e+00> : vector<8x384xf32>
    %211 = tpu.matmul %209, %210, %cst_74 {dimension_numbers = #tpu.dot_dimension_numbers<[1], [0], [0], [1], [0, 0, 1, 1], [], []>} : vector<8x128xbf16>, vector<128x384xbf16>, vector<8x384xf32> -> vector<8x384xf32>
    %c0_75 = arith.constant 0 : index
    %c0_76 = arith.constant 0 : index
    %212 = vector.load %arg5[%c0_75, %c0_76] : memref<1x384xf32, #tpu.memory_space<vmem>>, vector<1x384xf32>
    %213 = vector.broadcast %212 : vector<1x384xf32> to vector<8x384xf32>
    %214 = arith.addf %211, %213 : vector<8x384xf32>
    %215 = vector.extract_strided_slice %208 {offsets = [0, 0], sizes = [8, 128], strides = [1, 1]} : vector<8x384xf32> to vector<8x128xf32>
    %216 = vector.extract_strided_slice %214 {offsets = [0, 0], sizes = [8, 128], strides = [1, 1]} : vector<8x384xf32> to vector<8x128xf32>
    %217 = arith.addf %215, %216 : vector<8x128xf32>
    %218 = arith.negf %217 : vector<8x128xf32>
    %219 = math.exp %218 : vector<8x128xf32>
    %cst_77 = arith.constant 1.000000e+00 : f32
    %220 = vector.broadcast %cst_77 : f32 to vector<8x128xf32>
    %221 = arith.addf %220, %219 : vector<8x128xf32>
    %222 = arith.divf %220, %221 : vector<8x128xf32>
    %223 = vector.extract_strided_slice %208 {offsets = [0, 128], sizes = [8, 128], strides = [1, 1]} : vector<8x384xf32> to vector<8x128xf32>
    %224 = vector.extract_strided_slice %214 {offsets = [0, 128], sizes = [8, 128], strides = [1, 1]} : vector<8x384xf32> to vector<8x128xf32>
    %225 = arith.addf %223, %224 : vector<8x128xf32>
    %226 = arith.negf %225 : vector<8x128xf32>
    %227 = math.exp %226 : vector<8x128xf32>
    %cst_78 = arith.constant 1.000000e+00 : f32
    %228 = vector.broadcast %cst_78 : f32 to vector<8x128xf32>
    %229 = arith.addf %228, %227 : vector<8x128xf32>
    %230 = arith.divf %228, %229 : vector<8x128xf32>
    %231 = vector.extract_strided_slice %208 {offsets = [0, 256], sizes = [8, 128], strides = [1, 1]} : vector<8x384xf32> to vector<8x128xf32>
    %232 = vector.extract_strided_slice %214 {offsets = [0, 256], sizes = [8, 128], strides = [1, 1]} : vector<8x384xf32> to vector<8x128xf32>
    %233 = arith.mulf %222, %232 : vector<8x128xf32>
    %234 = arith.addf %231, %233 : vector<8x128xf32>
    %235 = math.tanh %234 : vector<8x128xf32>
    %cst_79 = arith.constant 1.000000e+00 : f32
    %236 = vector.broadcast %cst_79 : f32 to vector<8x128xf32>
    %237 = arith.subf %236, %230 : vector<8x128xf32>
    %238 = arith.mulf %237, %235 : vector<8x128xf32>
    %239 = arith.mulf %230, %201 : vector<8x128xf32>
    %240 = arith.addf %238, %239 : vector<8x128xf32>
    %241 = arith.index_cast %c5_i32 : i32 to index
    %c0_80 = arith.constant 0 : index
    %c0_81 = arith.constant 0 : index
    %242 = vector.load %arg12[%241, %c0_80, %c0_81] : memref<8x8x128xf32, #tpu.memory_space<vmem>>, vector<1x8x128xf32>
    %243 = vector.shape_cast %242 : vector<1x8x128xf32> to vector<8x128xf32>
    %244 = vector.shape_cast %240 : vector<8x128xf32> to vector<1x8x128xf32>
    tpu.vector_store %arg12[%241, %c0_80, %c0_81], %244 {strides = array<i32>} : memref<8x8x128xf32, #tpu.memory_space<vmem>>, vector<1x8x128xf32>,
    %c6_i32 = arith.constant 6 : i32
    %245 = arith.index_cast %c6_i32 : i32 to index
    %c0_82 = arith.constant 0 : index
    %c0_83 = arith.constant 0 : index
    %246 = vector.load %arg11[%245, %c0_82, %c0_83] : memref<8x8x384xf32, #tpu.memory_space<vmem>>, vector<1x8x384xf32>
    %247 = vector.shape_cast %246 : vector<1x8x384xf32> to vector<8x384xf32>
    %248 = arith.truncf %240 : vector<8x128xf32> to vector<8x128xbf16>
    %c0_84 = arith.constant 0 : index
    %c0_85 = arith.constant 0 : index
    %249 = vector.load %arg3[%c0_84, %c0_85] : memref<128x384xbf16, #tpu.memory_space<vmem>>, vector<128x384xbf16>
    %cst_86 = arith.constant dense<0.000000e+00> : vector<8x384xf32>
    %250 = tpu.matmul %248, %249, %cst_86 {dimension_numbers = #tpu.dot_dimension_numbers<[1], [0], [0], [1], [0, 0, 1, 1], [], []>} : vector<8x128xbf16>, vector<128x384xbf16>, vector<8x384xf32> -> vector<8x384xf32>
    %c0_87 = arith.constant 0 : index
    %c0_88 = arith.constant 0 : index
    %251 = vector.load %arg5[%c0_87, %c0_88] : memref<1x384xf32, #tpu.memory_space<vmem>>, vector<1x384xf32>
    %252 = vector.broadcast %251 : vector<1x384xf32> to vector<8x384xf32>
    %253 = arith.addf %250, %252 : vector<8x384xf32>
    %254 = vector.extract_strided_slice %247 {offsets = [0, 0], sizes = [8, 128], strides = [1, 1]} : vector<8x384xf32> to vector<8x128xf32>
    %255 = vector.extract_strided_slice %253 {offsets = [0, 0], sizes = [8, 128], strides = [1, 1]} : vector<8x384xf32> to vector<8x128xf32>
    %256 = arith.addf %254, %255 : vector<8x128xf32>
    %257 = arith.negf %256 : vector<8x128xf32>
    %258 = math.exp %257 : vector<8x128xf32>
    %cst_89 = arith.constant 1.000000e+00 : f32
    %259 = vector.broadcast %cst_89 : f32 to vector<8x128xf32>
    %260 = arith.addf %259, %258 : vector<8x128xf32>
    %261 = arith.divf %259, %260 : vector<8x128xf32>
    %262 = vector.extract_strided_slice %247 {offsets = [0, 128], sizes = [8, 128], strides = [1, 1]} : vector<8x384xf32> to vector<8x128xf32>
    %263 = vector.extract_strided_slice %253 {offsets = [0, 128], sizes = [8, 128], strides = [1, 1]} : vector<8x384xf32> to vector<8x128xf32>
    %264 = arith.addf %262, %263 : vector<8x128xf32>
    %265 = arith.negf %264 : vector<8x128xf32>
    %266 = math.exp %265 : vector<8x128xf32>
    %cst_90 = arith.constant 1.000000e+00 : f32
    %267 = vector.broadcast %cst_90 : f32 to vector<8x128xf32>
    %268 = arith.addf %267, %266 : vector<8x128xf32>
    %269 = arith.divf %267, %268 : vector<8x128xf32>
    %270 = vector.extract_strided_slice %247 {offsets = [0, 256], sizes = [8, 128], strides = [1, 1]} : vector<8x384xf32> to vector<8x128xf32>
    %271 = vector.extract_strided_slice %253 {offsets = [0, 256], sizes = [8, 128], strides = [1, 1]} : vector<8x384xf32> to vector<8x128xf32>
    %272 = arith.mulf %261, %271 : vector<8x128xf32>
    %273 = arith.addf %270, %272 : vector<8x128xf32>
    %274 = math.tanh %273 : vector<8x128xf32>
    %cst_91 = arith.constant 1.000000e+00 : f32
    %275 = vector.broadcast %cst_91 : f32 to vector<8x128xf32>
    %276 = arith.subf %275, %269 : vector<8x128xf32>
    %277 = arith.mulf %276, %274 : vector<8x128xf32>
    %278 = arith.mulf %269, %240 : vector<8x128xf32>
    %279 = arith.addf %277, %278 : vector<8x128xf32>
    %280 = arith.index_cast %c6_i32 : i32 to index
    %c0_92 = arith.constant 0 : index
    %c0_93 = arith.constant 0 : index
    %281 = vector.load %arg12[%280, %c0_92, %c0_93] : memref<8x8x128xf32, #tpu.memory_space<vmem>>, vector<1x8x128xf32>
    %282 = vector.shape_cast %281 : vector<1x8x128xf32> to vector<8x128xf32>
    %283 = vector.shape_cast %279 : vector<8x128xf32> to vector<1x8x128xf32>
    tpu.vector_store %arg12[%280, %c0_92, %c0_93], %283 {strides = array<i32>} : memref<8x8x128xf32, #tpu.memory_space<vmem>>, vector<1x8x128xf32>,
    %c7_i32 = arith.constant 7 : i32
    %284 = arith.index_cast %c7_i32 : i32 to index
    %c0_94 = arith.constant 0 : index
    %c0_95 = arith.constant 0 : index
    %285 = vector.load %arg11[%284, %c0_94, %c0_95] : memref<8x8x384xf32, #tpu.memory_space<vmem>>, vector<1x8x384xf32>
    %286 = vector.shape_cast %285 : vector<1x8x384xf32> to vector<8x384xf32>
    %287 = arith.truncf %279 : vector<8x128xf32> to vector<8x128xbf16>
    %c0_96 = arith.constant 0 : index
    %c0_97 = arith.constant 0 : index
    %288 = vector.load %arg3[%c0_96, %c0_97] : memref<128x384xbf16, #tpu.memory_space<vmem>>, vector<128x384xbf16>
    %cst_98 = arith.constant dense<0.000000e+00> : vector<8x384xf32>
    %289 = tpu.matmul %287, %288, %cst_98 {dimension_numbers = #tpu.dot_dimension_numbers<[1], [0], [0], [1], [0, 0, 1, 1], [], []>} : vector<8x128xbf16>, vector<128x384xbf16>, vector<8x384xf32> -> vector<8x384xf32>
    %c0_99 = arith.constant 0 : index
    %c0_100 = arith.constant 0 : index
    %290 = vector.load %arg5[%c0_99, %c0_100] : memref<1x384xf32, #tpu.memory_space<vmem>>, vector<1x384xf32>
    %291 = vector.broadcast %290 : vector<1x384xf32> to vector<8x384xf32>
    %292 = arith.addf %289, %291 : vector<8x384xf32>
    %293 = vector.extract_strided_slice %286 {offsets = [0, 0], sizes = [8, 128], strides = [1, 1]} : vector<8x384xf32> to vector<8x128xf32>
    %294 = vector.extract_strided_slice %292 {offsets = [0, 0], sizes = [8, 128], strides = [1, 1]} : vector<8x384xf32> to vector<8x128xf32>
    %295 = arith.addf %293, %294 : vector<8x128xf32>
    %296 = arith.negf %295 : vector<8x128xf32>
    %297 = math.exp %296 : vector<8x128xf32>
    %cst_101 = arith.constant 1.000000e+00 : f32
    %298 = vector.broadcast %cst_101 : f32 to vector<8x128xf32>
    %299 = arith.addf %298, %297 : vector<8x128xf32>
    %300 = arith.divf %298, %299 : vector<8x128xf32>
    %301 = vector.extract_strided_slice %286 {offsets = [0, 128], sizes = [8, 128], strides = [1, 1]} : vector<8x384xf32> to vector<8x128xf32>
    %302 = vector.extract_strided_slice %292 {offsets = [0, 128], sizes = [8, 128], strides = [1, 1]} : vector<8x384xf32> to vector<8x128xf32>
    %303 = arith.addf %301, %302 : vector<8x128xf32>
    %304 = arith.negf %303 : vector<8x128xf32>
    %305 = math.exp %304 : vector<8x128xf32>
    %cst_102 = arith.constant 1.000000e+00 : f32
    %306 = vector.broadcast %cst_102 : f32 to vector<8x128xf32>
    %307 = arith.addf %306, %305 : vector<8x128xf32>
    %308 = arith.divf %306, %307 : vector<8x128xf32>
    %309 = vector.extract_strided_slice %286 {offsets = [0, 256], sizes = [8, 128], strides = [1, 1]} : vector<8x384xf32> to vector<8x128xf32>
    %310 = vector.extract_strided_slice %292 {offsets = [0, 256], sizes = [8, 128], strides = [1, 1]} : vector<8x384xf32> to vector<8x128xf32>
    %311 = arith.mulf %300, %310 : vector<8x128xf32>
    %312 = arith.addf %309, %311 : vector<8x128xf32>
    %313 = math.tanh %312 : vector<8x128xf32>
    %cst_103 = arith.constant 1.000000e+00 : f32
    %314 = vector.broadcast %cst_103 : f32 to vector<8x128xf32>
    %315 = arith.subf %314, %308 : vector<8x128xf32>
    %316 = arith.mulf %315, %313 : vector<8x128xf32>
    %317 = arith.mulf %308, %279 : vector<8x128xf32>
    %318 = arith.addf %316, %317 : vector<8x128xf32>
    %319 = arith.index_cast %c7_i32 : i32 to index
    %c0_104 = arith.constant 0 : index
    %c0_105 = arith.constant 0 : index
    %320 = vector.load %arg12[%319, %c0_104, %c0_105] : memref<8x8x128xf32, #tpu.memory_space<vmem>>, vector<1x8x128xf32>
    %321 = vector.shape_cast %320 : vector<1x8x128xf32> to vector<8x128xf32>
    %322 = vector.shape_cast %318 : vector<8x128xf32> to vector<1x8x128xf32>
    tpu.vector_store %arg12[%319, %c0_104, %c0_105], %322 {strides = array<i32>} : memref<8x8x128xf32, #tpu.memory_space<vmem>>, vector<1x8x128xf32>,
    %c8_i32 = arith.constant 8 : i32
    %c0_106 = arith.constant 0 : index
    %c0_107 = arith.constant 0 : index
    %c0_108 = arith.constant 0 : index
    %323 = vector.load %arg12[%c0_106, %c0_107, %c0_108] : memref<8x8x128xf32, #tpu.memory_space<vmem>>, vector<8x8x128xf32>
    %324 = vector.shape_cast %323 : vector<8x8x128xf32> to vector<64x128xf32>
    %325 = arith.truncf %324 : vector<64x128xf32> to vector<64x128xbf16>
    %c0_109 = arith.constant 0 : index
    %c0_110 = arith.constant 0 : index
    %326 = vector.load %arg8[%c0_109, %c0_110] : memref<128x256xbf16, #tpu.memory_space<vmem>>, vector<128x256xbf16>
    %cst_111 = arith.constant dense<0.000000e+00> : vector<64x256xf32>
    %327 = tpu.matmul %325, %326, %cst_111 {dimension_numbers = #tpu.dot_dimension_numbers<[1], [0], [0], [1], [0, 0, 1, 1], [], []>} : vector<64x128xbf16>, vector<128x256xbf16>, vector<64x256xf32> -> vector<64x256xf32>
    %328 = vector.extract_strided_slice %327 {offsets = [0, 0], sizes = [64, 128], strides = [1, 1]} : vector<64x256xf32> to vector<64x128xf32>
    %c0_112 = arith.constant 0 : index
    %c0_113 = arith.constant 0 : index
    %329 = vector.load %arg6[%c0_112, %c0_113] : memref<1x128xf32, #tpu.memory_space<vmem>>, vector<1x128xf32>
    %330 = vector.broadcast %329 : vector<1x128xf32> to vector<64x128xf32>
    %331 = arith.addf %328, %330 : vector<64x128xf32>
    %332 = math.tanh %331 : vector<64x128xf32>
    %c0_114 = arith.constant 0 : index
    %c0_115 = arith.constant 0 : index
    %333 = vector.load %arg7[%c0_114, %c0_115] : memref<1x128xf32, #tpu.memory_space<vmem>>, vector<1x128xf32>
    %334 = vector.broadcast %333 : vector<1x128xf32> to vector<64x128xf32>
    %335 = arith.mulf %332, %334 : vector<64x128xf32>
    %cst_116 = arith.constant dense<0.000000e+00> : vector<64xf32>
    %336 = vector.multi_reduction <add>, %335, %cst_116 [1] : vector<64x128xf32> to vector<64xf32>
    %337 = vector.shape_cast %336 : vector<64xf32> to vector<64x1xf32>
    %338 = vector.shape_cast %337 : vector<64x1xf32> to vector<8x8x1xf32>
    %339 = vector.extract_strided_slice %338 {offsets = [0, 0, 0], sizes = [1, 8, 1], strides = [1, 1, 1]} : vector<8x8x1xf32> to vector<1x8x1xf32>
    %340 = vector.shape_cast %339 : vector<1x8x1xf32> to vector<8x1xf32>
    %341 = vector.extract_strided_slice %338 {offsets = [1, 0, 0], sizes = [1, 8, 1], strides = [1, 1, 1]} : vector<8x8x1xf32> to vector<1x8x1xf32>
    %342 = vector.shape_cast %341 : vector<1x8x1xf32> to vector<8x1xf32>
    %343 = arith.maximumf %340, %342 : vector<8x1xf32>
    %344 = vector.extract_strided_slice %338 {offsets = [2, 0, 0], sizes = [1, 8, 1], strides = [1, 1, 1]} : vector<8x8x1xf32> to vector<1x8x1xf32>
    %345 = vector.shape_cast %344 : vector<1x8x1xf32> to vector<8x1xf32>
    %346 = arith.maximumf %343, %345 : vector<8x1xf32>
    %347 = vector.extract_strided_slice %338 {offsets = [3, 0, 0], sizes = [1, 8, 1], strides = [1, 1, 1]} : vector<8x8x1xf32> to vector<1x8x1xf32>
    %348 = vector.shape_cast %347 : vector<1x8x1xf32> to vector<8x1xf32>
    %349 = arith.maximumf %346, %348 : vector<8x1xf32>
    %350 = vector.extract_strided_slice %338 {offsets = [4, 0, 0], sizes = [1, 8, 1], strides = [1, 1, 1]} : vector<8x8x1xf32> to vector<1x8x1xf32>
    %351 = vector.shape_cast %350 : vector<1x8x1xf32> to vector<8x1xf32>
    %352 = arith.maximumf %349, %351 : vector<8x1xf32>
    %353 = vector.extract_strided_slice %338 {offsets = [5, 0, 0], sizes = [1, 8, 1], strides = [1, 1, 1]} : vector<8x8x1xf32> to vector<1x8x1xf32>
    %354 = vector.shape_cast %353 : vector<1x8x1xf32> to vector<8x1xf32>
    %355 = arith.maximumf %352, %354 : vector<8x1xf32>
    %356 = vector.extract_strided_slice %338 {offsets = [6, 0, 0], sizes = [1, 8, 1], strides = [1, 1, 1]} : vector<8x8x1xf32> to vector<1x8x1xf32>
    %357 = vector.shape_cast %356 : vector<1x8x1xf32> to vector<8x1xf32>
    %358 = arith.maximumf %355, %357 : vector<8x1xf32>
    %359 = vector.extract_strided_slice %338 {offsets = [7, 0, 0], sizes = [1, 8, 1], strides = [1, 1, 1]} : vector<8x8x1xf32> to vector<1x8x1xf32>
    %360 = vector.shape_cast %359 : vector<1x8x1xf32> to vector<8x1xf32>
    %361 = arith.maximumf %358, %360 : vector<8x1xf32>
    %362 = vector.shape_cast %361 : vector<8x1xf32> to vector<1x8x1xf32>
    %363 = vector.broadcast %362 : vector<1x8x1xf32> to vector<8x8x1xf32>
    %364 = arith.subf %338, %363 : vector<8x8x1xf32>
    %365 = math.exp %364 : vector<8x8x1xf32>
    %366 = vector.extract_strided_slice %365 {offsets = [0, 0, 0], sizes = [1, 8, 1], strides = [1, 1, 1]} : vector<8x8x1xf32> to vector<1x8x1xf32>
    %367 = vector.shape_cast %366 : vector<1x8x1xf32> to vector<8x1xf32>
    %368 = vector.extract_strided_slice %365 {offsets = [1, 0, 0], sizes = [1, 8, 1], strides = [1, 1, 1]} : vector<8x8x1xf32> to vector<1x8x1xf32>
    %369 = vector.shape_cast %368 : vector<1x8x1xf32> to vector<8x1xf32>
    %370 = arith.addf %367, %369 : vector<8x1xf32>
    %371 = vector.extract_strided_slice %365 {offsets = [2, 0, 0], sizes = [1, 8, 1], strides = [1, 1, 1]} : vector<8x8x1xf32> to vector<1x8x1xf32>
    %372 = vector.shape_cast %371 : vector<1x8x1xf32> to vector<8x1xf32>
    %373 = arith.addf %370, %372 : vector<8x1xf32>
    %374 = vector.extract_strided_slice %365 {offsets = [3, 0, 0], sizes = [1, 8, 1], strides = [1, 1, 1]} : vector<8x8x1xf32> to vector<1x8x1xf32>
    %375 = vector.shape_cast %374 : vector<1x8x1xf32> to vector<8x1xf32>
    %376 = arith.addf %373, %375 : vector<8x1xf32>
    %377 = vector.extract_strided_slice %365 {offsets = [4, 0, 0], sizes = [1, 8, 1], strides = [1, 1, 1]} : vector<8x8x1xf32> to vector<1x8x1xf32>
    %378 = vector.shape_cast %377 : vector<1x8x1xf32> to vector<8x1xf32>
    %379 = arith.addf %376, %378 : vector<8x1xf32>
    %380 = vector.extract_strided_slice %365 {offsets = [5, 0, 0], sizes = [1, 8, 1], strides = [1, 1, 1]} : vector<8x8x1xf32> to vector<1x8x1xf32>
    %381 = vector.shape_cast %380 : vector<1x8x1xf32> to vector<8x1xf32>
    %382 = arith.addf %379, %381 : vector<8x1xf32>
    %383 = vector.extract_strided_slice %365 {offsets = [6, 0, 0], sizes = [1, 8, 1], strides = [1, 1, 1]} : vector<8x8x1xf32> to vector<1x8x1xf32>
    %384 = vector.shape_cast %383 : vector<1x8x1xf32> to vector<8x1xf32>
    %385 = arith.addf %382, %384 : vector<8x1xf32>
    %386 = vector.extract_strided_slice %365 {offsets = [7, 0, 0], sizes = [1, 8, 1], strides = [1, 1, 1]} : vector<8x8x1xf32> to vector<1x8x1xf32>
    %387 = vector.shape_cast %386 : vector<1x8x1xf32> to vector<8x1xf32>
    %388 = arith.addf %385, %387 : vector<8x1xf32>
    %389 = vector.shape_cast %388 : vector<8x1xf32> to vector<1x8x1xf32>
    %390 = vector.broadcast %389 : vector<1x8x1xf32> to vector<8x8x1xf32>
    %391 = arith.divf %365, %390 : vector<8x8x1xf32>
    %392 = vector.shape_cast %391 : vector<8x8x1xf32> to vector<64x1xf32>
    %393 = vector.extract_strided_slice %327 {offsets = [0, 128], sizes = [64, 128], strides = [1, 1]} : vector<64x256xf32> to vector<64x128xf32>
    %394 = vector.broadcast %392 : vector<64x1xf32> to vector<64x128xf32>
    %395 = arith.mulf %393, %394 : vector<64x128xf32>
    %c0_117 = arith.constant 0 : index
    %c0_118 = arith.constant 0 : index
    %396 = vector.load %arg9[%c0_117, %c0_118] : memref<1x128xf32, #tpu.memory_space<vmem>>, vector<1x128xf32>
    %397 = vector.broadcast %396 : vector<1x128xf32> to vector<64x128xf32>
    %398 = arith.addf %395, %397 : vector<64x128xf32>
    %399 = vector.shape_cast %398 : vector<64x128xf32> to vector<8x8x128xf32>
    %c0_119 = arith.constant 0 : index
    %c0_120 = arith.constant 0 : index
    %c0_121 = arith.constant 0 : index
    %400 = vector.load %arg10[%c0_119, %c0_120, %c0_121] : memref<8x8x128xf32, #tpu.memory_space<vmem>>, vector<8x8x128xf32>
    tpu.vector_store %arg10[%c0_119, %c0_120, %c0_121], %399 {strides = array<i32>} : memref<8x8x128xf32, #tpu.memory_space<vmem>>, vector<8x8x128xf32>,
    return
  }
  func.func @transform_0(%arg0: i32) -> (i32, i32, i32) {
    %c0_i32 = arith.constant 0 : i32
    %c0_i32_0 = arith.constant 0 : i32
    %c0_i32_1 = arith.constant 0 : i32
    return %c0_i32, %arg0, %c0_i32_0 : i32, i32, i32
  }
  func.func @transform_1(%arg0: i32) -> (i32, i32) {
    %c0_i32 = arith.constant 0 : i32
    %c0_i32_0 = arith.constant 0 : i32
    %c0_i32_1 = arith.constant 0 : i32
    return %c0_i32, %c0_i32_0 : i32, i32
  }
  func.func @transform_2(%arg0: i32) -> (i32, i32) {
    %c0_i32 = arith.constant 0 : i32
    %c0_i32_0 = arith.constant 0 : i32
    %c0_i32_1 = arith.constant 0 : i32
    return %c0_i32, %c0_i32_0 : i32, i32
  }
  func.func @transform_3(%arg0: i32) -> (i32, i32) {
    %c0_i32 = arith.constant 0 : i32
    %c0_i32_0 = arith.constant 0 : i32
    %c0_i32_1 = arith.constant 0 : i32
    return %c0_i32, %c0_i32_0 : i32, i32
  }
  func.func @transform_4(%arg0: i32) -> (i32, i32) {
    %c0_i32 = arith.constant 0 : i32
    %c0_i32_0 = arith.constant 0 : i32
    %c0_i32_1 = arith.constant 0 : i32
    return %c0_i32, %c0_i32_0 : i32, i32
  }
  func.func @transform_5(%arg0: i32) -> (i32, i32) {
    %c0_i32 = arith.constant 0 : i32
    %c0_i32_0 = arith.constant 0 : i32
    %c0_i32_1 = arith.constant 0 : i32
    return %c0_i32, %c0_i32_0 : i32, i32
  }
  func.func @transform_6(%arg0: i32) -> (i32, i32) {
    %c0_i32 = arith.constant 0 : i32
    %c0_i32_0 = arith.constant 0 : i32
    %c0_i32_1 = arith.constant 0 : i32
    return %c0_i32, %c0_i32_0 : i32, i32
  }
  func.func @transform_7(%arg0: i32) -> (i32, i32) {
    %c0_i32 = arith.constant 0 : i32
    %c0_i32_0 = arith.constant 0 : i32
    %c0_i32_1 = arith.constant 0 : i32
    return %c0_i32, %c0_i32_0 : i32, i32
  }
  func.func @transform_8(%arg0: i32) -> (i32, i32) {
    %c0_i32 = arith.constant 0 : i32
    %c0_i32_0 = arith.constant 0 : i32
    %c0_i32_1 = arith.constant 0 : i32
    return %c0_i32, %c0_i32_0 : i32, i32
  }
  func.func @transform_9(%arg0: i32) -> (i32, i32, i32) {
    %c0_i32 = arith.constant 0 : i32
    %c0_i32_0 = arith.constant 0 : i32
    %c0_i32_1 = arith.constant 0 : i32
    return %c0_i32, %arg0, %c0_i32_0 : i32, i32, i32
  }
}

</mosaic_0001>

<llo_original>
// kernel: arnn_forward.1
$region0: #{arnn_forward.1}
  #allocation0 [shape = 'u32[]', space=smem, size = 0x4, offset = 0x4, fixed_abs, tag = 'smem constant byte address 0x4 - core index']
  #allocation1 [shape = 'u32[144,128]{1,0:T(1,128)}', space=vmem, size = 0x12000, scoped, tag = 'internal scratch']
  #allocation2 [shape = 'f32[8,8,384]{2,1,0:T(8,128)}', space=vmem, size = 0x18000, scoped, tag = 'scratch operand']
  #allocation3 [shape = 'f32[8,8,128]{2,1,0:T(8,128)}', space=vmem, size = 0x8000, scoped, tag = 'scratch operand']
  %s0 = inlined_call_operand.vmem [shape: f32[8,8,16], index: 0, kind: input, shape index: {}]
  %s1 = inlined_call_operand.vmem [shape: bf16[16,384], index: 1, kind: input, shape index: {}]
  %s2 = inlined_call_operand.vmem [shape: bf16[128,384], index: 2, kind: input, shape index: {}]
  %s3 = inlined_call_operand.vmem [shape: f32[1,384], index: 3, kind: input, shape index: {}]
  %s4 = inlined_call_operand.vmem [shape: f32[1,384], index: 4, kind: input, shape index: {}]
  %s5 = inlined_call_operand.vmem [shape: f32[1,128], index: 5, kind: input, shape index: {}]
  %s6 = inlined_call_operand.vmem [shape: f32[1,128], index: 6, kind: input, shape index: {}]
  %s7 = inlined_call_operand.vmem [shape: bf16[128,256], index: 7, kind: input, shape index: {}]
  %s8 = inlined_call_operand.vmem [shape: f32[1,128], index: 8, kind: input, shape index: {}]
  %s9 = inlined_call_operand.vmem [shape: f32[8,8,128], index: 9, kind: output, shape index: {}]
  %s10 = sld [smem:[#allocation0]]
  $region46: #{arnn_forward.1} parent=0
    _
  %s12 = ssub.s32 1, %s10
  %s13 = scalar_select 0, %s12, %s10
  // Predicated region
  $region2: #{arnn_forward.1} parent=0 // pred_check
    _
  $region3: #{arnn_forward.1} parent=0 // pred_check_branch
    %15 = sbr.rel (0) target = $region5
  $region4: #{arnn_forward.1} parent=0 // pred_region
    _
  $region5: #{arnn_forward.1} parent=0 // pred_fallthru
    _
  // Predicated region
  $region6: #{arnn_forward.1} parent=0 // pred_check
    _
  $region7: #{arnn_forward.1} parent=0 // pred_check_branch
    %17 = sbr.rel (0) target = $region9
  $region8: #{arnn_forward.1} parent=0 // pred_region
    _
  $region9: #{arnn_forward.1} parent=0 // pred_fallthru
    _
  // Predicated region
  $region10: #{arnn_forward.1} parent=0 // pred_check
    _
  $region11: #{arnn_forward.1} parent=0 // pred_check_branch
    %19 = sbr.rel (0) target = $region13
  $region12: #{arnn_forward.1} parent=0 // pred_region
    _
  $region13: #{arnn_forward.1} parent=0 // pred_fallthru
    _
  // Predicated region
  $region14: #{arnn_forward.1} parent=0 // pred_check
    _
  $region15: #{arnn_forward.1} parent=0 // pred_check_branch
    %21 = sbr.rel (0) target = $region17
  $region16: #{arnn_forward.1} parent=0 // pred_region
    _
  $region17: #{arnn_forward.1} parent=0 // pred_fallthru
    _
  // Predicated region
  $region18: #{arnn_forward.1} parent=0 // pred_check
    _
  $region19: #{arnn_forward.1} parent=0 // pred_check_branch
    %23 = sbr.rel (0) target = $region21
  $region20: #{arnn_forward.1} parent=0 // pred_region
    _
  $region21: #{arnn_forward.1} parent=0 // pred_fallthru
    _
  // Predicated region
  $region22: #{arnn_forward.1} parent=0 // pred_check
    _
  $region23: #{arnn_forward.1} parent=0 // pred_check_branch
    %25 = sbr.rel (0) target = $region25
  $region24: #{arnn_forward.1} parent=0 // pred_region
    _
  $region25: #{arnn_forward.1} parent=0 // pred_fallthru
    _
  // Predicated region
  $region26: #{arnn_forward.1} parent=0 // pred_check
    _
  $region27: #{arnn_forward.1} parent=0 // pred_check_branch
    %27 = sbr.rel (0) target = $region29
  $region28: #{arnn_forward.1} parent=0 // pred_region
    _
  $region29: #{arnn_forward.1} parent=0 // pred_fallthru
    _
  // Predicated region
  $region30: #{arnn_forward.1} parent=0 // pred_check
    _
  $region31: #{arnn_forward.1} parent=0 // pred_check_branch
    %29 = sbr.rel (0) target = $region33
  $region32: #{arnn_forward.1} parent=0 // pred_region
    _
  $region33: #{arnn_forward.1} parent=0 // pred_fallthru
    _
  // Predicated region
  $region34: #{arnn_forward.1} parent=0 // pred_check
    _
  $region35: #{arnn_forward.1} parent=0 // pred_check_branch
    %31 = sbr.rel (0) target = $region37
  $region36: #{arnn_forward.1} parent=0 // pred_region
    _
  $region37: #{arnn_forward.1} parent=0 // pred_fallthru
    _
  %v33 = vld [vmem:[%s0] sm:$0xff]
  %v34 = vld [vmem:[%s0 + $0x8] sm:$0xff]
  %v35 = vld [vmem:[%s0 + $0x10] sm:$0xff]
  %v36 = vld [vmem:[%s0 + $0x18] sm:$0xff]
  %v37 = vld [vmem:[%s0 + $0x20] sm:$0xff]
  %v38 = vld [vmem:[%s0 + $0x28] sm:$0xff]
  %v39 = vld [vmem:[%s0 + $0x30] sm:$0xff]
  %v40 = vld [vmem:[%s0 + $0x38] sm:$0xff]
  %v41 = vpack.c.bf16 %v34, %v33
  %v42 = vpack.c.bf16 %v36, %v35
  %v43 = vpack.c.bf16 %v38, %v37
  %v44 = vpack.c.bf16 %v40, %v39
  %v45 = vld [vmem:[%s1] sm:$0xff]
  %v46 = vld [vmem:[%s1 + $0x8] sm:$0xf]
  %v47 = vld [vmem:[%s1 + $0xc] sm:$0xff]
  %v48 = vld [vmem:[%s1 + $0x14] sm:$0xf]
  %v49 = vld [vmem:[%s3] sm:$0x7]
  %v51 = vlaneseq
  %v52 = vshrl.u32 %v51, 7
  %v53 = vsub.s32 0, %v52
  %v54 = vrot.slane %v49, %v53
  %v55 = vlaneseq
  %v56 = vshrl.u32 %v55, 7
  %v57 = vsub.s32 1, %v56
  %v58 = vrot.slane %v49, %v57
  %v59 = vlaneseq
  %v60 = vshrl.u32 %v59, 7
  %v61 = vsub.s32 2, %v60
  %v62 = vrot.slane %v49, %v61
  %v70 = vunpack.c.l.b16 %v45
  %v71 = vunpack.c.h.b16 %v45
  %v72 = vunpack.c.l.b16 %v46
  %v73 = vunpack.c.l.b16 %v47
  %v74 = vunpack.c.h.b16 %v47
  %v75 = vunpack.c.l.b16 %v48
  %v76 = vpack.c.b16 %v73, %v70
  %v77 = vpack.c.b16 %v74, %v71
  %v78 = vpack.c.b16 %v75, %v72
  %vm82 = vcmask 130048
  %v84 = vsel %vm82, %v41, 0
  %v87 = vsel %vm82, %v42, 0
  %v90 = vsel %vm82, %v43, 0
  %v93 = vsel %vm82, %v44, 0
  %95 = vmatprep.subr.bf16.mxu0 %v77
  %96 = vmatpush1.bf16.msra.mxu0 %v76
  %97 = vmatprep.subr.bf16.mxu0 0
  %98 = vmatpush1.bf16.msra.mxu0 0
  %99 = vmatprep.subr.bf16.mxu0 0
  %100 = vmatpush1.bf16.msra.mxu0 0
  %101 = vmatprep.subr.bf16.mxu0 0
  %102 = vmatpush1.bf16.msra.mxu0 0
  %103 = vmatprep.subr.bf16.mxu0 0
  %104 = vmatpush1.bf16.msra.mxu0 0
  %105 = vmatprep.subr.bf16.mxu0 0
  %106 = vmatpush1.bf16.msra.mxu0 0
  %107 = vmatprep.subr.bf16.mxu0 0
  %108 = vmatpush1.bf16.msra.mxu0 0
  %109 = vmatprep.subr.bf16.mxu0 0
  %110 = vmatpush1.bf16.msra.mxu0 0
  %111 = vmatprep.subr.bf16.mxu0 0
  %112 = vmatpush1.bf16.msra.mxu0 0
  %113 = vmatprep.subr.bf16.mxu0 0
  %114 = vmatpush1.bf16.msra.mxu0 0
  %115 = vmatprep.subr.bf16.mxu0 0
  %116 = vmatpush1.bf16.msra.mxu0 0
  %117 = vmatprep.subr.bf16.mxu0 0
  %118 = vmatpush1.bf16.msra.mxu0 0
  %119 = vmatprep.subr.bf16.mxu0 0
  %120 = vmatpush1.bf16.msra.mxu0 0
  %121 = vmatprep.subr.bf16.mxu0 0
  %122 = vmatpush1.bf16.msra.mxu0 0
  %123 = vmatprep.subr.bf16.mxu0 0
  %124 = vmatpush1.bf16.msra.mxu0 0
  %125 = vmatprep.subr.bf16.mxu0 0
  %126 = vmatpush1.bf16.msra.mxu0 0
  %127 = vmatprep.mubr.bf16.mxu0 0
  %128 = vmatmul.mubr.bf16.gmra.mrb[0].mxu0 %v84
  %v129 = vpop.f32.mrb[0].mxu0
  %v130 = vadd.f32 %v54, %v129
  %v131 = vpop.f32.mrb[0].mxu0
  %v132 = vadd.f32 %v58, %v131
  %v133 = vpop.f32.mrb[0].mxu0
  %v134 = vadd.f32 %v54, %v133
  %v135 = vpop.f32.mrb[0].mxu0
  %v136 = vadd.f32 %v58, %v135
  %137 = vmatprep.mubr.bf16.mxu0 0
  %138 = vmatmul.mubr.bf16.gmra.mrb[0].mxu0 %v87
  %v139 = vpop.f32.mrb[0].mxu0
  %v140 = vadd.f32 %v54, %v139
  %v141 = vpop.f32.mrb[0].mxu0
  %v142 = vadd.f32 %v58, %v141
  %v143 = vpop.f32.mrb[0].mxu0
  %v144 = vadd.f32 %v54, %v143
  %v145 = vpop.f32.mrb[0].mxu0
  %v146 = vadd.f32 %v58, %v145
  %147 = vmatprep.mubr.bf16.mxu0 0
  %148 = vmatmul.mubr.bf16.gmra.mrb[0].mxu0 %v90
  %v149 = vpop.f32.mrb[0].mxu0
  %v150 = vadd.f32 %v54, %v149
  %v151 = vpop.f32.mrb[0].mxu0
  %v152 = vadd.f32 %v58, %v151
  %v153 = vpop.f32.mrb[0].mxu0
  %v154 = vadd.f32 %v54, %v153
  %v155 = vpop.f32.mrb[0].mxu0
  %v156 = vadd.f32 %v58, %v155
  %157 = vmatprep.mubr.bf16.mxu0 0
  %158 = vmatmul.mubr.bf16.gmra.mrb[0].mxu0 %v93
  %v159 = vpop.f32.mrb[0].mxu0
  %v160 = vadd.f32 %v54, %v159
  %v161 = vpop.f32.mrb[0].mxu0
  %v162 = vadd.f32 %v58, %v161
  %v163 = vpop.f32.mrb[0].mxu0
  %v164 = vadd.f32 %v54, %v163
  %v165 = vpop.f32.mrb[0].mxu0
  %v166 = vadd.f32 %v58, %v165
  %167 = vdwg.mxu0
  %168 = vmatprep.subr.bf16.mxu0 0
  %169 = vmatpush1.bf16.msra.mxu0 %v78
  %170 = vmatprep.subr.bf16.mxu0 0
  %171 = vmatpush1.bf16.msra.mxu0 0
  %172 = vmatprep.subr.bf16.mxu0 0
  %173 = vmatpush1.bf16.msra.mxu0 0
  %174 = vmatprep.subr.bf16.mxu0 0
  %175 = vmatpush1.bf16.msra.mxu0 0
  %176 = vmatprep.subr.bf16.mxu0 0
  %177 = vmatpush1.bf16.msra.mxu0 0
  %178 = vmatprep.subr.bf16.mxu0 0
  %179 = vmatpush1.bf16.msra.mxu0 0
  %180 = vmatprep.subr.bf16.mxu0 0
  %181 = vmatpush1.bf16.msra.mxu0 0
  %182 = vmatprep.subr.bf16.mxu0 0
  %183 = vmatpush1.bf16.msra.mxu0 0
  %184 = vmatprep.subr.bf16.mxu0 0
  %185 = vmatpush1.bf16.msra.mxu0 0
  %186 = vmatprep.subr.bf16.mxu0 0
  %187 = vmatpush1.bf16.msra.mxu0 0
  %188 = vmatprep.subr.bf16.mxu0 0
  %189 = vmatpush1.bf16.msra.mxu0 0
  %190 = vmatprep.subr.bf16.mxu0 0
  %191 = vmatpush1.bf16.msra.mxu0 0
  %192 = vmatprep.subr.bf16.mxu0 0
  %193 = vmatpush1.bf16.msra.mxu0 0
  %194 = vmatprep.subr.bf16.mxu0 0
  %195 = vmatpush1.bf16.msra.mxu0 0
  %196 = vmatprep.subr.bf16.mxu0 0
  %197 = vmatpush1.bf16.msra.mxu0 0
  %198 = vmatprep.subr.bf16.mxu0 0
  %199 = vmatpush1.bf16.msra.mxu0 0
  %200 = vmatprep.mubr.bf16.mxu0 0
  %201 = vmatmul.mubr.bf16.gmra.mrb[0].mxu0 %v84
  %v202 = vpop.f32.mrb[0].mxu0
  %v203 = vadd.f32 %v62, %v202
  %v204 = vpop.f32.mrb[0].mxu0
  %v205 = vpop.f32.mrb[0].mxu0
  %v206 = vadd.f32 %v62, %v205
  %v207 = vpop.f32.mrb[0].mxu0
  %208 = vmatprep.mubr.bf16.mxu0 0
  %209 = vmatmul.mubr.bf16.gmra.mrb[0].mxu0 %v87
  %v210 = vpop.f32.mrb[0].mxu0
  %v211 = vadd.f32 %v62, %v210
  %v212 = vpop.f32.mrb[0].mxu0
  %v213 = vpop.f32.mrb[0].mxu0
  %v214 = vadd.f32 %v62, %v213
  %v215 = vpop.f32.mrb[0].mxu0
  %216 = vmatprep.mubr.bf16.mxu0 0
  %217 = vmatmul.mubr.bf16.gmra.mrb[0].mxu0 %v90
  %v218 = vpop.f32.mrb[0].mxu0
  %v219 = vadd.f32 %v62, %v218
  %v220 = vpop.f32.mrb[0].mxu0
  %v221 = vpop.f32.mrb[0].mxu0
  %v222 = vadd.f32 %v62, %v221
  %v223 = vpop.f32.mrb[0].mxu0
  %224 = vmatprep.mubr.bf16.mxu0 0
  %225 = vmatmul.mubr.bf16.gmra.mrb[0].mxu0 %v93
  %v226 = vpop.f32.mrb[0].mxu0
  %v227 = vadd.f32 %v62, %v226
  %v228 = vpop.f32.mrb[0].mxu0
  %v229 = vpop.f32.mrb[0].mxu0
  %v230 = vadd.f32 %v62, %v229
  %v231 = vpop.f32.mrb[0].mxu0
  %232 = vdwg.mxu0
  %233 = vst [vmem:[#allocation2] sm:$0xff] %v130
  %234 = vst [vmem:[#allocation2 + $0x8] sm:$0xff] %v132
  %235 = vst [vmem:[#allocation2 + $0x10] sm:$0xff] %v203
  %236 = vst [vmem:[#allocation2 + $0x18] sm:$0xff] %v134
  %237 = vst [vmem:[#allocation2 + $0x20] sm:$0xff] %v136
  %238 = vst [vmem:[#allocation2 + $0x28] sm:$0xff] %v206
  %239 = vst [vmem:[#allocation2 + $0x30] sm:$0xff] %v140
  %240 = vst [vmem:[#allocation2 + $0x38] sm:$0xff] %v142
  %241 = vst [vmem:[#allocation2 + $0x40] sm:$0xff] %v211
  %242 = vst [vmem:[#allocation2 + $0x48] sm:$0xff] %v144
  %243 = vst [vmem:[#allocation2 + $0x50] sm:$0xff] %v146
  %244 = vst [vmem:[#allocation2 + $0x58] sm:$0xff] %v214
  %245 = vst [vmem:[#allocation2 + $0x60] sm:$0xff] %v150
  %246 = vst [vmem:[#allocation2 + $0x68] sm:$0xff] %v152
  %247 = vst [vmem:[#allocation2 + $0x70] sm:$0xff] %v219
  %248 = vst [vmem:[#allocation2 + $0x78] sm:$0xff] %v154
  %249 = vst [vmem:[#allocation2 + $0x80] sm:$0xff] %v156
  %250 = vst [vmem:[#allocation2 + $0x88] sm:$0xff] %v222
  %251 = vst [vmem:[#allocation2 + $0x90] sm:$0xff] %v160
  %252 = vst [vmem:[#allocation2 + $0x98] sm:$0xff] %v162
  %253 = vst [vmem:[#allocation2 + $0xa0] sm:$0xff] %v227
  %254 = vst [vmem:[#allocation2 + $0xa8] sm:$0xff] %v164
  %255 = vst [vmem:[#allocation2 + $0xb0] sm:$0xff] %v166
  %256 = vst [vmem:[#allocation2 + $0xb8] sm:$0xff] %v230
  %v257 = vld [vmem:[#allocation2] sm:$0xff]
  %v258 = vld [vmem:[#allocation2 + $0x8] sm:$0xff]
  %v259 = vld [vmem:[#allocation2 + $0x10] sm:$0xff]
  %v260 = vld [vmem:[%s2] sm:$0xff]
  %v261 = vld [vmem:[%s2 + $0x8] sm:$0xf]
  %v262 = vld [vmem:[%s2 + $0xc] sm:$0xff]
  %v263 = vld [vmem:[%s2 + $0x14] sm:$0xf]
  %v264 = vld [vmem:[%s2 + $0x18] sm:$0xff]
  %v265 = vld [vmem:[%s2 + $0x20] sm:$0xf]
  %v266 = vld [vmem:[%s2 + $0x24] sm:$0xff]
  %v267 = vld [vmem:[%s2 + $0x2c] sm:$0xf]
  %v268 = vld [vmem:[%s2 + $0x30] sm:$0xff]
  %v269 = vld [vmem:[%s2 + $0x38] sm:$0xf]
  %v270 = vld [vmem:[%s2 + $0x3c] sm:$0xff]
  %v271 = vld [vmem:[%s2 + $0x44] sm:$0xf]
  %v272 = vld [vmem:[%s2 + $0x48] sm:$0xff]
  %v273 = vld [vmem:[%s2 + $0x50] sm:$0xf]
  %v274 = vld [vmem:[%s2 + $0x54] sm:$0xff]
  %v275 = vld [vmem:[%s2 + $0x5c] sm:$0xf]
  %v276 = vld [vmem:[%s2 + $0x60] sm:$0xff]
  %v277 = vld [vmem:[%s2 + $0x68] sm:$0xf]
  %v278 = vld [vmem:[%s2 + $0x6c] sm:$0xff]
  %v279 = vld [vmem:[%s2 + $0x74] sm:$0xf]
  %v280 = vld [vmem:[%s2 + $0x78] sm:$0xff]
  %v281 = vld [vmem:[%s2 + $0x80] sm:$0xf]
  %v282 = vld [vmem:[%s2 + $0x84] sm:$0xff]
  %v283 = vld [vmem:[%s2 + $0x8c] sm:$0xf]
  %v284 = vld [vmem:[%s2 + $0x90] sm:$0xff]
  %v285 = vld [vmem:[%s2 + $0x98] sm:$0xf]
  %v286 = vld [vmem:[%s2 + $0x9c] sm:$0xff]
  %v287 = vld [vmem:[%s2 + $0xa4] sm:$0xf]
  %v288 = vld [vmem:[%s2 + $0xa8] sm:$0xff]
  %v289 = vld [vmem:[%s2 + $0xb0] sm:$0xf]
  %v290 = vld [vmem:[%s2 + $0xb4] sm:$0xff]
  %v291 = vld [vmem:[%s2 + $0xbc] sm:$0xf]
  %v292 = vld [vmem:[%s4] sm:$0x7]
  %v294 = vlaneseq
  %v295 = vshrl.u32 %v294, 7
  %v296 = vsub.s32 0, %v295
  %v297 = vrot.slane %v292, %v296
  %v298 = vlaneseq
  %v299 = vshrl.u32 %v298, 7
  %v300 = vsub.s32 1, %v299
  %v301 = vrot.slane %v292, %v300
  %v302 = vlaneseq
  %v303 = vshrl.u32 %v302, 7
  %v304 = vsub.s32 2, %v303
  %v305 = vrot.slane %v292, %v304
  %v341 = vunpack.c.l.b16 %v260
  %v342 = vunpack.c.h.b16 %v260
  %v343 = vunpack.c.l.b16 %v261
  %v344 = vunpack.c.l.b16 %v262
  %v345 = vunpack.c.h.b16 %v262
  %v346 = vunpack.c.l.b16 %v263
  %v347 = vunpack.c.l.b16 %v264
  %v348 = vunpack.c.h.b16 %v264
  %v349 = vunpack.c.l.b16 %v265
  %v350 = vunpack.c.l.b16 %v266
  %v351 = vunpack.c.h.b16 %v266
  %v352 = vunpack.c.l.b16 %v267
  %v353 = vunpack.c.l.b16 %v268
  %v354 = vunpack.c.h.b16 %v268
  %v355 = vunpack.c.l.b16 %v269
  %v356 = vunpack.c.l.b16 %v270
  %v357 = vunpack.c.h.b16 %v270
  %v358 = vunpack.c.l.b16 %v271
  %v359 = vunpack.c.l.b16 %v272
  %v360 = vunpack.c.h.b16 %v272
  %v361 = vunpack.c.l.b16 %v273
  %v362 = vunpack.c.l.b16 %v274
  %v363 = vunpack.c.h.b16 %v274
  %v364 = vunpack.c.l.b16 %v275
  %v365 = vunpack.c.l.b16 %v276
  %v366 = vunpack.c.h.b16 %v276
  %v367 = vunpack.c.l.b16 %v277
  %v368 = vunpack.c.l.b16 %v278
  %v369 = vunpack.c.h.b16 %v278
  %v370 = vunpack.c.l.b16 %v279
  %v371 = vunpack.c.l.b16 %v280
  %v372 = vunpack.c.h.b16 %v280
  %v373 = vunpack.c.l.b16 %v281
  %v374 = vunpack.c.l.b16 %v282
  %v375 = vunpack.c.h.b16 %v282
  %v376 = vunpack.c.l.b16 %v283
  %v377 = vunpack.c.l.b16 %v284
  %v378 = vunpack.c.h.b16 %v284
  %v379 = vunpack.c.l.b16 %v285
  %v380 = vunpack.c.l.b16 %v286
  %v381 = vunpack.c.h.b16 %v286
  %v382 = vunpack.c.l.b16 %v287
  %v383 = vunpack.c.l.b16 %v288
  %v384 = vunpack.c.h.b16 %v288
  %v385 = vunpack.c.l.b16 %v289
  %v386 = vunpack.c.l.b16 %v290
  %v387 = vunpack.c.h.b16 %v290
  %v388 = vunpack.c.l.b16 %v291
  %v389 = vpack.c.b16 %v344, %v341
  %v390 = vpack.c.b16 %v345, %v342
  %v391 = vpack.c.b16 %v346, %v343
  %v392 = vpack.c.b16 %v350, %v347
  %v393 = vpack.c.b16 %v351, %v348
  %v394 = vpack.c.b16 %v352, %v349
  %v395 = vpack.c.b16 %v356, %v353
  %v396 = vpack.c.b16 %v357, %v354
  %v397 = vpack.c.b16 %v358, %v355
  %v398 = vpack.c.b16 %v362, %v359
  %v399 = vpack.c.b16 %v363, %v360
  %v400 = vpack.c.b16 %v364, %v361
  %v401 = vpack.c.b16 %v368, %v365
  %v402 = vpack.c.b16 %v369, %v366
  %v403 = vpack.c.b16 %v370, %v367
  %v404 = vpack.c.b16 %v374, %v371
  %v405 = vpack.c.b16 %v375, %v372
  %v406 = vpack.c.b16 %v376, %v373
  %v407 = vpack.c.b16 %v380, %v377
  %v408 = vpack.c.b16 %v381, %v378
  %v409 = vpack.c.b16 %v382, %v379
  %v410 = vpack.c.b16 %v386, %v383
  %v411 = vpack.c.b16 %v387, %v384
  %v412 = vpack.c.b16 %v388, %v385
  %437 = vmatprep.subr.bf16.mxu0 %v390
  %438 = vmatpush1.bf16.msra.mxu0 %v389
  %439 = vmatprep.subr.bf16.mxu0 %v393
  %440 = vmatpush1.bf16.msra.mxu0 %v392
  %441 = vmatprep.subr.bf16.mxu0 %v396
  %442 = vmatpush1.bf16.msra.mxu0 %v395
  %443 = vmatprep.subr.bf16.mxu0 %v399
  %444 = vmatpush1.bf16.msra.mxu0 %v398
  %445 = vmatprep.subr.bf16.mxu0 %v402
  %446 = vmatpush1.bf16.msra.mxu0 %v401
  %447 = vmatprep.subr.bf16.mxu0 %v405
  %448 = vmatpush1.bf16.msra.mxu0 %v404
  %449 = vmatprep.subr.bf16.mxu0 %v408
  %450 = vmatpush1.bf16.msra.mxu0 %v407
  %451 = vmatprep.subr.bf16.mxu0 %v411
  %452 = vmatpush1.bf16.msra.mxu0 %v410
  %453 = vmatprep.subr.bf16.mxu0 0
  %454 = vmatpush1.bf16.msra.mxu0 0
  %455 = vmatprep.subr.bf16.mxu0 0
  %456 = vmatpush1.bf16.msra.mxu0 0
  %457 = vmatprep.subr.bf16.mxu0 0
  %458 = vmatpush1.bf16.msra.mxu0 0
  %459 = vmatprep.subr.bf16.mxu0 0
  %460 = vmatpush1.bf16.msra.mxu0 0
  %461 = vmatprep.subr.bf16.mxu0 0
  %462 = vmatpush1.bf16.msra.mxu0 0
  %463 = vmatprep.subr.bf16.mxu0 0
  %464 = vmatpush1.bf16.msra.mxu0 0
  %465 = vmatprep.subr.bf16.mxu0 0
  %466 = vmatpush1.bf16.msra.mxu0 0
  %467 = vmatprep.subr.bf16.mxu0 0
  %468 = vmatpush1.bf16.msra.mxu0 0
  %469 = vmatprep.mubr.bf16.mxu0 0
  %470 = vmatmul.mubr.bf16.gmra.mrb[0].mxu0 0
  %v471 = vpop.f32.mrb[0].mxu0
  %v472 = vadd.f32 %v297, %v471
  %v473 = vpop.f32.mrb[0].mxu0
  %v474 = vadd.f32 %v301, %v473
  %v475 = vpop.f32.mrb[0].mxu0
  %v476 = vpop.f32.mrb[0].mxu0
  %477 = vdwg.mxu0
  %478 = vmatprep.subr.bf16.mxu0 0
  %479 = vmatpush1.bf16.msra.mxu0 %v391
  %480 = vmatprep.subr.bf16.mxu0 0
  %481 = vmatpush1.bf16.msra.mxu0 %v394
  %482 = vmatprep.subr.bf16.mxu0 0
  %483 = vmatpush1.bf16.msra.mxu0 %v397
  %484 = vmatprep.subr.bf16.mxu0 0
  %485 = vmatpush1.bf16.msra.mxu0 %v400
  %486 = vmatprep.subr.bf16.mxu0 0
  %487 = vmatpush1.bf16.msra.mxu0 %v403
  %488 = vmatprep.subr.bf16.mxu0 0
  %489 = vmatpush1.bf16.msra.mxu0 %v406
  %490 = vmatprep.subr.bf16.mxu0 0
  %491 = vmatpush1.bf16.msra.mxu0 %v409
  %492 = vmatprep.subr.bf16.mxu0 0
  %493 = vmatpush1.bf16.msra.mxu0 %v412
  %494 = vmatprep.subr.bf16.mxu0 0
  %495 = vmatpush1.bf16.msra.mxu0 0
  %496 = vmatprep.subr.bf16.mxu0 0
  %497 = vmatpush1.bf16.msra.mxu0 0
  %498 = vmatprep.subr.bf16.mxu0 0
  %499 = vmatpush1.bf16.msra.mxu0 0
  %500 = vmatprep.subr.bf16.mxu0 0
  %501 = vmatpush1.bf16.msra.mxu0 0
  %502 = vmatprep.subr.bf16.mxu0 0
  %503 = vmatpush1.bf16.msra.mxu0 0
  %504 = vmatprep.subr.bf16.mxu0 0
  %505 = vmatpush1.bf16.msra.mxu0 0
  %506 = vmatprep.subr.bf16.mxu0 0
  %507 = vmatpush1.bf16.msra.mxu0 0
  %508 = vmatprep.subr.bf16.mxu0 0
  %509 = vmatpush1.bf16.msra.mxu0 0
  %510 = vmatprep.mubr.bf16.mxu0 0
  %511 = vmatmul.mubr.bf16.gmra.mrb[0].mxu0 0
  %v512 = vpop.f32.mrb[0].mxu0
  %v513 = vadd.f32 %v305, %v512
  %v514 = vpop.f32.mrb[0].mxu0
  %v515 = vpop.f32.mrb[0].mxu0
  %v516 = vpop.f32.mrb[0].mxu0
  %517 = vdwg.mxu0
  %v518 = vadd.f32 %v257, %v472
  %v519 = vxor.u32 %v518, 2147483648
  %v520 = vmul.f32 %v519, 1.442695
  %v521 = vpow.pop %v520
  %v522 = vadd.f32 %v521, 1.0
  %v523 = vrcp.pop %v522
  %v524 = vmul.f32 1.0, %v523
  %v525 = vadd.f32 %v258, %v474
  %v526 = vxor.u32 %v525, 2147483648
  %v527 = vmul.f32 %v526, 1.442695
  %v528 = vpow.pop %v527
  %v529 = vadd.f32 %v528, 1.0
  %v530 = vrcp.pop %v529
  %v531 = vmul.f32 1.0, %v530
  %v532 = vmul.f32 %v524, %v513
  %v533 = vadd.f32 %v259, %v532
  %v534 = vtanh.pop %v533
  %v535 = vsub.f32 1.0, %v531
  %v536 = vmul.f32 %v535, %v534
  %v537 = vmul.f32 %v531, 0.0
  %v538 = vadd.f32 %v536, %v537
  %539 = vst [vmem:[#allocation3] sm:$0xff] %v538
  %s540 = scalar_lea.vmem [#allocation2], 24
  %v541 = vld [vmem:[%s540] sm:$0xff]
  %v542 = vld [vmem:[%s540 + $0x8] sm:$0xff]
  %v543 = vld [vmem:[%s540 + $0x10] sm:$0xff]
  %v544 = vpack.c.bf16 %v538, %v538
  %v545 = vld [vmem:[%s2] sm:$0xff]
  %v546 = vld [vmem:[%s2 + $0x8] sm:$0xf]
  %v547 = vld [vmem:[%s2 + $0xc] sm:$0xff]
  %v548 = vld [vmem:[%s2 + $0x14] sm:$0xf]
  %v549 = vld [vmem:[%s2 + $0x18] sm:$0xff]
  %v550 = vld [vmem:[%s2 + $0x20] sm:$0xf]
  %v551 = vld [vmem:[%s2 + $0x24] sm:$0xff]
  %v552 = vld [vmem:[%s2 + $0x2c] sm:$0xf]
  %v553 = vld [vmem:[%s2 + $0x30] sm:$0xff]
  %v554 = vld [vmem:[%s2 + $0x38] sm:$0xf]
  %v555 = vld [vmem:[%s2 + $0x3c] sm:$0xff]
  %v556 = vld [vmem:[%s2 + $0x44] sm:$0xf]
  %v557 = vld [vmem:[%s2 + $0x48] sm:$0xff]
  %v558 = vld [vmem:[%s2 + $0x50] sm:$0xf]
  %v559 = vld [vmem:[%s2 + $0x54] sm:$0xff]
  %v560 = vld [vmem:[%s2 + $0x5c] sm:$0xf]
  %v561 = vld [vmem:[%s2 + $0x60] sm:$0xff]
  %v562 = vld [vmem:[%s2 + $0x68] sm:$0xf]
  %v563 = vld [vmem:[%s2 + $0x6c] sm:$0xff]
  %v564 = vld [vmem:[%s2 + $0x74] sm:$0xf]
  %v565 = vld [vmem:[%s2 + $0x78] sm:$0xff]
  %v566 = vld [vmem:[%s2 + $0x80] sm:$0xf]
  %v567 = vld [vmem:[%s2 + $0x84] sm:$0xff]
  %v568 = vld [vmem:[%s2 + $0x8c] sm:$0xf]
  %v569 = vld [vmem:[%s2 + $0x90] sm:$0xff]
  %v570 = vld [vmem:[%s2 + $0x98] sm:$0xf]
  %v571 = vld [vmem:[%s2 + $0x9c] sm:$0xff]
  %v572 = vld [vmem:[%s2 + $0xa4] sm:$0xf]
  %v573 = vld [vmem:[%s2 + $0xa8] sm:$0xff]
  %v574 = vld [vmem:[%s2 + $0xb0] sm:$0xf]
  %v575 = vld [vmem:[%s2 + $0xb4] sm:$0xff]
  %v576 = vld [vmem:[%s2 + $0xbc] sm:$0xf]
  %v577 = vld [vmem:[%s4] sm:$0x7]
  %v579 = vlaneseq
  %v580 = vshrl.u32 %v579, 7
  %v581 = vsub.s32 0, %v580
  %v582 = vrot.slane %v577, %v581
  %v583 = vlaneseq
  %v584 = vshrl.u32 %v583, 7
  %v585 = vsub.s32 1, %v584
  %v586 = vrot.slane %v577, %v585
  %v587 = vlaneseq
  %v588 = vshrl.u32 %v587, 7
  %v589 = vsub.s32 2, %v588
  %v590 = vrot.slane %v577, %v589
  %v626 = vunpack.c.l.b16 %v545
  %v627 = vunpack.c.h.b16 %v545
  %v628 = vunpack.c.l.b16 %v546
  %v629 = vunpack.c.l.b16 %v547
  %v630 = vunpack.c.h.b16 %v547
  %v631 = vunpack.c.l.b16 %v548
  %v632 = vunpack.c.l.b16 %v549
  %v633 = vunpack.c.h.b16 %v549
  %v634 = vunpack.c.l.b16 %v550
  %v635 = vunpack.c.l.b16 %v551
  %v636 = vunpack.c.h.b16 %v551
  %v637 = vunpack.c.l.b16 %v552
  %v638 = vunpack.c.l.b16 %v553
  %v639 = vunpack.c.h.b16 %v553
  %v640 = vunpack.c.l.b16 %v554
  %v641 = vunpack.c.l.b16 %v555
  %v642 = vunpack.c.h.b16 %v555
  %v643 = vunpack.c.l.b16 %v556
  %v644 = vunpack.c.l.b16 %v557
  %v645 = vunpack.c.h.b16 %v557
  %v646 = vunpack.c.l.b16 %v558
  %v647 = vunpack.c.l.b16 %v559
  %v648 = vunpack.c.h.b16 %v559
  %v649 = vunpack.c.l.b16 %v560
  %v650 = vunpack.c.l.b16 %v561
  %v651 = vunpack.c.h.b16 %v561
  %v652 = vunpack.c.l.b16 %v562
  %v653 = vunpack.c.l.b16 %v563
  %v654 = vunpack.c.h.b16 %v563
  %v655 = vunpack.c.l.b16 %v564
  %v656 = vunpack.c.l.b16 %v565
  %v657 = vunpack.c.h.b16 %v565
  %v658 = vunpack.c.l.b16 %v566
  %v659 = vunpack.c.l.b16 %v567
  %v660 = vunpack.c.h.b16 %v567
  %v661 = vunpack.c.l.b16 %v568
  %v662 = vunpack.c.l.b16 %v569
  %v663 = vunpack.c.h.b16 %v569
  %v664 = vunpack.c.l.b16 %v570
  %v665 = vunpack.c.l.b16 %v571
  %v666 = vunpack.c.h.b16 %v571
  %v667 = vunpack.c.l.b16 %v572
  %v668 = vunpack.c.l.b16 %v573
  %v669 = vunpack.c.h.b16 %v573
  %v670 = vunpack.c.l.b16 %v574
  %v671 = vunpack.c.l.b16 %v575
  %v672 = vunpack.c.h.b16 %v575
  %v673 = vunpack.c.l.b16 %v576
  %v674 = vpack.c.b16 %v629, %v626
  %v675 = vpack.c.b16 %v630, %v627
  %v676 = vpack.c.b16 %v631, %v628
  %v677 = vpack.c.b16 %v635, %v632
  %v678 = vpack.c.b16 %v636, %v633
  %v679 = vpack.c.b16 %v637, %v634
  %v680 = vpack.c.b16 %v641, %v638
  %v681 = vpack.c.b16 %v642, %v639
  %v682 = vpack.c.b16 %v643, %v640
  %v683 = vpack.c.b16 %v647, %v644
  %v684 = vpack.c.b16 %v648, %v645
  %v685 = vpack.c.b16 %v649, %v646
  %v686 = vpack.c.b16 %v653, %v650
  %v687 = vpack.c.b16 %v654, %v651
  %v688 = vpack.c.b16 %v655, %v652
  %v689 = vpack.c.b16 %v659, %v656
  %v690 = vpack.c.b16 %v660, %v657
  %v691 = vpack.c.b16 %v661, %v658
  %v692 = vpack.c.b16 %v665, %v662
  %v693 = vpack.c.b16 %v666, %v663
  %v694 = vpack.c.b16 %v667, %v664
  %v695 = vpack.c.b16 %v671, %v668
  %v696 = vpack.c.b16 %v672, %v669
  %v697 = vpack.c.b16 %v673, %v670
  %722 = vmatprep.subr.bf16.mxu0 %v675
  %723 = vmatpush1.bf16.msra.mxu0 %v674
  %724 = vmatprep.subr.bf16.mxu0 %v678
  %725 = vmatpush1.bf16.msra.mxu0 %v677
  %726 = vmatprep.subr.bf16.mxu0 %v681
  %727 = vmatpush1.bf16.msra.mxu0 %v680
  %728 = vmatprep.subr.bf16.mxu0 %v684
  %729 = vmatpush1.bf16.msra.mxu0 %v683
  %730 = vmatprep.subr.bf16.mxu0 %v687
  %731 = vmatpush1.bf16.msra.mxu0 %v686
  %732 = vmatprep.subr.bf16.mxu0 %v690
  %733 = vmatpush1.bf16.msra.mxu0 %v689
  %734 = vmatprep.subr.bf16.mxu0 %v693
  %735 = vmatpush1.bf16.msra.mxu0 %v692
  %736 = vmatprep.subr.bf16.mxu0 %v696
  %737 = vmatpush1.bf16.msra.mxu0 %v695
  %738 = vmatprep.subr.bf16.mxu0 0
  %739 = vmatpush1.bf16.msra.mxu0 0
  %740 = vmatprep.subr.bf16.mxu0 0
  %741 = vmatpush1.bf16.msra.mxu0 0
  %742 = vmatprep.subr.bf16.mxu0 0
  %743 = vmatpush1.bf16.msra.mxu0 0
  %744 = vmatprep.subr.bf16.mxu0 0
  %745 = vmatpush1.bf16.msra.mxu0 0
  %746 = vmatprep.subr.bf16.mxu0 0
  %747 = vmatpush1.bf16.msra.mxu0 0
  %748 = vmatprep.subr.bf16.mxu0 0
  %749 = vmatpush1.bf16.msra.mxu0 0
  %750 = vmatprep.subr.bf16.mxu0 0
  %751 = vmatpush1.bf16.msra.mxu0 0
  %752 = vmatprep.subr.bf16.mxu0 0
  %753 = vmatpush1.bf16.msra.mxu0 0
  %754 = vmatprep.mubr.bf16.mxu0 0
  %755 = vmatmul.mubr.bf16.gmra.mrb[0].mxu0 %v544
  %v756 = vpop.f32.mrb[0].mxu0
  %v757 = vadd.f32 %v582, %v756
  %v758 = vpop.f32.mrb[0].mxu0
  %v759 = vadd.f32 %v586, %v758
  %v760 = vpop.f32.mrb[0].mxu0
  %v761 = vpop.f32.mrb[0].mxu0
  %762 = vdwg.mxu0
  %763 = vmatprep.subr.bf16.mxu0 0
  %764 = vmatpush1.bf16.msra.mxu0 %v676
  %765 = vmatprep.subr.bf16.mxu0 0
  %766 = vmatpush1.bf16.msra.mxu0 %v679
  %767 = vmatprep.subr.bf16.mxu0 0
  %768 = vmatpush1.bf16.msra.mxu0 %v682
  %769 = vmatprep.subr.bf16.mxu0 0
  %770 = vmatpush1.bf16.msra.mxu0 %v685
  %771 = vmatprep.subr.bf16.mxu0 0
  %772 = vmatpush1.bf16.msra.mxu0 %v688
  %773 = vmatprep.subr.bf16.mxu0 0
  %774 = vmatpush1.bf16.msra.mxu0 %v691
  %775 = vmatprep.subr.bf16.mxu0 0
  %776 = vmatpush1.bf16.msra.mxu0 %v694
  %777 = vmatprep.subr.bf16.mxu0 0
  %778 = vmatpush1.bf16.msra.mxu0 %v697
  %779 = vmatprep.subr.bf16.mxu0 0
  %780 = vmatpush1.bf16.msra.mxu0 0
  %781 = vmatprep.subr.bf16.mxu0 0
  %782 = vmatpush1.bf16.msra.mxu0 0
  %783 = vmatprep.subr.bf16.mxu0 0
  %784 = vmatpush1.bf16.msra.mxu0 0
  %785 = vmatprep.subr.bf16.mxu0 0
  %786 = vmatpush1.bf16.msra.mxu0 0
  %787 = vmatprep.subr.bf16.mxu0 0
  %788 = vmatpush1.bf16.msra.mxu0 0
  %789 = vmatprep.subr.bf16.mxu0 0
  %790 = vmatpush1.bf16.msra.mxu0 0
  %791 = vmatprep.subr.bf16.mxu0 0
  %792 = vmatpush1.bf16.msra.mxu0 0
  %793 = vmatprep.subr.bf16.mxu0 0
  %794 = vmatpush1.bf16.msra.mxu0 0
  %795 = vmatprep.mubr.bf16.mxu0 0
  %796 = vmatmul.mubr.bf16.gmra.mrb[0].mxu0 %v544
  %v797 = vpop.f32.mrb[0].mxu0
  %v798 = vadd.f32 %v590, %v797
  %v799 = vpop.f32.mrb[0].mxu0
  %v800 = vpop.f32.mrb[0].mxu0
  %v801 = vpop.f32.mrb[0].mxu0
  %802 = vdwg.mxu0
  %v803 = vadd.f32 %v541, %v757
  %v804 = vxor.u32 %v803, 2147483648
  %v805 = vmul.f32 %v804, 1.442695
  %v806 = vpow.pop %v805
  %v807 = vadd.f32 %v806, 1.0
  %v808 = vrcp.pop %v807
  %v809 = vmul.f32 1.0, %v808
  %v810 = vadd.f32 %v542, %v759
  %v811 = vxor.u32 %v810, 2147483648
  %v812 = vmul.f32 %v811, 1.442695
  %v813 = vpow.pop %v812
  %v814 = vadd.f32 %v813, 1.0
  %v815 = vrcp.pop %v814
  %v816 = vmul.f32 1.0, %v815
  %v817 = vmul.f32 %v809, %v798
  %v818 = vadd.f32 %v543, %v817
  %v819 = vtanh.pop %v818
  %v820 = vsub.f32 1.0, %v816
  %v821 = vmul.f32 %v820, %v819
  %v822 = vmul.f32 %v816, %v538
  %v823 = vadd.f32 %v821, %v822
  %s824 = scalar_lea.vmem [#allocation3], 8
  %825 = vst [vmem:[%s824] sm:$0xff] %v823
  %s826 = scalar_lea.vmem [#allocation2], 48
  %v827 = vld [vmem:[%s826] sm:$0xff]
  %v828 = vld [vmem:[%s826 + $0x8] sm:$0xff]
  %v829 = vld [vmem:[%s826 + $0x10] sm:$0xff]
  %v830 = vpack.c.bf16 %v823, %v823
  %v831 = vld [vmem:[%s2] sm:$0xff]
  %v832 = vld [vmem:[%s2 + $0x8] sm:$0xf]
  %v833 = vld [vmem:[%s2 + $0xc] sm:$0xff]
  %v834 = vld [vmem:[%s2 + $0x14] sm:$0xf]
  %v835 = vld [vmem:[%s2 + $0x18] sm:$0xff]
  %v836 = vld [vmem:[%s2 + $0x20] sm:$0xf]
  %v837 = vld [vmem:[%s2 + $0x24] sm:$0xff]
  %v838 = vld [vmem:[%s2 + $0x2c] sm:$0xf]
  %v839 = vld [vmem:[%s2 + $0x30] sm:$0xff]
  %v840 = vld [vmem:[%s2 + $0x38] sm:$0xf]
  %v841 = vld [vmem:[%s2 + $0x3c] sm:$0xff]
  %v842 = vld [vmem:[%s2 + $0x44] sm:$0xf]
  %v843 = vld [vmem:[%s2 + $0x48] sm:$0xff]
  %v844 = vld [vmem:[%s2 + $0x50] sm:$0xf]
  %v845 = vld [vmem:[%s2 + $0x54] sm:$0xff]
  %v846 = vld [vmem:[%s2 + $0x5c] sm:$0xf]
  %v847 = vld [vmem:[%s2 + $0x60] sm:$0xff]
  %v848 = vld [vmem:[%s2 + $0x68] sm:$0xf]
  %v849 = vld [vmem:[%s2 + $0x6c] sm:$0xff]
  %v850 = vld [vmem:[%s2 + $0x74] sm:$0xf]
  %v851 = vld [vmem:[%s2 + $0x78] sm:$0xff]
  %v852 = vld [vmem:[%s2 + $0x80] sm:$0xf]
  %v853 = vld [vmem:[%s2 + $0x84] sm:$0xff]
  %v854 = vld [vmem:[%s2 + $0x8c] sm:$0xf]
  %v855 = vld [vmem:[%s2 + $0x90] sm:$0xff]
  %v856 = vld [vmem:[%s2 + $0x98] sm:$0xf]
  %v857 = vld [vmem:[%s2 + $0x9c] sm:$0xff]
  %v858 = vld [vmem:[%s2 + $0xa4] sm:$0xf]
  %v859 = vld [vmem:[%s2 + $0xa8] sm:$0xff]
  %v860 = vld [vmem:[%s2 + $0xb0] sm:$0xf]
  %v861 = vld [vmem:[%s2 + $0xb4] sm:$0xff]
  %v862 = vld [vmem:[%s2 + $0xbc] sm:$0xf]
  %v863 = vld [vmem:[%s4] sm:$0x7]
  %v865 = vlaneseq
  %v866 = vshrl.u32 %v865, 7
  %v867 = vsub.s32 0, %v866
  %v868 = vrot.slane %v863, %v867
  %v869 = vlaneseq
  %v870 = vshrl.u32 %v869, 7
  %v871 = vsub.s32 1, %v870
  %v872 = vrot.slane %v863, %v871
  %v873 = vlaneseq
  %v874 = vshrl.u32 %v873, 7
  %v875 = vsub.s32 2, %v874
  %v876 = vrot.slane %v863, %v875
  %v912 = vunpack.c.l.b16 %v831
  %v913 = vunpack.c.h.b16 %v831
  %v914 = vunpack.c.l.b16 %v832
  %v915 = vunpack.c.l.b16 %v833
  %v916 = vunpack.c.h.b16 %v833
  %v917 = vunpack.c.l.b16 %v834
  %v918 = vunpack.c.l.b16 %v835
  %v919 = vunpack.c.h.b16 %v835
  %v920 = vunpack.c.l.b16 %v836
  %v921 = vunpack.c.l.b16 %v837
  %v922 = vunpack.c.h.b16 %v837
  %v923 = vunpack.c.l.b16 %v838
  %v924 = vunpack.c.l.b16 %v839
  %v925 = vunpack.c.h.b16 %v839
  %v926 = vunpack.c.l.b16 %v840
  %v927 = vunpack.c.l.b16 %v841
  %v928 = vunpack.c.h.b16 %v841
  %v929 = vunpack.c.l.b16 %v842
  %v930 = vunpack.c.l.b16 %v843
  %v931 = vunpack.c.h.b16 %v843
  %v932 = vunpack.c.l.b16 %v844
  %v933 = vunpack.c.l.b16 %v845
  %v934 = vunpack.c.h.b16 %v845
  %v935 = vunpack.c.l.b16 %v846
  %v936 = vunpack.c.l.b16 %v847
  %v937 = vunpack.c.h.b16 %v847
  %v938 = vunpack.c.l.b16 %v848
  %v939 = vunpack.c.l.b16 %v849
  %v940 = vunpack.c.h.b16 %v849
  %v941 = vunpack.c.l.b16 %v850
  %v942 = vunpack.c.l.b16 %v851
  %v943 = vunpack.c.h.b16 %v851
  %v944 = vunpack.c.l.b16 %v852
  %v945 = vunpack.c.l.b16 %v853
  %v946 = vunpack.c.h.b16 %v853
  %v947 = vunpack.c.l.b16 %v854
  %v948 = vunpack.c.l.b16 %v855
  %v949 = vunpack.c.h.b16 %v855
  %v950 = vunpack.c.l.b16 %v856
  %v951 = vunpack.c.l.b16 %v857
  %v952 = vunpack.c.h.b16 %v857
  %v953 = vunpack.c.l.b16 %v858
  %v954 = vunpack.c.l.b16 %v859
  %v955 = vunpack.c.h.b16 %v859
  %v956 = vunpack.c.l.b16 %v860
  %v957 = vunpack.c.l.b16 %v861
  %v958 = vunpack.c.h.b16 %v861
  %v959 = vunpack.c.l.b16 %v862
  %v960 = vpack.c.b16 %v915, %v912
  %v961 = vpack.c.b16 %v916, %v913
  %v962 = vpack.c.b16 %v917, %v914
  %v963 = vpack.c.b16 %v921, %v918
  %v964 = vpack.c.b16 %v922, %v919
  %v965 = vpack.c.b16 %v923, %v920
  %v966 = vpack.c.b16 %v927, %v924
  %v967 = vpack.c.b16 %v928, %v925
  %v968 = vpack.c.b16 %v929, %v926
  %v969 = vpack.c.b16 %v933, %v930
  %v970 = vpack.c.b16 %v934, %v931
  %v971 = vpack.c.b16 %v935, %v932
  %v972 = vpack.c.b16 %v939, %v936
  %v973 = vpack.c.b16 %v940, %v937
  %v974 = vpack.c.b16 %v941, %v938
  %v975 = vpack.c.b16 %v945, %v942
  %v976 = vpack.c.b16 %v946, %v943
  %v977 = vpack.c.b16 %v947, %v944
  %v978 = vpack.c.b16 %v951, %v948
  %v979 = vpack.c.b16 %v952, %v949
  %v980 = vpack.c.b16 %v953, %v950
  %v981 = vpack.c.b16 %v957, %v954
  %v982 = vpack.c.b16 %v958, %v955
  %v983 = vpack.c.b16 %v959, %v956
  %1008 = vmatprep.subr.bf16.mxu0 %v961
  %1009 = vmatpush1.bf16.msra.mxu0 %v960
  %1010 = vmatprep.subr.bf16.mxu0 %v964
  %1011 = vmatpush1.bf16.msra.mxu0 %v963
  %1012 = vmatprep.subr.bf16.mxu0 %v967
  %1013 = vmatpush1.bf16.msra.mxu0 %v966
  %1014 = vmatprep.subr.bf16.mxu0 %v970
  %1015 = vmatpush1.bf16.msra.mxu0 %v969
  %1016 = vmatprep.subr.bf16.mxu0 %v973
  %1017 = vmatpush1.bf16.msra.mxu0 %v972
  %1018 = vmatprep.subr.bf16.mxu0 %v976
  %1019 = vmatpush1.bf16.msra.mxu0 %v975
  %1020 = vmatprep.subr.bf16.mxu0 %v979
  %1021 = vmatpush1.bf16.msra.mxu0 %v978
  %1022 = vmatprep.subr.bf16.mxu0 %v982
  %1023 = vmatpush1.bf16.msra.mxu0 %v981
  %1024 = vmatprep.subr.bf16.mxu0 0
  %1025 = vmatpush1.bf16.msra.mxu0 0
  %1026 = vmatprep.subr.bf16.mxu0 0
  %1027 = vmatpush1.bf16.msra.mxu0 0
  %1028 = vmatprep.subr.bf16.mxu0 0
  %1029 = vmatpush1.bf16.msra.mxu0 0
  %1030 = vmatprep.subr.bf16.mxu0 0
  %1031 = vmatpush1.bf16.msra.mxu0 0
  %1032 = vmatprep.subr.bf16.mxu0 0
  %1033 = vmatpush1.bf16.msra.mxu0 0
  %1034 = vmatprep.subr.bf16.mxu0 0
  %1035 = vmatpush1.bf16.msra.mxu0 0
  %1036 = vmatprep.subr.bf16.mxu0 0
  %1037 = vmatpush1.bf16.msra.mxu0 0
  %1038 = vmatprep.subr.bf16.mxu0 0
  %1039 = vmatpush1.bf16.msra.mxu0 0
  %1040 = vmatprep.mubr.bf16.mxu0 0
  %1041 = vmatmul.mubr.bf16.gmra.mrb[0].mxu0 %v830
  %v1042 = vpop.f32.mrb[0].mxu0
  %v1043 = vadd.f32 %v868, %v1042
  %v1044 = vpop.f32.mrb[0].mxu0
  %v1045 = vadd.f32 %v872, %v1044
  %v1046 = vpop.f32.mrb[0].mxu0
  %v1047 = vpop.f32.mrb[0].mxu0
  %1048 = vdwg.mxu0
  %1049 = vmatprep.subr.bf16.mxu0 0
  %1050 = vmatpush1.bf16.msra.mxu0 %v962
  %1051 = vmatprep.subr.bf16.mxu0 0
  %1052 = vmatpush1.bf16.msra.mxu0 %v965
  %1053 = vmatprep.subr.bf16.mxu0 0
  %1054 = vmatpush1.bf16.msra.mxu0 %v968
  %1055 = vmatprep.subr.bf16.mxu0 0
  %1056 = vmatpush1.bf16.msra.mxu0 %v971
  %1057 = vmatprep.subr.bf16.mxu0 0
  %1058 = vmatpush1.bf16.msra.mxu0 %v974
  %1059 = vmatprep.subr.bf16.mxu0 0
  %1060 = vmatpush1.bf16.msra.mxu0 %v977
  %1061 = vmatprep.subr.bf16.mxu0 0
  %1062 = vmatpush1.bf16.msra.mxu0 %v980
  %1063 = vmatprep.subr.bf16.mxu0 0
  %1064 = vmatpush1.bf16.msra.mxu0 %v983
  %1065 = vmatprep.subr.bf16.mxu0 0
  %1066 = vmatpush1.bf16.msra.mxu0 0
  %1067 = vmatprep.subr.bf16.mxu0 0
  %1068 = vmatpush1.bf16.msra.mxu0 0
  %1069 = vmatprep.subr.bf16.mxu0 0
  %1070 = vmatpush1.bf16.msra.mxu0 0
  %1071 = vmatprep.subr.bf16.mxu0 0
  %1072 = vmatpush1.bf16.msra.mxu0 0
  %1073 = vmatprep.subr.bf16.mxu0 0
  %1074 = vmatpush1.bf16.msra.mxu0 0
  %1075 = vmatprep.subr.bf16.mxu0 0
  %1076 = vmatpush1.bf16.msra.mxu0 0
  %1077 = vmatprep.subr.bf16.mxu0 0
  %1078 = vmatpush1.bf16.msra.mxu0 0
  %1079 = vmatprep.subr.bf16.mxu0 0
  %1080 = vmatpush1.bf16.msra.mxu0 0
  %1081 = vmatprep.mubr.bf16.mxu0 0
  %1082 = vmatmul.mubr.bf16.gmra.mrb[0].mxu0 %v830
  %v1083 = vpop.f32.mrb[0].mxu0
  %v1084 = vadd.f32 %v876, %v1083
  %v1085 = vpop.f32.mrb[0].mxu0
  %v1086 = vpop.f32.mrb[0].mxu0
  %v1087 = vpop.f32.mrb[0].mxu0
  %1088 = vdwg.mxu0
  %v1089 = vadd.f32 %v827, %v1043
  %v1090 = vxor.u32 %v1089, 2147483648
  %v1091 = vmul.f32 %v1090, 1.442695
  %v1092 = vpow.pop %v1091
  %v1093 = vadd.f32 %v1092, 1.0
  %v1094 = vrcp.pop %v1093
  %v1095 = vmul.f32 1.0, %v1094
  %v1096 = vadd.f32 %v828, %v1045
  %v1097 = vxor.u32 %v1096, 2147483648
  %v1098 = vmul.f32 %v1097, 1.442695
  %v1099 = vpow.pop %v1098
  %v1100 = vadd.f32 %v1099, 1.0
  %v1101 = vrcp.pop %v1100
  %v1102 = vmul.f32 1.0, %v1101
  %v1103 = vmul.f32 %v1095, %v1084
  %v1104 = vadd.f32 %v829, %v1103
  %v1105 = vtanh.pop %v1104
  %v1106 = vsub.f32 1.0, %v1102
  %v1107 = vmul.f32 %v1106, %v1105
  %v1108 = vmul.f32 %v1102, %v823
  %v1109 = vadd.f32 %v1107, %v1108
  %s1110 = scalar_lea.vmem [#allocation3], 16
  %1111 = vst [vmem:[%s1110] sm:$0xff] %v1109
  %s1112 = scalar_lea.vmem [#allocation2], 72
  %v1113 = vld [vmem:[%s1112] sm:$0xff]
  %v1114 = vld [vmem:[%s1112 + $0x8] sm:$0xff]
  %v1115 = vld [vmem:[%s1112 + $0x10] sm:$0xff]
  %v1116 = vpack.c.bf16 %v1109, %v1109
  %v1117 = vld [vmem:[%s2] sm:$0xff]
  %v1118 = vld [vmem:[%s2 + $0x8] sm:$0xf]
  %v1119 = vld [vmem:[%s2 + $0xc] sm:$0xff]
  %v1120 = vld [vmem:[%s2 + $0x14] sm:$0xf]
  %v1121 = vld [vmem:[%s2 + $0x18] sm:$0xff]
  %v1122 = vld [vmem:[%s2 + $0x20] sm:$0xf]
  %v1123 = vld [vmem:[%s2 + $0x24] sm:$0xff]
  %v1124 = vld [vmem:[%s2 + $0x2c] sm:$0xf]
  %v1125 = vld [vmem:[%s2 + $0x30] sm:$0xff]
  %v1126 = vld [vmem:[%s2 + $0x38] sm:$0xf]
  %v1127 = vld [vmem:[%s2 + $0x3c] sm:$0xff]
  %v1128 = vld [vmem:[%s2 + $0x44] sm:$0xf]
  %v1129 = vld [vmem:[%s2 + $0x48] sm:$0xff]
  %v1130 = vld [vmem:[%s2 + $0x50] sm:$0xf]
  %v1131 = vld [vmem:[%s2 + $0x54] sm:$0xff]
  %v1132 = vld [vmem:[%s2 + $0x5c] sm:$0xf]
  %v1133 = vld [vmem:[%s2 + $0x60] sm:$0xff]
  %v1134 = vld [vmem:[%s2 + $0x68] sm:$0xf]
  %v1135 = vld [vmem:[%s2 + $0x6c] sm:$0xff]
  %v1136 = vld [vmem:[%s2 + $0x74] sm:$0xf]
  %v1137 = vld [vmem:[%s2 + $0x78] sm:$0xff]
  %v1138 = vld [vmem:[%s2 + $0x80] sm:$0xf]
  %v1139 = vld [vmem:[%s2 + $0x84] sm:$0xff]
  %v1140 = vld [vmem:[%s2 + $0x8c] sm:$0xf]
  %v1141 = vld [vmem:[%s2 + $0x90] sm:$0xff]
  %v1142 = vld [vmem:[%s2 + $0x98] sm:$0xf]
  %v1143 = vld [vmem:[%s2 + $0x9c] sm:$0xff]
  %v1144 = vld [vmem:[%s2 + $0xa4] sm:$0xf]
  %v1145 = vld [vmem:[%s2 + $0xa8] sm:$0xff]
  %v1146 = vld [vmem:[%s2 + $0xb0] sm:$0xf]
  %v1147 = vld [vmem:[%s2 + $0xb4] sm:$0xff]
  %v1148 = vld [vmem:[%s2 + $0xbc] sm:$0xf]
  %v1149 = vld [vmem:[%s4] sm:$0x7]
  %v1151 = vlaneseq
  %v1152 = vshrl.u32 %v1151, 7
  %v1153 = vsub.s32 0, %v1152
  %v1154 = vrot.slane %v1149, %v1153
  %v1155 = vlaneseq
  %v1156 = vshrl.u32 %v1155, 7
  %v1157 = vsub.s32 1, %v1156
  %v1158 = vrot.slane %v1149, %v1157
  %v1159 = vlaneseq
  %v1160 = vshrl.u32 %v1159, 7
  %v1161 = vsub.s32 2, %v1160
  %v1162 = vrot.slane %v1149, %v1161
  %v1198 = vunpack.c.l.b16 %v1117
  %v1199 = vunpack.c.h.b16 %v1117
  %v1200 = vunpack.c.l.b16 %v1118
  %v1201 = vunpack.c.l.b16 %v1119
  %v1202 = vunpack.c.h.b16 %v1119
  %v1203 = vunpack.c.l.b16 %v1120
  %v1204 = vunpack.c.l.b16 %v1121
  %v1205 = vunpack.c.h.b16 %v1121
  %v1206 = vunpack.c.l.b16 %v1122
  %v1207 = vunpack.c.l.b16 %v1123
  %v1208 = vunpack.c.h.b16 %v1123
  %v1209 = vunpack.c.l.b16 %v1124
  %v1210 = vunpack.c.l.b16 %v1125
  %v1211 = vunpack.c.h.b16 %v1125
  %v1212 = vunpack.c.l.b16 %v1126
  %v1213 = vunpack.c.l.b16 %v1127
  %v1214 = vunpack.c.h.b16 %v1127
  %v1215 = vunpack.c.l.b16 %v1128
  %v1216 = vunpack.c.l.b16 %v1129
  %v1217 = vunpack.c.h.b16 %v1129
  %v1218 = vunpack.c.l.b16 %v1130
  %v1219 = vunpack.c.l.b16 %v1131
  %v1220 = vunpack.c.h.b16 %v1131
  %v1221 = vunpack.c.l.b16 %v1132
  %v1222 = vunpack.c.l.b16 %v1133
  %v1223 = vunpack.c.h.b16 %v1133
  %v1224 = vunpack.c.l.b16 %v1134
  %v1225 = vunpack.c.l.b16 %v1135
  %v1226 = vunpack.c.h.b16 %v1135
  %v1227 = vunpack.c.l.b16 %v1136
  %v1228 = vunpack.c.l.b16 %v1137
  %v1229 = vunpack.c.h.b16 %v1137
  %v1230 = vunpack.c.l.b16 %v1138
  %v1231 = vunpack.c.l.b16 %v1139
  %v1232 = vunpack.c.h.b16 %v1139
  %v1233 = vunpack.c.l.b16 %v1140
  %v1234 = vunpack.c.l.b16 %v1141
  %v1235 = vunpack.c.h.b16 %v1141
  %v1236 = vunpack.c.l.b16 %v1142
  %v1237 = vunpack.c.l.b16 %v1143
  %v1238 = vunpack.c.h.b16 %v1143
  %v1239 = vunpack.c.l.b16 %v1144
  %v1240 = vunpack.c.l.b16 %v1145
  %v1241 = vunpack.c.h.b16 %v1145
  %v1242 = vunpack.c.l.b16 %v1146
  %v1243 = vunpack.c.l.b16 %v1147
  %v1244 = vunpack.c.h.b16 %v1147
  %v1245 = vunpack.c.l.b16 %v1148
  %v1246 = vpack.c.b16 %v1201, %v1198
  %v1247 = vpack.c.b16 %v1202, %v1199
  %v1248 = vpack.c.b16 %v1203, %v1200
  %v1249 = vpack.c.b16 %v1207, %v1204
  %v1250 = vpack.c.b16 %v1208, %v1205
  %v1251 = vpack.c.b16 %v1209, %v1206
  %v1252 = vpack.c.b16 %v1213, %v1210
  %v1253 = vpack.c.b16 %v1214, %v1211
  %v1254 = vpack.c.b16 %v1215, %v1212
  %v1255 = vpack.c.b16 %v1219, %v1216
  %v1256 = vpack.c.b16 %v1220, %v1217
  %v1257 = vpack.c.b16 %v1221, %v1218
  %v1258 = vpack.c.b16 %v1225, %v1222
  %v1259 = vpack.c.b16 %v1226, %v1223
  %v1260 = vpack.c.b16 %v1227, %v1224
  %v1261 = vpack.c.b16 %v1231, %v1228
  %v1262 = vpack.c.b16 %v1232, %v1229
  %v1263 = vpack.c.b16 %v1233, %v1230
  %v1264 = vpack.c.b16 %v1237, %v1234
  %v1265 = vpack.c.b16 %v1238, %v1235
  %v1266 = vpack.c.b16 %v1239, %v1236
  %v1267 = vpack.c.b16 %v1243, %v1240
  %v1268 = vpack.c.b16 %v1244, %v1241
  %v1269 = vpack.c.b16 %v1245, %v1242
  %1294 = vmatprep.subr.bf16.mxu0 %v1247
  %1295 = vmatpush1.bf16.msra.mxu0 %v1246
  %1296 = vmatprep.subr.bf16.mxu0 %v1250
  %1297 = vmatpush1.bf16.msra.mxu0 %v1249
  %1298 = vmatprep.subr.bf16.mxu0 %v1253
  %1299 = vmatpush1.bf16.msra.mxu0 %v1252
  %1300 = vmatprep.subr.bf16.mxu0 %v1256
  %1301 = vmatpush1.bf16.msra.mxu0 %v1255
  %1302 = vmatprep.subr.bf16.mxu0 %v1259
  %1303 = vmatpush1.bf16.msra.mxu0 %v1258
  %1304 = vmatprep.subr.bf16.mxu0 %v1262
  %1305 = vmatpush1.bf16.msra.mxu0 %v1261
  %1306 = vmatprep.subr.bf16.mxu0 %v1265
  %1307 = vmatpush1.bf16.msra.mxu0 %v1264
  %1308 = vmatprep.subr.bf16.mxu0 %v1268
  %1309 = vmatpush1.bf16.msra.mxu0 %v1267
  %1310 = vmatprep.subr.bf16.mxu0 0
  %1311 = vmatpush1.bf16.msra.mxu0 0
  %1312 = vmatprep.subr.bf16.mxu0 0
  %1313 = vmatpush1.bf16.msra.mxu0 0
  %1314 = vmatprep.subr.bf16.mxu0 0
  %1315 = vmatpush1.bf16.msra.mxu0 0
  %1316 = vmatprep.subr.bf16.mxu0 0
  %1317 = vmatpush1.bf16.msra.mxu0 0
  %1318 = vmatprep.subr.bf16.mxu0 0
  %1319 = vmatpush1.bf16.msra.mxu0 0
  %1320 = vmatprep.subr.bf16.mxu0 0
  %1321 = vmatpush1.bf16.msra.mxu0 0
  %1322 = vmatprep.subr.bf16.mxu0 0
  %1323 = vmatpush1.bf16.msra.mxu0 0
  %1324 = vmatprep.subr.bf16.mxu0 0
  %1325 = vmatpush1.bf16.msra.mxu0 0
  %1326 = vmatprep.mubr.bf16.mxu0 0
  %1327 = vmatmul.mubr.bf16.gmra.mrb[0].mxu0 %v1116
  %v1328 = vpop.f32.mrb[0].mxu0
  %v1329 = vadd.f32 %v1154, %v1328
  %v1330 = vpop.f32.mrb[0].mxu0
  %v1331 = vadd.f32 %v1158, %v1330
  %v1332 = vpop.f32.mrb[0].mxu0
  %v1333 = vpop.f32.mrb[0].mxu0
  %1334 = vdwg.mxu0
  %1335 = vmatprep.subr.bf16.mxu0 0
  %1336 = vmatpush1.bf16.msra.mxu0 %v1248
  %1337 = vmatprep.subr.bf16.mxu0 0
  %1338 = vmatpush1.bf16.msra.mxu0 %v1251
  %1339 = vmatprep.subr.bf16.mxu0 0
  %1340 = vmatpush1.bf16.msra.mxu0 %v1254
  %1341 = vmatprep.subr.bf16.mxu0 0
  %1342 = vmatpush1.bf16.msra.mxu0 %v1257
  %1343 = vmatprep.subr.bf16.mxu0 0
  %1344 = vmatpush1.bf16.msra.mxu0 %v1260
  %1345 = vmatprep.subr.bf16.mxu0 0
  %1346 = vmatpush1.bf16.msra.mxu0 %v1263
  %1347 = vmatprep.subr.bf16.mxu0 0
  %1348 = vmatpush1.bf16.msra.mxu0 %v1266
  %1349 = vmatprep.subr.bf16.mxu0 0
  %1350 = vmatpush1.bf16.msra.mxu0 %v1269
  %1351 = vmatprep.subr.bf16.mxu0 0
  %1352 = vmatpush1.bf16.msra.mxu0 0
  %1353 = vmatprep.subr.bf16.mxu0 0
  %1354 = vmatpush1.bf16.msra.mxu0 0
  %1355 = vmatprep.subr.bf16.mxu0 0
  %1356 = vmatpush1.bf16.msra.mxu0 0
  %1357 = vmatprep.subr.bf16.mxu0 0
  %1358 = vmatpush1.bf16.msra.mxu0 0
  %1359 = vmatprep.subr.bf16.mxu0 0
  %1360 = vmatpush1.bf16.msra.mxu0 0
  %1361 = vmatprep.subr.bf16.mxu0 0
  %1362 = vmatpush1.bf16.msra.mxu0 0
  %1363 = vmatprep.subr.bf16.mxu0 0
  %1364 = vmatpush1.bf16.msra.mxu0 0
  %1365 = vmatprep.subr.bf16.mxu0 0
  %1366 = vmatpush1.bf16.msra.mxu0 0
  %1367 = vmatprep.mubr.bf16.mxu0 0
  %1368 = vmatmul.mubr.bf16.gmra.mrb[0].mxu0 %v1116
  %v1369 = vpop.f32.mrb[0].mxu0
  %v1370 = vadd.f32 %v1162, %v1369
  %v1371 = vpop.f32.mrb[0].mxu0
  %v1372 = vpop.f32.mrb[0].mxu0
  %v1373 = vpop.f32.mrb[0].mxu0
  %1374 = vdwg.mxu0
  %v1375 = vadd.f32 %v1113, %v1329
  %v1376 = vxor.u32 %v1375, 2147483648
  %v1377 = vmul.f32 %v1376, 1.442695
  %v1378 = vpow.pop %v1377
  %v1379 = vadd.f32 %v1378, 1.0
  %v1380 = vrcp.pop %v1379
  %v1381 = vmul.f32 1.0, %v1380
  %v1382 = vadd.f32 %v1114, %v1331
  %v1383 = vxor.u32 %v1382, 2147483648
  %v1384 = vmul.f32 %v1383, 1.442695
  %v1385 = vpow.pop %v1384
  %v1386 = vadd.f32 %v1385, 1.0
  %v1387 = vrcp.pop %v1386
  %v1388 = vmul.f32 1.0, %v1387
  %v1389 = vmul.f32 %v1381, %v1370
  %v1390 = vadd.f32 %v1115, %v1389
  %v1391 = vtanh.pop %v1390
  %v1392 = vsub.f32 1.0, %v1388
  %v1393 = vmul.f32 %v1392, %v1391
  %v1394 = vmul.f32 %v1388, %v1109
  %v1395 = vadd.f32 %v1393, %v1394
  %s1396 = scalar_lea.vmem [#allocation3], 24
  %1397 = vst [vmem:[%s1396] sm:$0xff] %v1395
  %s1398 = scalar_lea.vmem [#allocation2], 96
  %v1399 = vld [vmem:[%s1398] sm:$0xff]
  %v1400 = vld [vmem:[%s1398 + $0x8] sm:$0xff]
  %v1401 = vld [vmem:[%s1398 + $0x10] sm:$0xff]
  %v1402 = vpack.c.bf16 %v1395, %v1395
  %v1403 = vld [vmem:[%s2] sm:$0xff]
  %v1404 = vld [vmem:[%s2 + $0x8] sm:$0xf]
  %v1405 = vld [vmem:[%s2 + $0xc] sm:$0xff]
  %v1406 = vld [vmem:[%s2 + $0x14] sm:$0xf]
  %v1407 = vld [vmem:[%s2 + $0x18] sm:$0xff]
  %v1408 = vld [vmem:[%s2 + $0x20] sm:$0xf]
  %v1409 = vld [vmem:[%s2 + $0x24] sm:$0xff]
  %v1410 = vld [vmem:[%s2 + $0x2c] sm:$0xf]
  %v1411 = vld [vmem:[%s2 + $0x30] sm:$0xff]
  %v1412 = vld [vmem:[%s2 + $0x38] sm:$0xf]
  %v1413 = vld [vmem:[%s2 + $0x3c] sm:$0xff]
  %v1414 = vld [vmem:[%s2 + $0x44] sm:$0xf]
  %v1415 = vld [vmem:[%s2 + $0x48] sm:$0xff]
  %v1416 = vld [vmem:[%s2 + $0x50] sm:$0xf]
  %v1417 = vld [vmem:[%s2 + $0x54] sm:$0xff]
  %v1418 = vld [vmem:[%s2 + $0x5c] sm:$0xf]
  %v1419 = vld [vmem:[%s2 + $0x60] sm:$0xff]
  %v1420 = vld [vmem:[%s2 + $0x68] sm:$0xf]
  %v1421 = vld [vmem:[%s2 + $0x6c] sm:$0xff]
  %v1422 = vld [vmem:[%s2 + $0x74] sm:$0xf]
  %v1423 = vld [vmem:[%s2 + $0x78] sm:$0xff]
  %v1424 = vld [vmem:[%s2 + $0x80] sm:$0xf]
  %v1425 = vld [vmem:[%s2 + $0x84] sm:$0xff]
  %v1426 = vld [vmem:[%s2 + $0x8c] sm:$0xf]
  %v1427 = vld [vmem:[%s2 + $0x90] sm:$0xff]
  %v1428 = vld [vmem:[%s2 + $0x98] sm:$0xf]
  %v1429 = vld [vmem:[%s2 + $0x9c] sm:$0xff]
  %v1430 = vld [vmem:[%s2 + $0xa4] sm:$0xf]
  %v1431 = vld [vmem:[%s2 + $0xa8] sm:$0xff]
  %v1432 = vld [vmem:[%s2 + $0xb0] sm:$0xf]
  %v1433 = vld [vmem:[%s2 + $0xb4] sm:$0xff]
  %v1434 = vld [vmem:[%s2 + $0xbc] sm:$0xf]
  %v1435 = vld [vmem:[%s4] sm:$0x7]
  %v1437 = vlaneseq
  %v1438 = vshrl.u32 %v1437, 7
  %v1439 = vsub.s32 0, %v1438
  %v1440 = vrot.slane %v1435, %v1439
  %v1441 = vlaneseq
  %v1442 = vshrl.u32 %v1441, 7
  %v1443 = vsub.s32 1, %v1442
  %v1444 = vrot.slane %v1435, %v1443
  %v1445 = vlaneseq
  %v1446 = vshrl.u32 %v1445, 7
  %v1447 = vsub.s32 2, %v1446
  %v1448 = vrot.slane %v1435, %v1447
  %v1484 = vunpack.c.l.b16 %v1403
  %v1485 = vunpack.c.h.b16 %v1403
  %v1486 = vunpack.c.l.b16 %v1404
  %v1487 = vunpack.c.l.b16 %v1405
  %v1488 = vunpack.c.h.b16 %v1405
  %v1489 = vunpack.c.l.b16 %v1406
  %v1490 = vunpack.c.l.b16 %v1407
  %v1491 = vunpack.c.h.b16 %v1407
  %v1492 = vunpack.c.l.b16 %v1408
  %v1493 = vunpack.c.l.b16 %v1409
  %v1494 = vunpack.c.h.b16 %v1409
  %v1495 = vunpack.c.l.b16 %v1410
  %v1496 = vunpack.c.l.b16 %v1411
  %v1497 = vunpack.c.h.b16 %v1411
  %v1498 = vunpack.c.l.b16 %v1412
  %v1499 = vunpack.c.l.b16 %v1413
  %v1500 = vunpack.c.h.b16 %v1413
  %v1501 = vunpack.c.l.b16 %v1414
  %v1502 = vunpack.c.l.b16 %v1415
  %v1503 = vunpack.c.h.b16 %v1415
  %v1504 = vunpack.c.l.b16 %v1416
  %v1505 = vunpack.c.l.b16 %v1417
  %v1506 = vunpack.c.h.b16 %v1417
  %v1507 = vunpack.c.l.b16 %v1418
  %v1508 = vunpack.c.l.b16 %v1419
  %v1509 = vunpack.c.h.b16 %v1419
  %v1510 = vunpack.c.l.b16 %v1420
  %v1511 = vunpack.c.l.b16 %v1421
  %v1512 = vunpack.c.h.b16 %v1421
  %v1513 = vunpack.c.l.b16 %v1422
  %v1514 = vunpack.c.l.b16 %v1423
  %v1515 = vunpack.c.h.b16 %v1423
  %v1516 = vunpack.c.l.b16 %v1424
  %v1517 = vunpack.c.l.b16 %v1425
  %v1518 = vunpack.c.h.b16 %v1425
  %v1519 = vunpack.c.l.b16 %v1426
  %v1520 = vunpack.c.l.b16 %v1427
  %v1521 = vunpack.c.h.b16 %v1427
  %v1522 = vunpack.c.l.b16 %v1428
  %v1523 = vunpack.c.l.b16 %v1429
  %v1524 = vunpack.c.h.b16 %v1429
  %v1525 = vunpack.c.l.b16 %v1430
  %v1526 = vunpack.c.l.b16 %v1431
  %v1527 = vunpack.c.h.b16 %v1431
  %v1528 = vunpack.c.l.b16 %v1432
  %v1529 = vunpack.c.l.b16 %v1433
  %v1530 = vunpack.c.h.b16 %v1433
  %v1531 = vunpack.c.l.b16 %v1434
  %v1532 = vpack.c.b16 %v1487, %v1484
  %v1533 = vpack.c.b16 %v1488, %v1485
  %v1534 = vpack.c.b16 %v1489, %v1486
  %v1535 = vpack.c.b16 %v1493, %v1490
  %v1536 = vpack.c.b16 %v1494, %v1491
  %v1537 = vpack.c.b16 %v1495, %v1492
  %v1538 = vpack.c.b16 %v1499, %v1496
  %v1539 = vpack.c.b16 %v1500, %v1497
  %v1540 = vpack.c.b16 %v1501, %v1498
  %v1541 = vpack.c.b16 %v1505, %v1502
  %v1542 = vpack.c.b16 %v1506, %v1503
  %v1543 = vpack.c.b16 %v1507, %v1504
  %v1544 = vpack.c.b16 %v1511, %v1508
  %v1545 = vpack.c.b16 %v1512, %v1509
  %v1546 = vpack.c.b16 %v1513, %v1510
  %v1547 = vpack.c.b16 %v1517, %v1514
  %v1548 = vpack.c.b16 %v1518, %v1515
  %v1549 = vpack.c.b16 %v1519, %v1516
  %v1550 = vpack.c.b16 %v1523, %v1520
  %v1551 = vpack.c.b16 %v1524, %v1521
  %v1552 = vpack.c.b16 %v1525, %v1522
  %v1553 = vpack.c.b16 %v1529, %v1526
  %v1554 = vpack.c.b16 %v1530, %v1527
  %v1555 = vpack.c.b16 %v1531, %v1528
  %1580 = vmatprep.subr.bf16.mxu0 %v1533
  %1581 = vmatpush1.bf16.msra.mxu0 %v1532
  %1582 = vmatprep.subr.bf16.mxu0 %v1536
  %1583 = vmatpush1.bf16.msra.mxu0 %v1535
  %1584 = vmatprep.subr.bf16.mxu0 %v1539
  %1585 = vmatpush1.bf16.msra.mxu0 %v1538
  %1586 = vmatprep.subr.bf16.mxu0 %v1542
  %1587 = vmatpush1.bf16.msra.mxu0 %v1541
  %1588 = vmatprep.subr.bf16.mxu0 %v1545
  %1589 = vmatpush1.bf16.msra.mxu0 %v1544
  %1590 = vmatprep.subr.bf16.mxu0 %v1548
  %1591 = vmatpush1.bf16.msra.mxu0 %v1547
  %1592 = vmatprep.subr.bf16.mxu0 %v1551
  %1593 = vmatpush1.bf16.msra.mxu0 %v1550
  %1594 = vmatprep.subr.bf16.mxu0 %v1554
  %1595 = vmatpush1.bf16.msra.mxu0 %v1553
  %1596 = vmatprep.subr.bf16.mxu0 0
  %1597 = vmatpush1.bf16.msra.mxu0 0
  %1598 = vmatprep.subr.bf16.mxu0 0
  %1599 = vmatpush1.bf16.msra.mxu0 0
  %1600 = vmatprep.subr.bf16.mxu0 0
  %1601 = vmatpush1.bf16.msra.mxu0 0
  %1602 = vmatprep.subr.bf16.mxu0 0
  %1603 = vmatpush1.bf16.msra.mxu0 0
  %1604 = vmatprep.subr.bf16.mxu0 0
  %1605 = vmatpush1.bf16.msra.mxu0 0
  %1606 = vmatprep.subr.bf16.mxu0 0
  %1607 = vmatpush1.bf16.msra.mxu0 0
  %1608 = vmatprep.subr.bf16.mxu0 0
  %1609 = vmatpush1.bf16.msra.mxu0 0
  %1610 = vmatprep.subr.bf16.mxu0 0
  %1611 = vmatpush1.bf16.msra.mxu0 0
  %1612 = vmatprep.mubr.bf16.mxu0 0
  %1613 = vmatmul.mubr.bf16.gmra.mrb[0].mxu0 %v1402
  %v1614 = vpop.f32.mrb[0].mxu0
  %v1615 = vadd.f32 %v1440, %v1614
  %v1616 = vpop.f32.mrb[0].mxu0
  %v1617 = vadd.f32 %v1444, %v1616
  %v1618 = vpop.f32.mrb[0].mxu0
  %v1619 = vpop.f32.mrb[0].mxu0
  %1620 = vdwg.mxu0
  %1621 = vmatprep.subr.bf16.mxu0 0
  %1622 = vmatpush1.bf16.msra.mxu0 %v1534
  %1623 = vmatprep.subr.bf16.mxu0 0
  %1624 = vmatpush1.bf16.msra.mxu0 %v1537
  %1625 = vmatprep.subr.bf16.mxu0 0
  %1626 = vmatpush1.bf16.msra.mxu0 %v1540
  %1627 = vmatprep.subr.bf16.mxu0 0
  %1628 = vmatpush1.bf16.msra.mxu0 %v1543
  %1629 = vmatprep.subr.bf16.mxu0 0
  %1630 = vmatpush1.bf16.msra.mxu0 %v1546
  %1631 = vmatprep.subr.bf16.mxu0 0
  %1632 = vmatpush1.bf16.msra.mxu0 %v1549
  %1633 = vmatprep.subr.bf16.mxu0 0
  %1634 = vmatpush1.bf16.msra.mxu0 %v1552
  %1635 = vmatprep.subr.bf16.mxu0 0
  %1636 = vmatpush1.bf16.msra.mxu0 %v1555
  %1637 = vmatprep.subr.bf16.mxu0 0
  %1638 = vmatpush1.bf16.msra.mxu0 0
  %1639 = vmatprep.subr.bf16.mxu0 0
  %1640 = vmatpush1.bf16.msra.mxu0 0
  %1641 = vmatprep.subr.bf16.mxu0 0
  %1642 = vmatpush1.bf16.msra.mxu0 0
  %1643 = vmatprep.subr.bf16.mxu0 0
  %1644 = vmatpush1.bf16.msra.mxu0 0
  %1645 = vmatprep.subr.bf16.mxu0 0
  %1646 = vmatpush1.bf16.msra.mxu0 0
  %1647 = vmatprep.subr.bf16.mxu0 0
  %1648 = vmatpush1.bf16.msra.mxu0 0
  %1649 = vmatprep.subr.bf16.mxu0 0
  %1650 = vmatpush1.bf16.msra.mxu0 0
  %1651 = vmatprep.subr.bf16.mxu0 0
  %1652 = vmatpush1.bf16.msra.mxu0 0
  %1653 = vmatprep.mubr.bf16.mxu0 0
  %1654 = vmatmul.mubr.bf16.gmra.mrb[0].mxu0 %v1402
  %v1655 = vpop.f32.mrb[0].mxu0
  %v1656 = vadd.f32 %v1448, %v1655
  %v1657 = vpop.f32.mrb[0].mxu0
  %v1658 = vpop.f32.mrb[0].mxu0
  %v1659 = vpop.f32.mrb[0].mxu0
  %1660 = vdwg.mxu0
  %v1661 = vadd.f32 %v1399, %v1615
  %v1662 = vxor.u32 %v1661, 2147483648
  %v1663 = vmul.f32 %v1662, 1.442695
  %v1664 = vpow.pop %v1663
  %v1665 = vadd.f32 %v1664, 1.0
  %v1666 = vrcp.pop %v1665
  %v1667 = vmul.f32 1.0, %v1666
  %v1668 = vadd.f32 %v1400, %v1617
  %v1669 = vxor.u32 %v1668, 2147483648
  %v1670 = vmul.f32 %v1669, 1.442695
  %v1671 = vpow.pop %v1670
  %v1672 = vadd.f32 %v1671, 1.0
  %v1673 = vrcp.pop %v1672
  %v1674 = vmul.f32 1.0, %v1673
  %v1675 = vmul.f32 %v1667, %v1656
  %v1676 = vadd.f32 %v1401, %v1675
  %v1677 = vtanh.pop %v1676
  %v1678 = vsub.f32 1.0, %v1674
  %v1679 = vmul.f32 %v1678, %v1677
  %v1680 = vmul.f32 %v1674, %v1395
  %v1681 = vadd.f32 %v1679, %v1680
  %s1682 = scalar_lea.vmem [#allocation3], 32
  %1683 = vst [vmem:[%s1682] sm:$0xff] %v1681
  %s1684 = scalar_lea.vmem [#allocation2], 120
  %v1685 = vld [vmem:[%s1684] sm:$0xff]
  %v1686 = vld [vmem:[%s1684 + $0x8] sm:$0xff]
  %v1687 = vld [vmem:[%s1684 + $0x10] sm:$0xff]
  %v1688 = vpack.c.bf16 %v1681, %v1681
  %v1689 = vld [vmem:[%s2] sm:$0xff]
  %v1690 = vld [vmem:[%s2 + $0x8] sm:$0xf]
  %v1691 = vld [vmem:[%s2 + $0xc] sm:$0xff]
  %v1692 = vld [vmem:[%s2 + $0x14] sm:$0xf]
  %v1693 = vld [vmem:[%s2 + $0x18] sm:$0xff]
  %v1694 = vld [vmem:[%s2 + $0x20] sm:$0xf]
  %v1695 = vld [vmem:[%s2 + $0x24] sm:$0xff]
  %v1696 = vld [vmem:[%s2 + $0x2c] sm:$0xf]
  %v1697 = vld [vmem:[%s2 + $0x30] sm:$0xff]
  %v1698 = vld [vmem:[%s2 + $0x38] sm:$0xf]
  %v1699 = vld [vmem:[%s2 + $0x3c] sm:$0xff]
  %v1700 = vld [vmem:[%s2 + $0x44] sm:$0xf]
  %v1701 = vld [vmem:[%s2 + $0x48] sm:$0xff]
  %v1702 = vld [vmem:[%s2 + $0x50] sm:$0xf]
  %v1703 = vld [vmem:[%s2 + $0x54] sm:$0xff]
  %v1704 = vld [vmem:[%s2 + $0x5c] sm:$0xf]
  %v1705 = vld [vmem:[%s2 + $0x60] sm:$0xff]
  %v1706 = vld [vmem:[%s2 + $0x68] sm:$0xf]
  %v1707 = vld [vmem:[%s2 + $0x6c] sm:$0xff]
  %v1708 = vld [vmem:[%s2 + $0x74] sm:$0xf]
  %v1709 = vld [vmem:[%s2 + $0x78] sm:$0xff]
  %v1710 = vld [vmem:[%s2 + $0x80] sm:$0xf]
  %v1711 = vld [vmem:[%s2 + $0x84] sm:$0xff]
  %v1712 = vld [vmem:[%s2 + $0x8c] sm:$0xf]
  %v1713 = vld [vmem:[%s2 + $0x90] sm:$0xff]
  %v1714 = vld [vmem:[%s2 + $0x98] sm:$0xf]
  %v1715 = vld [vmem:[%s2 + $0x9c] sm:$0xff]
  %v1716 = vld [vmem:[%s2 + $0xa4] sm:$0xf]
  %v1717 = vld [vmem:[%s2 + $0xa8] sm:$0xff]
  %v1718 = vld [vmem:[%s2 + $0xb0] sm:$0xf]
  %v1719 = vld [vmem:[%s2 + $0xb4] sm:$0xff]
  %v1720 = vld [vmem:[%s2 + $0xbc] sm:$0xf]
  %v1721 = vld [vmem:[%s4] sm:$0x7]
  %v1723 = vlaneseq
  %v1724 = vshrl.u32 %v1723, 7
  %v1725 = vsub.s32 0, %v1724
  %v1726 = vrot.slane %v1721, %v1725
  %v1727 = vlaneseq
  %v1728 = vshrl.u32 %v1727, 7
  %v1729 = vsub.s32 1, %v1728
  %v1730 = vrot.slane %v1721, %v1729
  %v1731 = vlaneseq
  %v1732 = vshrl.u32 %v1731, 7
  %v1733 = vsub.s32 2, %v1732
  %v1734 = vrot.slane %v1721, %v1733
  %v1770 = vunpack.c.l.b16 %v1689
  %v1771 = vunpack.c.h.b16 %v1689
  %v1772 = vunpack.c.l.b16 %v1690
  %v1773 = vunpack.c.l.b16 %v1691
  %v1774 = vunpack.c.h.b16 %v1691
  %v1775 = vunpack.c.l.b16 %v1692
  %v1776 = vunpack.c.l.b16 %v1693
  %v1777 = vunpack.c.h.b16 %v1693
  %v1778 = vunpack.c.l.b16 %v1694
  %v1779 = vunpack.c.l.b16 %v1695
  %v1780 = vunpack.c.h.b16 %v1695
  %v1781 = vunpack.c.l.b16 %v1696
  %v1782 = vunpack.c.l.b16 %v1697
  %v1783 = vunpack.c.h.b16 %v1697
  %v1784 = vunpack.c.l.b16 %v1698
  %v1785 = vunpack.c.l.b16 %v1699
  %v1786 = vunpack.c.h.b16 %v1699
  %v1787 = vunpack.c.l.b16 %v1700
  %v1788 = vunpack.c.l.b16 %v1701
  %v1789 = vunpack.c.h.b16 %v1701
  %v1790 = vunpack.c.l.b16 %v1702
  %v1791 = vunpack.c.l.b16 %v1703
  %v1792 = vunpack.c.h.b16 %v1703
  %v1793 = vunpack.c.l.b16 %v1704
  %v1794 = vunpack.c.l.b16 %v1705
  %v1795 = vunpack.c.h.b16 %v1705
  %v1796 = vunpack.c.l.b16 %v1706
  %v1797 = vunpack.c.l.b16 %v1707
  %v1798 = vunpack.c.h.b16 %v1707
  %v1799 = vunpack.c.l.b16 %v1708
  %v1800 = vunpack.c.l.b16 %v1709
  %v1801 = vunpack.c.h.b16 %v1709
  %v1802 = vunpack.c.l.b16 %v1710
  %v1803 = vunpack.c.l.b16 %v1711
  %v1804 = vunpack.c.h.b16 %v1711
  %v1805 = vunpack.c.l.b16 %v1712
  %v1806 = vunpack.c.l.b16 %v1713
  %v1807 = vunpack.c.h.b16 %v1713
  %v1808 = vunpack.c.l.b16 %v1714
  %v1809 = vunpack.c.l.b16 %v1715
  %v1810 = vunpack.c.h.b16 %v1715
  %v1811 = vunpack.c.l.b16 %v1716
  %v1812 = vunpack.c.l.b16 %v1717
  %v1813 = vunpack.c.h.b16 %v1717
  %v1814 = vunpack.c.l.b16 %v1718
  %v1815 = vunpack.c.l.b16 %v1719
  %v1816 = vunpack.c.h.b16 %v1719
  %v1817 = vunpack.c.l.b16 %v1720
  %v1818 = vpack.c.b16 %v1773, %v1770
  %v1819 = vpack.c.b16 %v1774, %v1771
  %v1820 = vpack.c.b16 %v1775, %v1772
  %v1821 = vpack.c.b16 %v1779, %v1776
  %v1822 = vpack.c.b16 %v1780, %v1777
  %v1823 = vpack.c.b16 %v1781, %v1778
  %v1824 = vpack.c.b16 %v1785, %v1782
  %v1825 = vpack.c.b16 %v1786, %v1783
  %v1826 = vpack.c.b16 %v1787, %v1784
  %v1827 = vpack.c.b16 %v1791, %v1788
  %v1828 = vpack.c.b16 %v1792, %v1789
  %v1829 = vpack.c.b16 %v1793, %v1790
  %v1830 = vpack.c.b16 %v1797, %v1794
  %v1831 = vpack.c.b16 %v1798, %v1795
  %v1832 = vpack.c.b16 %v1799, %v1796
  %v1833 = vpack.c.b16 %v1803, %v1800
  %v1834 = vpack.c.b16 %v1804, %v1801
  %v1835 = vpack.c.b16 %v1805, %v1802
  %v1836 = vpack.c.b16 %v1809, %v1806
  %v1837 = vpack.c.b16 %v1810, %v1807
  %v1838 = vpack.c.b16 %v1811, %v1808
  %v1839 = vpack.c.b16 %v1815, %v1812
  %v1840 = vpack.c.b16 %v1816, %v1813
  %v1841 = vpack.c.b16 %v1817, %v1814
  %1866 = vmatprep.subr.bf16.mxu0 %v1819
  %1867 = vmatpush1.bf16.msra.mxu0 %v1818
  %1868 = vmatprep.subr.bf16.mxu0 %v1822
  %1869 = vmatpush1.bf16.msra.mxu0 %v1821
  %1870 = vmatprep.subr.bf16.mxu0 %v1825
  %1871 = vmatpush1.bf16.msra.mxu0 %v1824
  %1872 = vmatprep.subr.bf16.mxu0 %v1828
  %1873 = vmatpush1.bf16.msra.mxu0 %v1827
  %1874 = vmatprep.subr.bf16.mxu0 %v1831
  %1875 = vmatpush1.bf16.msra.mxu0 %v1830
  %1876 = vmatprep.subr.bf16.mxu0 %v1834
  %1877 = vmatpush1.bf16.msra.mxu0 %v1833
  %1878 = vmatprep.subr.bf16.mxu0 %v1837
  %1879 = vmatpush1.bf16.msra.mxu0 %v1836
  %1880 = vmatprep.subr.bf16.mxu0 %v1840
  %1881 = vmatpush1.bf16.msra.mxu0 %v1839
  %1882 = vmatprep.subr.bf16.mxu0 0
  %1883 = vmatpush1.bf16.msra.mxu0 0
  %1884 = vmatprep.subr.bf16.mxu0 0
  %1885 = vmatpush1.bf16.msra.mxu0 0
  %1886 = vmatprep.subr.bf16.mxu0 0
  %1887 = vmatpush1.bf16.msra.mxu0 0
  %1888 = vmatprep.subr.bf16.mxu0 0
  %1889 = vmatpush1.bf16.msra.mxu0 0
  %1890 = vmatprep.subr.bf16.mxu0 0
  %1891 = vmatpush1.bf16.msra.mxu0 0
  %1892 = vmatprep.subr.bf16.mxu0 0
  %1893 = vmatpush1.bf16.msra.mxu0 0
  %1894 = vmatprep.subr.bf16.mxu0 0
  %1895 = vmatpush1.bf16.msra.mxu0 0
  %1896 = vmatprep.subr.bf16.mxu0 0
  %1897 = vmatpush1.bf16.msra.mxu0 0
  %1898 = vmatprep.mubr.bf16.mxu0 0
  %1899 = vmatmul.mubr.bf16.gmra.mrb[0].mxu0 %v1688
  %v1900 = vpop.f32.mrb[0].mxu0
  %v1901 = vadd.f32 %v1726, %v1900
  %v1902 = vpop.f32.mrb[0].mxu0
  %v1903 = vadd.f32 %v1730, %v1902
  %v1904 = vpop.f32.mrb[0].mxu0
  %v1905 = vpop.f32.mrb[0].mxu0
  %1906 = vdwg.mxu0
  %1907 = vmatprep.subr.bf16.mxu0 0
  %1908 = vmatpush1.bf16.msra.mxu0 %v1820
  %1909 = vmatprep.subr.bf16.mxu0 0
  %1910 = vmatpush1.bf16.msra.mxu0 %v1823
  %1911 = vmatprep.subr.bf16.mxu0 0
  %1912 = vmatpush1.bf16.msra.mxu0 %v1826
  %1913 = vmatprep.subr.bf16.mxu0 0
  %1914 = vmatpush1.bf16.msra.mxu0 %v1829
  %1915 = vmatprep.subr.bf16.mxu0 0
  %1916 = vmatpush1.bf16.msra.mxu0 %v1832
  %1917 = vmatprep.subr.bf16.mxu0 0
  %1918 = vmatpush1.bf16.msra.mxu0 %v1835
  %1919 = vmatprep.subr.bf16.mxu0 0
  %1920 = vmatpush1.bf16.msra.mxu0 %v1838
  %1921 = vmatprep.subr.bf16.mxu0 0
  %1922 = vmatpush1.bf16.msra.mxu0 %v1841
  %1923 = vmatprep.subr.bf16.mxu0 0
  %1924 = vmatpush1.bf16.msra.mxu0 0
  %1925 = vmatprep.subr.bf16.mxu0 0
  %1926 = vmatpush1.bf16.msra.mxu0 0
  %1927 = vmatprep.subr.bf16.mxu0 0
  %1928 = vmatpush1.bf16.msra.mxu0 0
  %1929 = vmatprep.subr.bf16.mxu0 0
  %1930 = vmatpush1.bf16.msra.mxu0 0
  %1931 = vmatprep.subr.bf16.mxu0 0
  %1932 = vmatpush1.bf16.msra.mxu0 0
  %1933 = vmatprep.subr.bf16.mxu0 0
  %1934 = vmatpush1.bf16.msra.mxu0 0
  %1935 = vmatprep.subr.bf16.mxu0 0
  %1936 = vmatpush1.bf16.msra.mxu0 0
  %1937 = vmatprep.subr.bf16.mxu0 0
  %1938 = vmatpush1.bf16.msra.mxu0 0
  %1939 = vmatprep.mubr.bf16.mxu0 0
  %1940 = vmatmul.mubr.bf16.gmra.mrb[0].mxu0 %v1688
  %v1941 = vpop.f32.mrb[0].mxu0
  %v1942 = vadd.f32 %v1734, %v1941
  %v1943 = vpop.f32.mrb[0].mxu0
  %v1944 = vpop.f32.mrb[0].mxu0
  %v1945 = vpop.f32.mrb[0].mxu0
  %1946 = vdwg.mxu0
  %v1947 = vadd.f32 %v1685, %v1901
  %v1948 = vxor.u32 %v1947, 2147483648
  %v1949 = vmul.f32 %v1948, 1.442695
  %v1950 = vpow.pop %v1949
  %v1951 = vadd.f32 %v1950, 1.0
  %v1952 = vrcp.pop %v1951
  %v1953 = vmul.f32 1.0, %v1952
  %v1954 = vadd.f32 %v1686, %v1903
  %v1955 = vxor.u32 %v1954, 2147483648
  %v1956 = vmul.f32 %v1955, 1.442695
  %v1957 = vpow.pop %v1956
  %v1958 = vadd.f32 %v1957, 1.0
  %v1959 = vrcp.pop %v1958
  %v1960 = vmul.f32 1.0, %v1959
  %v1961 = vmul.f32 %v1953, %v1942
  %v1962 = vadd.f32 %v1687, %v1961
  %v1963 = vtanh.pop %v1962
  %v1964 = vsub.f32 1.0, %v1960
  %v1965 = vmul.f32 %v1964, %v1963
  %v1966 = vmul.f32 %v1960, %v1681
  %v1967 = vadd.f32 %v1965, %v1966
  %s1968 = scalar_lea.vmem [#allocation3], 40
  %1969 = vst [vmem:[%s1968] sm:$0xff] %v1967
  %s1970 = scalar_lea.vmem [#allocation2], 144
  %v1971 = vld [vmem:[%s1970] sm:$0xff]
  %v1972 = vld [vmem:[%s1970 + $0x8] sm:$0xff]
  %v1973 = vld [vmem:[%s1970 + $0x10] sm:$0xff]
  %v1974 = vpack.c.bf16 %v1967, %v1967
  %v1975 = vld [vmem:[%s2] sm:$0xff]
  %v1976 = vld [vmem:[%s2 + $0x8] sm:$0xf]
  %v1977 = vld [vmem:[%s2 + $0xc] sm:$0xff]
  %v1978 = vld [vmem:[%s2 + $0x14] sm:$0xf]
  %v1979 = vld [vmem:[%s2 + $0x18] sm:$0xff]
  %v1980 = vld [vmem:[%s2 + $0x20] sm:$0xf]
  %v1981 = vld [vmem:[%s2 + $0x24] sm:$0xff]
  %v1982 = vld [vmem:[%s2 + $0x2c] sm:$0xf]
  %v1983 = vld [vmem:[%s2 + $0x30] sm:$0xff]
  %v1984 = vld [vmem:[%s2 + $0x38] sm:$0xf]
  %v1985 = vld [vmem:[%s2 + $0x3c] sm:$0xff]
  %v1986 = vld [vmem:[%s2 + $0x44] sm:$0xf]
  %v1987 = vld [vmem:[%s2 + $0x48] sm:$0xff]
  %v1988 = vld [vmem:[%s2 + $0x50] sm:$0xf]
  %v1989 = vld [vmem:[%s2 + $0x54] sm:$0xff]
  %v1990 = vld [vmem:[%s2 + $0x5c] sm:$0xf]
  %v1991 = vld [vmem:[%s2 + $0x60] sm:$0xff]
  %v1992 = vld [vmem:[%s2 + $0x68] sm:$0xf]
  %v1993 = vld [vmem:[%s2 + $0x6c] sm:$0xff]
  %v1994 = vld [vmem:[%s2 + $0x74] sm:$0xf]
  %v1995 = vld [vmem:[%s2 + $0x78] sm:$0xff]
  %v1996 = vld [vmem:[%s2 + $0x80] sm:$0xf]
  %v1997 = vld [vmem:[%s2 + $0x84] sm:$0xff]
  %v1998 = vld [vmem:[%s2 + $0x8c] sm:$0xf]
  %v1999 = vld [vmem:[%s2 + $0x90] sm:$0xff]
  %v2000 = vld [vmem:[%s2 + $0x98] sm:$0xf]
  %v2001 = vld [vmem:[%s2 + $0x9c] sm:$0xff]
  %v2002 = vld [vmem:[%s2 + $0xa4] sm:$0xf]
  %v2003 = vld [vmem:[%s2 + $0xa8] sm:$0xff]
  %v2004 = vld [vmem:[%s2 + $0xb0] sm:$0xf]
  %v2005 = vld [vmem:[%s2 + $0xb4] sm:$0xff]
  %v2006 = vld [vmem:[%s2 + $0xbc] sm:$0xf]
  %v2007 = vld [vmem:[%s4] sm:$0x7]
  %v2009 = vlaneseq
  %v2010 = vshrl.u32 %v2009, 7
  %v2011 = vsub.s32 0, %v2010
  %v2012 = vrot.slane %v2007, %v2011
  %v2013 = vlaneseq
  %v2014 = vshrl.u32 %v2013, 7
  %v2015 = vsub.s32 1, %v2014
  %v2016 = vrot.slane %v2007, %v2015
  %v2017 = vlaneseq
  %v2018 = vshrl.u32 %v2017, 7
  %v2019 = vsub.s32 2, %v2018
  %v2020 = vrot.slane %v2007, %v2019
  %v2056 = vunpack.c.l.b16 %v1975
  %v2057 = vunpack.c.h.b16 %v1975
  %v2058 = vunpack.c.l.b16 %v1976
  %v2059 = vunpack.c.l.b16 %v1977
  %v2060 = vunpack.c.h.b16 %v1977
  %v2061 = vunpack.c.l.b16 %v1978
  %v2062 = vunpack.c.l.b16 %v1979
  %v2063 = vunpack.c.h.b16 %v1979
  %v2064 = vunpack.c.l.b16 %v1980
  %v2065 = vunpack.c.l.b16 %v1981
  %v2066 = vunpack.c.h.b16 %v1981
  %v2067 = vunpack.c.l.b16 %v1982
  %v2068 = vunpack.c.l.b16 %v1983
  %v2069 = vunpack.c.h.b16 %v1983
  %v2070 = vunpack.c.l.b16 %v1984
  %v2071 = vunpack.c.l.b16 %v1985
  %v2072 = vunpack.c.h.b16 %v1985
  %v2073 = vunpack.c.l.b16 %v1986
  %v2074 = vunpack.c.l.b16 %v1987
  %v2075 = vunpack.c.h.b16 %v1987
  %v2076 = vunpack.c.l.b16 %v1988
  %v2077 = vunpack.c.l.b16 %v1989
  %v2078 = vunpack.c.h.b16 %v1989
  %v2079 = vunpack.c.l.b16 %v1990
  %v2080 = vunpack.c.l.b16 %v1991
  %v2081 = vunpack.c.h.b16 %v1991
  %v2082 = vunpack.c.l.b16 %v1992
  %v2083 = vunpack.c.l.b16 %v1993
  %v2084 = vunpack.c.h.b16 %v1993
  %v2085 = vunpack.c.l.b16 %v1994
  %v2086 = vunpack.c.l.b16 %v1995
  %v2087 = vunpack.c.h.b16 %v1995
  %v2088 = vunpack.c.l.b16 %v1996
  %v2089 = vunpack.c.l.b16 %v1997
  %v2090 = vunpack.c.h.b16 %v1997
  %v2091 = vunpack.c.l.b16 %v1998
  %v2092 = vunpack.c.l.b16 %v1999
  %v2093 = vunpack.c.h.b16 %v1999
  %v2094 = vunpack.c.l.b16 %v2000
  %v2095 = vunpack.c.l.b16 %v2001
  %v2096 = vunpack.c.h.b16 %v2001
  %v2097 = vunpack.c.l.b16 %v2002
  %v2098 = vunpack.c.l.b16 %v2003
  %v2099 = vunpack.c.h.b16 %v2003
  %v2100 = vunpack.c.l.b16 %v2004
  %v2101 = vunpack.c.l.b16 %v2005
  %v2102 = vunpack.c.h.b16 %v2005
  %v2103 = vunpack.c.l.b16 %v2006
  %v2104 = vpack.c.b16 %v2059, %v2056
  %v2105 = vpack.c.b16 %v2060, %v2057
  %v2106 = vpack.c.b16 %v2061, %v2058
  %v2107 = vpack.c.b16 %v2065, %v2062
  %v2108 = vpack.c.b16 %v2066, %v2063
  %v2109 = vpack.c.b16 %v2067, %v2064
  %v2110 = vpack.c.b16 %v2071, %v2068
  %v2111 = vpack.c.b16 %v2072, %v2069
  %v2112 = vpack.c.b16 %v2073, %v2070
  %v2113 = vpack.c.b16 %v2077, %v2074
  %v2114 = vpack.c.b16 %v2078, %v2075
  %v2115 = vpack.c.b16 %v2079, %v2076
  %v2116 = vpack.c.b16 %v2083, %v2080
  %v2117 = vpack.c.b16 %v2084, %v2081
  %v2118 = vpack.c.b16 %v2085, %v2082
  %v2119 = vpack.c.b16 %v2089, %v2086
  %v2120 = vpack.c.b16 %v2090, %v2087
  %v2121 = vpack.c.b16 %v2091, %v2088
  %v2122 = vpack.c.b16 %v2095, %v2092
  %v2123 = vpack.c.b16 %v2096, %v2093
  %v2124 = vpack.c.b16 %v2097, %v2094
  %v2125 = vpack.c.b16 %v2101, %v2098
  %v2126 = vpack.c.b16 %v2102, %v2099
  %v2127 = vpack.c.b16 %v2103, %v2100
  %2152 = vmatprep.subr.bf16.mxu0 %v2105
  %2153 = vmatpush1.bf16.msra.mxu0 %v2104
  %2154 = vmatprep.subr.bf16.mxu0 %v2108
  %2155 = vmatpush1.bf16.msra.mxu0 %v2107
  %2156 = vmatprep.subr.bf16.mxu0 %v2111
  %2157 = vmatpush1.bf16.msra.mxu0 %v2110
  %2158 = vmatprep.subr.bf16.mxu0 %v2114
  %2159 = vmatpush1.bf16.msra.mxu0 %v2113
  %2160 = vmatprep.subr.bf16.mxu0 %v2117
  %2161 = vmatpush1.bf16.msra.mxu0 %v2116
  %2162 = vmatprep.subr.bf16.mxu0 %v2120
  %2163 = vmatpush1.bf16.msra.mxu0 %v2119
  %2164 = vmatprep.subr.bf16.mxu0 %v2123
  %2165 = vmatpush1.bf16.msra.mxu0 %v2122
  %2166 = vmatprep.subr.bf16.mxu0 %v2126
  %2167 = vmatpush1.bf16.msra.mxu0 %v2125
  %2168 = vmatprep.subr.bf16.mxu0 0
  %2169 = vmatpush1.bf16.msra.mxu0 0
  %2170 = vmatprep.subr.bf16.mxu0 0
  %2171 = vmatpush1.bf16.msra.mxu0 0
  %2172 = vmatprep.subr.bf16.mxu0 0
  %2173 = vmatpush1.bf16.msra.mxu0 0
  %2174 = vmatprep.subr.bf16.mxu0 0
  %2175 = vmatpush1.bf16.msra.mxu0 0
  %2176 = vmatprep.subr.bf16.mxu0 0
  %2177 = vmatpush1.bf16.msra.mxu0 0
  %2178 = vmatprep.subr.bf16.mxu0 0
  %2179 = vmatpush1.bf16.msra.mxu0 0
  %2180 = vmatprep.subr.bf16.mxu0 0
  %2181 = vmatpush1.bf16.msra.mxu0 0
  %2182 = vmatprep.subr.bf16.mxu0 0
  %2183 = vmatpush1.bf16.msra.mxu0 0
  %2184 = vmatprep.mubr.bf16.mxu0 0
  %2185 = vmatmul.mubr.bf16.gmra.mrb[0].mxu0 %v1974
  %v2186 = vpop.f32.mrb[0].mxu0
  %v2187 = vadd.f32 %v2012, %v2186
  %v2188 = vpop.f32.mrb[0].mxu0
  %v2189 = vadd.f32 %v2016, %v2188
  %v2190 = vpop.f32.mrb[0].mxu0
  %v2191 = vpop.f32.mrb[0].mxu0
  %2192 = vdwg.mxu0
  %2193 = vmatprep.subr.bf16.mxu0 0
  %2194 = vmatpush1.bf16.msra.mxu0 %v2106
  %2195 = vmatprep.subr.bf16.mxu0 0
  %2196 = vmatpush1.bf16.msra.mxu0 %v2109
  %2197 = vmatprep.subr.bf16.mxu0 0
  %2198 = vmatpush1.bf16.msra.mxu0 %v2112
  %2199 = vmatprep.subr.bf16.mxu0 0
  %2200 = vmatpush1.bf16.msra.mxu0 %v2115
  %2201 = vmatprep.subr.bf16.mxu0 0
  %2202 = vmatpush1.bf16.msra.mxu0 %v2118
  %2203 = vmatprep.subr.bf16.mxu0 0
  %2204 = vmatpush1.bf16.msra.mxu0 %v2121
  %2205 = vmatprep.subr.bf16.mxu0 0
  %2206 = vmatpush1.bf16.msra.mxu0 %v2124
  %2207 = vmatprep.subr.bf16.mxu0 0
  %2208 = vmatpush1.bf16.msra.mxu0 %v2127
  %2209 = vmatprep.subr.bf16.mxu0 0
  %2210 = vmatpush1.bf16.msra.mxu0 0
  %2211 = vmatprep.subr.bf16.mxu0 0
  %2212 = vmatpush1.bf16.msra.mxu0 0
  %2213 = vmatprep.subr.bf16.mxu0 0
  %2214 = vmatpush1.bf16.msra.mxu0 0
  %2215 = vmatprep.subr.bf16.mxu0 0
  %2216 = vmatpush1.bf16.msra.mxu0 0
  %2217 = vmatprep.subr.bf16.mxu0 0
  %2218 = vmatpush1.bf16.msra.mxu0 0
  %2219 = vmatprep.subr.bf16.mxu0 0
  %2220 = vmatpush1.bf16.msra.mxu0 0
  %2221 = vmatprep.subr.bf16.mxu0 0
  %2222 = vmatpush1.bf16.msra.mxu0 0
  %2223 = vmatprep.subr.bf16.mxu0 0
  %2224 = vmatpush1.bf16.msra.mxu0 0
  %2225 = vmatprep.mubr.bf16.mxu0 0
  %2226 = vmatmul.mubr.bf16.gmra.mrb[0].mxu0 %v1974
  %v2227 = vpop.f32.mrb[0].mxu0
  %v2228 = vadd.f32 %v2020, %v2227
  %v2229 = vpop.f32.mrb[0].mxu0
  %v2230 = vpop.f32.mrb[0].mxu0
  %v2231 = vpop.f32.mrb[0].mxu0
  %2232 = vdwg.mxu0
  %v2233 = vadd.f32 %v1971, %v2187
  %v2234 = vxor.u32 %v2233, 2147483648
  %v2235 = vmul.f32 %v2234, 1.442695
  %v2236 = vpow.pop %v2235
  %v2237 = vadd.f32 %v2236, 1.0
  %v2238 = vrcp.pop %v2237
  %v2239 = vmul.f32 1.0, %v2238
  %v2240 = vadd.f32 %v1972, %v2189
  %v2241 = vxor.u32 %v2240, 2147483648
  %v2242 = vmul.f32 %v2241, 1.442695
  %v2243 = vpow.pop %v2242
  %v2244 = vadd.f32 %v2243, 1.0
  %v2245 = vrcp.pop %v2244
  %v2246 = vmul.f32 1.0, %v2245
  %v2247 = vmul.f32 %v2239, %v2228
  %v2248 = vadd.f32 %v1973, %v2247
  %v2249 = vtanh.pop %v2248
  %v2250 = vsub.f32 1.0, %v2246
  %v2251 = vmul.f32 %v2250, %v2249
  %v2252 = vmul.f32 %v2246, %v1967
  %v2253 = vadd.f32 %v2251, %v2252
  %s2254 = scalar_lea.vmem [#allocation3], 48
  %2255 = vst [vmem:[%s2254] sm:$0xff] %v2253
  %s2256 = scalar_lea.vmem [#allocation2], 168
  %v2257 = vld [vmem:[%s2256] sm:$0xff]
  %v2258 = vld [vmem:[%s2256 + $0x8] sm:$0xff]
  %v2259 = vld [vmem:[%s2256 + $0x10] sm:$0xff]
  %v2260 = vpack.c.bf16 %v2253, %v2253
  %v2261 = vld [vmem:[%s2] sm:$0xff]
  %v2262 = vld [vmem:[%s2 + $0x8] sm:$0xf]
  %v2263 = vld [vmem:[%s2 + $0xc] sm:$0xff]
  %v2264 = vld [vmem:[%s2 + $0x14] sm:$0xf]
  %v2265 = vld [vmem:[%s2 + $0x18] sm:$0xff]
  %v2266 = vld [vmem:[%s2 + $0x20] sm:$0xf]
  %v2267 = vld [vmem:[%s2 + $0x24] sm:$0xff]
  %v2268 = vld [vmem:[%s2 + $0x2c] sm:$0xf]
  %v2269 = vld [vmem:[%s2 + $0x30] sm:$0xff]
  %v2270 = vld [vmem:[%s2 + $0x38] sm:$0xf]
  %v2271 = vld [vmem:[%s2 + $0x3c] sm:$0xff]
  %v2272 = vld [vmem:[%s2 + $0x44] sm:$0xf]
  %v2273 = vld [vmem:[%s2 + $0x48] sm:$0xff]
  %v2274 = vld [vmem:[%s2 + $0x50] sm:$0xf]
  %v2275 = vld [vmem:[%s2 + $0x54] sm:$0xff]
  %v2276 = vld [vmem:[%s2 + $0x5c] sm:$0xf]
  %v2277 = vld [vmem:[%s2 + $0x60] sm:$0xff]
  %v2278 = vld [vmem:[%s2 + $0x68] sm:$0xf]
  %v2279 = vld [vmem:[%s2 + $0x6c] sm:$0xff]
  %v2280 = vld [vmem:[%s2 + $0x74] sm:$0xf]
  %v2281 = vld [vmem:[%s2 + $0x78] sm:$0xff]
  %v2282 = vld [vmem:[%s2 + $0x80] sm:$0xf]
  %v2283 = vld [vmem:[%s2 + $0x84] sm:$0xff]
  %v2284 = vld [vmem:[%s2 + $0x8c] sm:$0xf]
  %v2285 = vld [vmem:[%s2 + $0x90] sm:$0xff]
  %v2286 = vld [vmem:[%s2 + $0x98] sm:$0xf]
  %v2287 = vld [vmem:[%s2 + $0x9c] sm:$0xff]
  %v2288 = vld [vmem:[%s2 + $0xa4] sm:$0xf]
  %v2289 = vld [vmem:[%s2 + $0xa8] sm:$0xff]
  %v2290 = vld [vmem:[%s2 + $0xb0] sm:$0xf]
  %v2291 = vld [vmem:[%s2 + $0xb4] sm:$0xff]
  %v2292 = vld [vmem:[%s2 + $0xbc] sm:$0xf]
  %v2293 = vld [vmem:[%s4] sm:$0x7]
  %v2295 = vlaneseq
  %v2296 = vshrl.u32 %v2295, 7
  %v2297 = vsub.s32 0, %v2296
  %v2298 = vrot.slane %v2293, %v2297
  %v2299 = vlaneseq
  %v2300 = vshrl.u32 %v2299, 7
  %v2301 = vsub.s32 1, %v2300
  %v2302 = vrot.slane %v2293, %v2301
  %v2303 = vlaneseq
  %v2304 = vshrl.u32 %v2303, 7
  %v2305 = vsub.s32 2, %v2304
  %v2306 = vrot.slane %v2293, %v2305
  %v2342 = vunpack.c.l.b16 %v2261
  %v2343 = vunpack.c.h.b16 %v2261
  %v2344 = vunpack.c.l.b16 %v2262
  %v2345 = vunpack.c.l.b16 %v2263
  %v2346 = vunpack.c.h.b16 %v2263
  %v2347 = vunpack.c.l.b16 %v2264
  %v2348 = vunpack.c.l.b16 %v2265
  %v2349 = vunpack.c.h.b16 %v2265
  %v2350 = vunpack.c.l.b16 %v2266
  %v2351 = vunpack.c.l.b16 %v2267
  %v2352 = vunpack.c.h.b16 %v2267
  %v2353 = vunpack.c.l.b16 %v2268
  %v2354 = vunpack.c.l.b16 %v2269
  %v2355 = vunpack.c.h.b16 %v2269
  %v2356 = vunpack.c.l.b16 %v2270
  %v2357 = vunpack.c.l.b16 %v2271
  %v2358 = vunpack.c.h.b16 %v2271
  %v2359 = vunpack.c.l.b16 %v2272
  %v2360 = vunpack.c.l.b16 %v2273
  %v2361 = vunpack.c.h.b16 %v2273
  %v2362 = vunpack.c.l.b16 %v2274
  %v2363 = vunpack.c.l.b16 %v2275
  %v2364 = vunpack.c.h.b16 %v2275
  %v2365 = vunpack.c.l.b16 %v2276
  %v2366 = vunpack.c.l.b16 %v2277
  %v2367 = vunpack.c.h.b16 %v2277
  %v2368 = vunpack.c.l.b16 %v2278
  %v2369 = vunpack.c.l.b16 %v2279
  %v2370 = vunpack.c.h.b16 %v2279
  %v2371 = vunpack.c.l.b16 %v2280
  %v2372 = vunpack.c.l.b16 %v2281
  %v2373 = vunpack.c.h.b16 %v2281
  %v2374 = vunpack.c.l.b16 %v2282
  %v2375 = vunpack.c.l.b16 %v2283
  %v2376 = vunpack.c.h.b16 %v2283
  %v2377 = vunpack.c.l.b16 %v2284
  %v2378 = vunpack.c.l.b16 %v2285
  %v2379 = vunpack.c.h.b16 %v2285
  %v2380 = vunpack.c.l.b16 %v2286
  %v2381 = vunpack.c.l.b16 %v2287
  %v2382 = vunpack.c.h.b16 %v2287
  %v2383 = vunpack.c.l.b16 %v2288
  %v2384 = vunpack.c.l.b16 %v2289
  %v2385 = vunpack.c.h.b16 %v2289
  %v2386 = vunpack.c.l.b16 %v2290
  %v2387 = vunpack.c.l.b16 %v2291
  %v2388 = vunpack.c.h.b16 %v2291
  %v2389 = vunpack.c.l.b16 %v2292
  %v2390 = vpack.c.b16 %v2345, %v2342
  %v2391 = vpack.c.b16 %v2346, %v2343
  %v2392 = vpack.c.b16 %v2347, %v2344
  %v2393 = vpack.c.b16 %v2351, %v2348
  %v2394 = vpack.c.b16 %v2352, %v2349
  %v2395 = vpack.c.b16 %v2353, %v2350
  %v2396 = vpack.c.b16 %v2357, %v2354
  %v2397 = vpack.c.b16 %v2358, %v2355
  %v2398 = vpack.c.b16 %v2359, %v2356
  %v2399 = vpack.c.b16 %v2363, %v2360
  %v2400 = vpack.c.b16 %v2364, %v2361
  %v2401 = vpack.c.b16 %v2365, %v2362
  %v2402 = vpack.c.b16 %v2369, %v2366
  %v2403 = vpack.c.b16 %v2370, %v2367
  %v2404 = vpack.c.b16 %v2371, %v2368
  %v2405 = vpack.c.b16 %v2375, %v2372
  %v2406 = vpack.c.b16 %v2376, %v2373
  %v2407 = vpack.c.b16 %v2377, %v2374
  %v2408 = vpack.c.b16 %v2381, %v2378
  %v2409 = vpack.c.b16 %v2382, %v2379
  %v2410 = vpack.c.b16 %v2383, %v2380
  %v2411 = vpack.c.b16 %v2387, %v2384
  %v2412 = vpack.c.b16 %v2388, %v2385
  %v2413 = vpack.c.b16 %v2389, %v2386
  %2438 = vmatprep.subr.bf16.mxu0 %v2391
  %2439 = vmatpush1.bf16.msra.mxu0 %v2390
  %2440 = vmatprep.subr.bf16.mxu0 %v2394
  %2441 = vmatpush1.bf16.msra.mxu0 %v2393
  %2442 = vmatprep.subr.bf16.mxu0 %v2397
  %2443 = vmatpush1.bf16.msra.mxu0 %v2396
  %2444 = vmatprep.subr.bf16.mxu0 %v2400
  %2445 = vmatpush1.bf16.msra.mxu0 %v2399
  %2446 = vmatprep.subr.bf16.mxu0 %v2403
  %2447 = vmatpush1.bf16.msra.mxu0 %v2402
  %2448 = vmatprep.subr.bf16.mxu0 %v2406
  %2449 = vmatpush1.bf16.msra.mxu0 %v2405
  %2450 = vmatprep.subr.bf16.mxu0 %v2409
  %2451 = vmatpush1.bf16.msra.mxu0 %v2408
  %2452 = vmatprep.subr.bf16.mxu0 %v2412
  %2453 = vmatpush1.bf16.msra.mxu0 %v2411
  %2454 = vmatprep.subr.bf16.mxu0 0
  %2455 = vmatpush1.bf16.msra.mxu0 0
  %2456 = vmatprep.subr.bf16.mxu0 0
  %2457 = vmatpush1.bf16.msra.mxu0 0
  %2458 = vmatprep.subr.bf16.mxu0 0
  %2459 = vmatpush1.bf16.msra.mxu0 0
  %2460 = vmatprep.subr.bf16.mxu0 0
  %2461 = vmatpush1.bf16.msra.mxu0 0
  %2462 = vmatprep.subr.bf16.mxu0 0
  %2463 = vmatpush1.bf16.msra.mxu0 0
  %2464 = vmatprep.subr.bf16.mxu0 0
  %2465 = vmatpush1.bf16.msra.mxu0 0
  %2466 = vmatprep.subr.bf16.mxu0 0
  %2467 = vmatpush1.bf16.msra.mxu0 0
  %2468 = vmatprep.subr.bf16.mxu0 0
  %2469 = vmatpush1.bf16.msra.mxu0 0
  %2470 = vmatprep.mubr.bf16.mxu0 0
  %2471 = vmatmul.mubr.bf16.gmra.mrb[0].mxu0 %v2260
  %v2472 = vpop.f32.mrb[0].mxu0
  %v2473 = vadd.f32 %v2298, %v2472
  %v2474 = vpop.f32.mrb[0].mxu0
  %v2475 = vadd.f32 %v2302, %v2474
  %v2476 = vpop.f32.mrb[0].mxu0
  %v2477 = vpop.f32.mrb[0].mxu0
  %2478 = vdwg.mxu0
  %2479 = vmatprep.subr.bf16.mxu0 0
  %2480 = vmatpush1.bf16.msra.mxu0 %v2392
  %2481 = vmatprep.subr.bf16.mxu0 0
  %2482 = vmatpush1.bf16.msra.mxu0 %v2395
  %2483 = vmatprep.subr.bf16.mxu0 0
  %2484 = vmatpush1.bf16.msra.mxu0 %v2398
  %2485 = vmatprep.subr.bf16.mxu0 0
  %2486 = vmatpush1.bf16.msra.mxu0 %v2401
  %2487 = vmatprep.subr.bf16.mxu0 0
  %2488 = vmatpush1.bf16.msra.mxu0 %v2404
  %2489 = vmatprep.subr.bf16.mxu0 0
  %2490 = vmatpush1.bf16.msra.mxu0 %v2407
  %2491 = vmatprep.subr.bf16.mxu0 0
  %2492 = vmatpush1.bf16.msra.mxu0 %v2410
  %2493 = vmatprep.subr.bf16.mxu0 0
  %2494 = vmatpush1.bf16.msra.mxu0 %v2413
  %2495 = vmatprep.subr.bf16.mxu0 0
  %2496 = vmatpush1.bf16.msra.mxu0 0
  %2497 = vmatprep.subr.bf16.mxu0 0
  %2498 = vmatpush1.bf16.msra.mxu0 0
  %2499 = vmatprep.subr.bf16.mxu0 0
  %2500 = vmatpush1.bf16.msra.mxu0 0
  %2501 = vmatprep.subr.bf16.mxu0 0
  %2502 = vmatpush1.bf16.msra.mxu0 0
  %2503 = vmatprep.subr.bf16.mxu0 0
  %2504 = vmatpush1.bf16.msra.mxu0 0
  %2505 = vmatprep.subr.bf16.mxu0 0
  %2506 = vmatpush1.bf16.msra.mxu0 0
  %2507 = vmatprep.subr.bf16.mxu0 0
  %2508 = vmatpush1.bf16.msra.mxu0 0
  %2509 = vmatprep.subr.bf16.mxu0 0
  %2510 = vmatpush1.bf16.msra.mxu0 0
  %2511 = vmatprep.mubr.bf16.mxu0 0
  %2512 = vmatmul.mubr.bf16.gmra.mrb[0].mxu0 %v2260
  %v2513 = vpop.f32.mrb[0].mxu0
  %v2514 = vadd.f32 %v2306, %v2513
  %v2515 = vpop.f32.mrb[0].mxu0
  %v2516 = vpop.f32.mrb[0].mxu0
  %v2517 = vpop.f32.mrb[0].mxu0
  %2518 = vdwg.mxu0
  %v2519 = vadd.f32 %v2257, %v2473
  %v2520 = vxor.u32 %v2519, 2147483648
  %v2521 = vmul.f32 %v2520, 1.442695
  %v2522 = vpow.pop %v2521
  %v2523 = vadd.f32 %v2522, 1.0
  %v2524 = vrcp.pop %v2523
  %v2525 = vmul.f32 1.0, %v2524
  %v2526 = vadd.f32 %v2258, %v2475
  %v2527 = vxor.u32 %v2526, 2147483648
  %v2528 = vmul.f32 %v2527, 1.442695
  %v2529 = vpow.pop %v2528
  %v2530 = vadd.f32 %v2529, 1.0
  %v2531 = vrcp.pop %v2530
  %v2532 = vmul.f32 1.0, %v2531
  %v2533 = vmul.f32 %v2525, %v2514
  %v2534 = vadd.f32 %v2259, %v2533
  %v2535 = vtanh.pop %v2534
  %v2536 = vsub.f32 1.0, %v2532
  %v2537 = vmul.f32 %v2536, %v2535
  %v2538 = vmul.f32 %v2532, %v2253
  %v2539 = vadd.f32 %v2537, %v2538
  %s2540 = scalar_lea.vmem [#allocation3], 56
  %2541 = vst [vmem:[%s2540] sm:$0xff] %v2539
  %v2542 = vld [vmem:[#allocation3] sm:$0xff]
  %v2543 = vld [vmem:[#allocation3 + $0x8] sm:$0xff]
  %v2544 = vld [vmem:[#allocation3 + $0x10] sm:$0xff]
  %v2545 = vld [vmem:[#allocation3 + $0x18] sm:$0xff]
  %v2546 = vld [vmem:[#allocation3 + $0x20] sm:$0xff]
  %v2547 = vld [vmem:[#allocation3 + $0x28] sm:$0xff]
  %v2548 = vld [vmem:[#allocation3 + $0x30] sm:$0xff]
  %v2549 = vld [vmem:[#allocation3 + $0x38] sm:$0xff]
  %v2550 = vpack.c.bf16 %v2543, %v2542
  %v2551 = vpack.c.bf16 %v2545, %v2544
  %v2552 = vpack.c.bf16 %v2547, %v2546
  %v2553 = vpack.c.bf16 %v2549, %v2548
  %v2554 = vld [vmem:[%s7] sm:$0xff]
  %v2555 = vld [vmem:[%s7 + $0x8] sm:$0xff]
  %v2556 = vld [vmem:[%s7 + $0x10] sm:$0xff]
  %v2557 = vld [vmem:[%s7 + $0x18] sm:$0xff]
  %v2558 = vld [vmem:[%s7 + $0x20] sm:$0xff]
  %v2559 = vld [vmem:[%s7 + $0x28] sm:$0xff]
  %v2560 = vld [vmem:[%s7 + $0x30] sm:$0xff]
  %v2561 = vld [vmem:[%s7 + $0x38] sm:$0xff]
  %v2562 = vld [vmem:[%s7 + $0x40] sm:$0xff]
  %v2563 = vld [vmem:[%s7 + $0x48] sm:$0xff]
  %v2564 = vld [vmem:[%s7 + $0x50] sm:$0xff]
  %v2565 = vld [vmem:[%s7 + $0x58] sm:$0xff]
  %v2566 = vld [vmem:[%s7 + $0x60] sm:$0xff]
  %v2567 = vld [vmem:[%s7 + $0x68] sm:$0xff]
  %v2568 = vld [vmem:[%s7 + $0x70] sm:$0xff]
  %v2569 = vld [vmem:[%s7 + $0x78] sm:$0xff]
  %v2586 = vunpack.c.l.b16 %v2554
  %v2587 = vunpack.c.h.b16 %v2554
  %v2588 = vunpack.c.l.b16 %v2555
  %v2589 = vunpack.c.h.b16 %v2555
  %v2590 = vunpack.c.l.b16 %v2556
  %v2591 = vunpack.c.h.b16 %v2556
  %v2592 = vunpack.c.l.b16 %v2557
  %v2593 = vunpack.c.h.b16 %v2557
  %v2594 = vunpack.c.l.b16 %v2558
  %v2595 = vunpack.c.h.b16 %v2558
  %v2596 = vunpack.c.l.b16 %v2559
  %v2597 = vunpack.c.h.b16 %v2559
  %v2598 = vunpack.c.l.b16 %v2560
  %v2599 = vunpack.c.h.b16 %v2560
  %v2600 = vunpack.c.l.b16 %v2561
  %v2601 = vunpack.c.h.b16 %v2561
  %v2602 = vunpack.c.l.b16 %v2562
  %v2603 = vunpack.c.h.b16 %v2562
  %v2604 = vunpack.c.l.b16 %v2563
  %v2605 = vunpack.c.h.b16 %v2563
  %v2606 = vunpack.c.l.b16 %v2564
  %v2607 = vunpack.c.h.b16 %v2564
  %v2608 = vunpack.c.l.b16 %v2565
  %v2609 = vunpack.c.h.b16 %v2565
  %v2610 = vunpack.c.l.b16 %v2566
  %v2611 = vunpack.c.h.b16 %v2566
  %v2612 = vunpack.c.l.b16 %v2567
  %v2613 = vunpack.c.h.b16 %v2567
  %v2614 = vunpack.c.l.b16 %v2568
  %v2615 = vunpack.c.h.b16 %v2568
  %v2616 = vunpack.c.l.b16 %v2569
  %v2617 = vunpack.c.h.b16 %v2569
  %v2618 = vpack.c.b16 %v2588, %v2586
  %v2619 = vpack.c.b16 %v2589, %v2587
  %v2620 = vpack.c.b16 %v2592, %v2590
  %v2621 = vpack.c.b16 %v2593, %v2591
  %v2622 = vpack.c.b16 %v2596, %v2594
  %v2623 = vpack.c.b16 %v2597, %v2595
  %v2624 = vpack.c.b16 %v2600, %v2598
  %v2625 = vpack.c.b16 %v2601, %v2599
  %v2626 = vpack.c.b16 %v2604, %v2602
  %v2627 = vpack.c.b16 %v2605, %v2603
  %v2628 = vpack.c.b16 %v2608, %v2606
  %v2629 = vpack.c.b16 %v2609, %v2607
  %v2630 = vpack.c.b16 %v2612, %v2610
  %v2631 = vpack.c.b16 %v2613, %v2611
  %v2632 = vpack.c.b16 %v2616, %v2614
  %v2633 = vpack.c.b16 %v2617, %v2615
  %2650 = vmatprep.subr.bf16.mxu0 %v2619
  %2651 = vmatpush1.bf16.msra.mxu0 %v2618
  %2652 = vmatprep.subr.bf16.mxu0 %v2621
  %2653 = vmatpush1.bf16.msra.mxu0 %v2620
  %2654 = vmatprep.subr.bf16.mxu0 %v2623
  %2655 = vmatpush1.bf16.msra.mxu0 %v2622
  %2656 = vmatprep.subr.bf16.mxu0 %v2625
  %2657 = vmatpush1.bf16.msra.mxu0 %v2624
  %2658 = vmatprep.subr.bf16.mxu0 %v2627
  %2659 = vmatpush1.bf16.msra.mxu0 %v2626
  %2660 = vmatprep.subr.bf16.mxu0 %v2629
  %2661 = vmatpush1.bf16.msra.mxu0 %v2628
  %2662 = vmatprep.subr.bf16.mxu0 %v2631
  %2663 = vmatpush1.bf16.msra.mxu0 %v2630
  %2664 = vmatprep.subr.bf16.mxu0 %v2633
  %2665 = vmatpush1.bf16.msra.mxu0 %v2632
  %2666 = vmatprep.subr.bf16.mxu0 0
  %2667 = vmatpush1.bf16.msra.mxu0 0
  %2668 = vmatprep.subr.bf16.mxu0 0
  %2669 = vmatpush1.bf16.msra.mxu0 0
  %2670 = vmatprep.subr.bf16.mxu0 0
  %2671 = vmatpush1.bf16.msra.mxu0 0
  %2672 = vmatprep.subr.bf16.mxu0 0
  %2673 = vmatpush1.bf16.msra.mxu0 0
  %2674 = vmatprep.subr.bf16.mxu0 0
  %2675 = vmatpush1.bf16.msra.mxu0 0
  %2676 = vmatprep.subr.bf16.mxu0 0
  %2677 = vmatpush1.bf16.msra.mxu0 0
  %2678 = vmatprep.subr.bf16.mxu0 0
  %2679 = vmatpush1.bf16.msra.mxu0 0
  %2680 = vmatprep.subr.bf16.mxu0 0
  %2681 = vmatpush1.bf16.msra.mxu0 0
  %2682 = vmatprep.mubr.bf16.mxu0 0
  %2683 = vmatmul.mubr.bf16.gmra.mrb[0].mxu0 %v2550
  %v2684 = vpop.f32.mrb[0].mxu0
  %v2685 = vadd.f32 0.0, %v2684
  %v2686 = vpop.f32.mrb[0].mxu0
  %v2687 = vadd.f32 0.0, %v2686
  %v2688 = vpop.f32.mrb[0].mxu0
  %v2689 = vadd.f32 0.0, %v2688
  %v2690 = vpop.f32.mrb[0].mxu0
  %v2691 = vadd.f32 0.0, %v2690
  %2692 = vmatprep.mubr.bf16.mxu0 0
  %2693 = vmatmul.mubr.bf16.gmra.mrb[0].mxu0 %v2551
  %v2694 = vpop.f32.mrb[0].mxu0
  %v2695 = vadd.f32 0.0, %v2694
  %v2696 = vpop.f32.mrb[0].mxu0
  %v2697 = vadd.f32 0.0, %v2696
  %v2698 = vpop.f32.mrb[0].mxu0
  %v2699 = vadd.f32 0.0, %v2698
  %v2700 = vpop.f32.mrb[0].mxu0
  %v2701 = vadd.f32 0.0, %v2700
  %2702 = vmatprep.mubr.bf16.mxu0 0
  %2703 = vmatmul.mubr.bf16.gmra.mrb[0].mxu0 %v2552
  %v2704 = vpop.f32.mrb[0].mxu0
  %v2705 = vadd.f32 0.0, %v2704
  %v2706 = vpop.f32.mrb[0].mxu0
  %v2707 = vadd.f32 0.0, %v2706
  %v2708 = vpop.f32.mrb[0].mxu0
  %v2709 = vadd.f32 0.0, %v2708
  %v2710 = vpop.f32.mrb[0].mxu0
  %v2711 = vadd.f32 0.0, %v2710
  %2712 = vmatprep.mubr.bf16.mxu0 0
  %2713 = vmatmul.mubr.bf16.gmra.mrb[0].mxu0 %v2553
  %v2714 = vpop.f32.mrb[0].mxu0
  %v2715 = vadd.f32 0.0, %v2714
  %v2716 = vpop.f32.mrb[0].mxu0
  %v2717 = vadd.f32 0.0, %v2716
  %v2718 = vpop.f32.mrb[0].mxu0
  %v2719 = vadd.f32 0.0, %v2718
  %v2720 = vpop.f32.mrb[0].mxu0
  %v2721 = vadd.f32 0.0, %v2720
  %2722 = vdwg.mxu0
  %v2723 = vld [vmem:[%s5] sm:$0x1]
  %v2725 = vlaneseq
  %v2726 = vshrl.u32 %v2725, 7
  %v2727 = vsub.s32 0, %v2726
  %v2728 = vrot.slane %v2723, %v2727
  %v2730 = vadd.f32 %v2685, %v2728
  %v2731 = vadd.f32 %v2689, %v2728
  %v2732 = vadd.f32 %v2695, %v2728
  %v2733 = vadd.f32 %v2699, %v2728
  %v2734 = vadd.f32 %v2705, %v2728
  %v2735 = vadd.f32 %v2709, %v2728
  %v2736 = vadd.f32 %v2715, %v2728
  %v2737 = vadd.f32 %v2719, %v2728
  %v2738 = vtanh.pop %v2730
  %v2739 = vtanh.pop %v2731
  %v2740 = vtanh.pop %v2732
  %v2741 = vtanh.pop %v2733
  %v2742 = vtanh.pop %v2734
  %v2743 = vtanh.pop %v2735
  %v2744 = vtanh.pop %v2736
  %v2745 = vtanh.pop %v2737
  %v2746 = vld [vmem:[%s6] sm:$0x1]
  %v2748 = vlaneseq
  %v2749 = vshrl.u32 %v2748, 7
  %v2750 = vsub.s32 0, %v2749
  %v2751 = vrot.slane %v2746, %v2750
  %v2753 = vmul.f32 %v2738, %v2751
  %v2754 = vmul.f32 %v2739, %v2751
  %v2755 = vmul.f32 %v2740, %v2751
  %v2756 = vmul.f32 %v2741, %v2751
  %v2757 = vmul.f32 %v2742, %v2751
  %v2758 = vmul.f32 %v2743, %v2751
  %v2759 = vmul.f32 %v2744, %v2751
  %v2760 = vmul.f32 %v2745, %v2751
  %2761 = vadd.xlane.f32.xlu0 %v2753
  %v2762 = vpop.xlane.xlu0 %2761
  %2763 = vadd.xlane.f32.xlu0 %v2754
  %v2764 = vpop.xlane.xlu0 %2763
  %2765 = vadd.xlane.f32.xlu0 %v2755
  %v2766 = vpop.xlane.xlu0 %2765
  %2767 = vadd.xlane.f32.xlu0 %v2756
  %v2768 = vpop.xlane.xlu0 %2767
  %2769 = vadd.xlane.f32.xlu0 %v2757
  %v2770 = vpop.xlane.xlu0 %2769
  %2771 = vadd.xlane.f32.xlu0 %v2758
  %v2772 = vpop.xlane.xlu0 %2771
  %2773 = vadd.xlane.f32.xlu0 %v2759
  %v2774 = vpop.xlane.xlu0 %2773
  %2775 = vadd.xlane.f32.xlu0 %v2760
  %v2776 = vpop.xlane.xlu0 %2775
  %v2777 = vmax.f32 %v2762, %v2764
  %v2778 = vmax.f32 %v2777, %v2766
  %v2779 = vmax.f32 %v2778, %v2768
  %v2780 = vmax.f32 %v2779, %v2770
  %v2781 = vmax.f32 %v2780, %v2772
  %v2782 = vmax.f32 %v2781, %v2774
  %v2783 = vmax.f32 %v2782, %v2776
  %v2784 = vsub.f32 %v2762, %v2783
  %v2785 = vsub.f32 %v2764, %v2783
  %v2786 = vsub.f32 %v2766, %v2783
  %v2787 = vsub.f32 %v2768, %v2783
  %v2788 = vsub.f32 %v2770, %v2783
  %v2789 = vsub.f32 %v2772, %v2783
  %v2790 = vsub.f32 %v2774, %v2783
  %v2791 = vsub.f32 %v2776, %v2783
  %v2792 = vmul.f32 %v2784, 1.442695
  %v2793 = vpow.pop %v2792
  %v2794 = vmul.f32 %v2785, 1.442695
  %v2795 = vpow.pop %v2794
  %v2796 = vmul.f32 %v2786, 1.442695
  %v2797 = vpow.pop %v2796
  %v2798 = vmul.f32 %v2787, 1.442695
  %v2799 = vpow.pop %v2798
  %v2800 = vmul.f32 %v2788, 1.442695
  %v2801 = vpow.pop %v2800
  %v2802 = vmul.f32 %v2789, 1.442695
  %v2803 = vpow.pop %v2802
  %v2804 = vmul.f32 %v2790, 1.442695
  %v2805 = vpow.pop %v2804
  %v2806 = vmul.f32 %v2791, 1.442695
  %v2807 = vpow.pop %v2806
  %v2808 = vadd.f32 %v2793, %v2795
  %v2809 = vadd.f32 %v2808, %v2797
  %v2810 = vadd.f32 %v2809, %v2799
  %v2811 = vadd.f32 %v2810, %v2801
  %v2812 = vadd.f32 %v2811, %v2803
  %v2813 = vadd.f32 %v2812, %v2805
  %v2814 = vadd.f32 %v2813, %v2807
  %v2815 = vrcp.pop %v2814
  %v2816 = vmul.f32 %v2793, %v2815
  %v2817 = vmul.f32 %v2795, %v2815
  %v2818 = vmul.f32 %v2797, %v2815
  %v2819 = vmul.f32 %v2799, %v2815
  %v2820 = vmul.f32 %v2801, %v2815
  %v2821 = vmul.f32 %v2803, %v2815
  %v2822 = vmul.f32 %v2805, %v2815
  %v2823 = vmul.f32 %v2807, %v2815
  %v2824 = vmul.f32 %v2687, %v2816
  %v2825 = vmul.f32 %v2691, %v2817
  %v2826 = vmul.f32 %v2697, %v2818
  %v2827 = vmul.f32 %v2701, %v2819
  %v2828 = vmul.f32 %v2707, %v2820
  %v2829 = vmul.f32 %v2711, %v2821
  %v2830 = vmul.f32 %v2717, %v2822
  %v2831 = vmul.f32 %v2721, %v2823
  %v2832 = vld [vmem:[%s8] sm:$0x1]
  %v2834 = vlaneseq
  %v2835 = vshrl.u32 %v2834, 7
  %v2836 = vsub.s32 0, %v2835
  %v2837 = vrot.slane %v2832, %v2836
  %v2839 = vadd.f32 %v2824, %v2837
  %v2840 = vadd.f32 %v2825, %v2837
  %v2841 = vadd.f32 %v2826, %v2837
  %v2842 = vadd.f32 %v2827, %v2837
  %v2843 = vadd.f32 %v2828, %v2837
  %v2844 = vadd.f32 %v2829, %v2837
  %v2845 = vadd.f32 %v2830, %v2837
  %v2846 = vadd.f32 %v2831, %v2837
  %2847 = vst [vmem:[%s9] sm:$0xff] %v2839
  %2848 = vst [vmem:[%s9 + $0x8] sm:$0xff] %v2840
  %2849 = vst [vmem:[%s9 + $0x10] sm:$0xff] %v2841
  %2850 = vst [vmem:[%s9 + $0x18] sm:$0xff] %v2842
  %2851 = vst [vmem:[%s9 + $0x20] sm:$0xff] %v2843
  %2852 = vst [vmem:[%s9 + $0x28] sm:$0xff] %v2844
  %2853 = vst [vmem:[%s9 + $0x30] sm:$0xff] %v2845
  %2854 = vst [vmem:[%s9 + $0x38] sm:$0xff] %v2846
  // Predicated region
  $region38: #{arnn_forward.1} parent=0 // pred_check
    _
  $region39: #{arnn_forward.1} parent=0 // pred_check_branch
    %2856 = sbr.rel (0) target = $region41
  $region40: #{arnn_forward.1} parent=0 // pred_region
    _
  $region41: #{arnn_forward.1} parent=0 // pred_fallthru
    _
  // Predicated region
  $region42: #{arnn_forward.1} parent=0 // pred_check
    _
  $region43: #{arnn_forward.1} parent=0 // pred_check_branch
    %2858 = sbr.rel (0) target = $region45
  $region44: #{arnn_forward.1} parent=0 // pred_region
    _
  $region45: #{arnn_forward.1} parent=0 // pred_fallthru
    _

</llo_original>
